<compile_context>
chip_gen: v6e
topology: v6e:2x2x1
jax: 0.10.0
libtpu: 0.0.40
codegen_flags: <defaults>
</compile_context>

<pallas_src>
import math

import jax
import jax.numpy as jnp
from jax.experimental import pallas as pl
from jax.experimental.pallas import tpu as pltpu

HIDDEN = 100  # hidden_size = 100 in the PyTorch module


def _round_up(n, m):
    return ((n + m - 1) // m) * m


def bigru_linear_min_kernel(
    x_ref,        # (S, TB)      f32   input, time on sublanes / batch tile on lanes
    xc_ref,       # (S, TB, 1)   f32   same input, batch on sublanes (for lane broadcast)
    wih_f_ref,    # (1, 3Hp)     f32   input->gate weights (r|z|n blocks), lane-major
    whhT_f_ref,   # (Hp, 3Hp)    bf16  fused transposed recurrent weights
    bcomb_f_ref,  # (1, 3Hp)     f32   b_ih+b_hh for r,z ; b_ih for n
    bhn_f_ref,    # (1, Hp)      f32   b_hh for n gate
    wih_b_ref, whhT_b_ref, bcomb_b_ref, bhn_b_ref,   # backward direction, same shapes
    wlf_ref,      # (1, Hp)      f32   linear weight, forward half
    wlb_ref,      # (1, Hp)      f32   linear weight, backward half
    bl_ref,       # (1, 1)       f32   linear bias, in SMEM
    out_ref,      # (S, TB)      f32
    gi_f, gi_b,       # (S, TB, 3Hp) f32 scratch: precomputed input-gate contributions
    hf_all, hb_all,   # (S, TB, Hp)  f32 scratch: per-step hidden states
):
    S, TB = x_ref.shape
    Hp = whhT_f_ref.shape[0]

    # ---- Precompute input-side gate contributions for every timestep (off the
    #      recurrence critical path).  input_size == 1, so this is a broadcast multiply.
    xc = xc_ref[...]                                     # (S, TB, 1)
    gi_f[...] = xc * wih_f_ref[...] + bcomb_f_ref[...]   # (S, TB, 3Hp)
    gi_b[...] = xc * wih_b_ref[...] + bcomb_b_ref[...]

    bhn_f = bhn_f_ref[...]                               # (1, Hp)
    bhn_b = bhn_b_ref[...]

    def gru_cell(gi, h, whhT_ref, bhn):
        # gi: (TB, 3Hp) = W_i x + folded biases ; h: (TB, Hp)
        # Single fused recurrent matmul, bf16 operands streamed from VMEM, f32 accumulate.
        gh = jnp.dot(h.astype(jnp.bfloat16), whhT_ref[...],
                     preferred_element_type=jnp.float32)            # (TB, 3Hp)
        r = jax.nn.sigmoid(gi[:, 0 * Hp:1 * Hp] + gh[:, 0 * Hp:1 * Hp])
        z = jax.nn.sigmoid(gi[:, 1 * Hp:2 * Hp] + gh[:, 1 * Hp:2 * Hp])
        n = jnp.tanh(gi[:, 2 * Hp:3 * Hp] + r * (gh[:, 2 * Hp:3 * Hp] + bhn))
        return (1.0 - z) * n + z * h

    def body(t, carry):
        hf, hb = carry
        tb = S - 1 - t
        hf = gru_cell(gi_f[t], hf, whhT_f_ref, bhn_f)
        hb = gru_cell(gi_b[tb], hb, whhT_b_ref, bhn_b)
        hf_all[t] = hf
        hb_all[tb] = hb
        return hf, hb

    h0 = jnp.zeros((TB, Hp), jnp.float32)
    unroll = True if S <= 16 else 4    # interleave fwd/bwd cells & adjacent steps
    jax.lax.fori_loop(0, S, body, (h0, h0), unroll=unroll)

    # ---- Output projection, done once after the loop (VPU multiply + lane reduce),
    #      then bias add and elementwise min with the input.
    pf = jnp.sum(hf_all[...] * wlf_ref[...], axis=-1)    # (S, TB)
    pb = jnp.sum(hb_all[...] * wlb_ref[...], axis=-1)    # (S, TB)
    pred = pf + pb + bl_ref[0, 0]
    out_ref[...] = jnp.minimum(pred, x_ref[...])


def _prepare_direction(w_ih, w_hh, b_ih, b_hh, H, Hp):
    """Repack one GRU direction's PyTorch-layout weights for the kernel.

    w_ih: (3H, 1), w_hh: (3H, H), b_ih/b_hh: (3H,), PyTorch gate order (r, z, n).
    """
    def pad_lane(v):                 # (H,) -> (1, Hp)
        return jnp.pad(v, (0, Hp - H))[None, :]

    gates_w = [w_hh[g * H:(g + 1) * H, :] for g in range(3)]                       # (H, H)
    whhT = jnp.concatenate(
        [jnp.pad(g.T, ((0, Hp - H), (0, Hp - H))) for g in gates_w], axis=1)       # (Hp, 3Hp)
    wih_row = jnp.concatenate(
        [pad_lane(w_ih[g * H:(g + 1) * H, 0]) for g in range(3)], axis=1)          # (1, 3Hp)
    bi = [pad_lane(b_ih[g * H:(g + 1) * H]) for g in range(3)]
    bh = [pad_lane(b_hh[g * H:(g + 1) * H]) for g in range(3)]
    bcomb = jnp.concatenate([bi[0] + bh[0], bi[1] + bh[1], bi[2]], axis=1)          # (1, 3Hp)
    bhn = bh[2]                                                                     # (1, Hp)
    return (wih_row.astype(jnp.float32), whhT.astype(jnp.bfloat16),
            bcomb.astype(jnp.float32), bhn.astype(jnp.float32))


def custom_rnn_forward(x, params, hidden_size=HIDDEN):
    """x: (B, S, 1) float32  ->  (B, S, 1) float32 = min(Linear(BiGRU(x)), x)."""
    B, S, _ = x.shape
    H = hidden_size
    Hp = _round_up(H, 128)
    GH = 3 * Hp

    # Batch tiling: pad for clean (8,128) tiles; 128-wide lane tiles for large batches so
    # the grid axis can be split across TensorCores (v7x) and stay VMEM-resident.
    if B <= 128:
        Bp = _round_up(B, 8)
        TB = Bp
    else:
        Bp = _round_up(B, 128)
        TB = 128
    nb = Bp // TB

    x_sb = jnp.pad(jnp.transpose(x[:, :, 0]), ((0, 0), (0, Bp - B)))                  # (S, Bp)
    x_col = jnp.pad(jnp.transpose(x, (1, 0, 2)), ((0, 0), (0, Bp - B), (0, 0)))       # (S, Bp, 1)

    wih_f, whhT_f, bcomb_f, bhn_f = _prepare_direction(
        params["w_ih_f"], params["w_hh_f"], params["b_ih_f"], params["b_hh_f"], H, Hp)
    wih_b, whhT_b, bcomb_b, bhn_b = _prepare_direction(
        params["w_ih_b"], params["w_hh_b"], params["b_ih_b"], params["b_hh_b"], H, Hp)
    wlf = jnp.pad(params["w_lin"][:, :H], ((0, 0), (0, Hp - H)))                      # (1, Hp)
    wlb = jnp.pad(params["w_lin"][:, H:], ((0, 0), (0, Hp - H)))                      # (1, Hp)
    bl = params["b_lin"].reshape(1, 1).astype(jnp.float32)                            # (1, 1)

    x_map = lambda b: (0, b)
    xc_map = lambda b: (0, b, 0)
    w_map = lambda b: (0, 0)

    out_sb = pl.pallas_call(
        bigru_linear_min_kernel,
        out_shape=jax.ShapeDtypeStruct((S, Bp), jnp.float32),
        grid=(nb,),
        in_specs=[
            pl.BlockSpec((S, TB), x_map),          # x  (S, Bp)
            pl.BlockSpec((S, TB, 1), xc_map),      # x  (S, Bp, 1)
            pl.BlockSpec((1, GH), w_map),          # wih_f
            pl.BlockSpec((Hp, GH), w_map),         # whhT_f
            pl.BlockSpec((1, GH), w_map),          # bcomb_f
            pl.BlockSpec((1, Hp), w_map),          # bhn_f
            pl.BlockSpec((1, GH), w_map),          # wih_b
            pl.BlockSpec((Hp, GH), w_map),         # whhT_b
            pl.BlockSpec((1, GH), w_map),          # bcomb_b
            pl.BlockSpec((1, Hp), w_map),          # bhn_b
            pl.BlockSpec((1, Hp), w_map),          # wlf
            pl.BlockSpec((1, Hp), w_map),          # wlb
            pl.BlockSpec(memory_space=pltpu.MemorySpace.SMEM),   # bl (1,1) scalar
        ],
        out_specs=pl.BlockSpec((S, TB), x_map),
        scratch_shapes=[
            pltpu.VMEM((S, TB, GH), jnp.float32),  # gi_f
            pltpu.VMEM((S, TB, GH), jnp.float32),  # gi_b
            pltpu.VMEM((S, TB, Hp), jnp.float32),  # hf_all
            pltpu.VMEM((S, TB, Hp), jnp.float32),  # hb_all
        ],
        compiler_params=pltpu.CompilerParams(
            dimension_semantics=("parallel",),     # independent batch tiles (2 TCs on v7x)
        ),
    )(x_sb, x_col, wih_f, whhT_f, bcomb_f, bhn_f,
      wih_b, whhT_b, bcomb_b, bhn_b, wlf, wlb, bl)

    return jnp.transpose(out_sb[:, :B])[:, :, None]    # (B, S, 1)


def init_params(key, H):
    """PyTorch-shaped params for nn.GRU(1, H, bidirectional=True) + nn.Linear(2H, 1)."""
    k_rnn = 1.0 / math.sqrt(H)
    k_lin = 1.0 / math.sqrt(2 * H)
    ks = jax.random.split(key, 10)
    u = lambda k, shape, b: jax.random.uniform(k, shape, jnp.float32, -b, b)
    return dict(
        w_ih_f=u(ks[0], (3 * H, 1), k_rnn), w_hh_f=u(ks[1], (3 * H, H), k_rnn),
        b_ih_f=u(ks[2], (3 * H,), k_rnn),   b_hh_f=u(ks[3], (3 * H,), k_rnn),
        w_ih_b=u(ks[4], (3 * H, 1), k_rnn), w_hh_b=u(ks[5], (3 * H, H), k_rnn),
        b_ih_b=u(ks[6], (3 * H,), k_rnn),   b_hh_b=u(ks[7], (3 * H,), k_rnn),
        w_lin=u(ks[8], (1, 2 * H), k_lin),  b_lin=u(ks[9], (1,), k_lin),
    )


def reference_forward(x, params, H):
    """Pure-JAX reference with PyTorch GRU semantics (for correctness checking)."""
    def gru_dir(xs, w_ih, w_hh, b_ih, b_hh, reverse):
        Wi = [w_ih[g * H:(g + 1) * H] for g in range(3)]
        Wh = [w_hh[g * H:(g + 1) * H] for g in range(3)]
        bi = [b_ih[g * H:(g + 1) * H] for g in range(3)]
        bh = [b_hh[g * H:(g + 1) * H] for g in range(3)]
        B, S = xs.shape
        h = jnp.zeros((B, H), jnp.float32)
        outs = [None] * S
        order = range(S - 1, -1, -1) if reverse else range(S)
        for t in order:
            xt = xs[:, t:t + 1]
            r = jax.nn.sigmoid(xt @ Wi[0].T + bi[0] + h @ Wh[0].T + bh[0])
            z = jax.nn.sigmoid(xt @ Wi[1].T + bi[1] + h @ Wh[1].T + bh[1])
            n = jnp.tanh(xt @ Wi[2].T + bi[2] + r * (h @ Wh[2].T + bh[2]))
            h = (1.0 - z) * n + z * h
            outs[t] = h
        return jnp.stack(outs, axis=1)                   # (B, S, H)

    xs = x[:, :, 0]
    hf = gru_dir(xs, params["w_ih_f"], params["w_hh_f"], params["b_ih_f"], params["b_hh_f"], False)
    hb = gru_dir(xs, params["w_ih_b"], params["w_hh_b"], params["b_ih_b"], params["b_hh_b"], True)
    pred = jnp.concatenate([hf, hb], axis=-1) @ params["w_lin"].T + params["b_lin"]
    return jnp.minimum(pred, x)


if __name__ == "__main__":
    key = jax.random.PRNGKey(0)
    pkey, xkey = jax.random.split(key)
    params = init_params(pkey, HIDDEN)

    B, S = 2, 8
    x = jax.random.normal(xkey, (B, S, 1), jnp.float32)

    fwd = jax.jit(custom_rnn_forward)
    out = fwd(x, params)
    jax.block_until_ready(out)
    assert out.shape == (B, S, 1)
    assert out.dtype == jnp.float32

    ref = reference_forward(x, params, HIDDEN)
    err = float(jnp.max(jnp.abs(out - ref)))
    assert err < 5e-2, f"max abs error vs reference: {err}"   # bf16 recurrent weights
    print("KERNEL_OK")
</pallas_src>

<mosaic_0001>
module attributes {stable_mosaic.version = 11 : i64} {
  func.func @bigru_linear_min_kernel(%arg0: i32, %arg1: memref<8x8xf32, #tpu.memory_space<vmem>>, %arg2: memref<8x8x1xf32, #tpu.memory_space<vmem>>, %arg3: memref<1x384xf32, #tpu.memory_space<vmem>>, %arg4: memref<128x384xbf16, #tpu.memory_space<vmem>>, %arg5: memref<1x384xf32, #tpu.memory_space<vmem>>, %arg6: memref<1x128xf32, #tpu.memory_space<vmem>>, %arg7: memref<1x384xf32, #tpu.memory_space<vmem>>, %arg8: memref<128x384xbf16, #tpu.memory_space<vmem>>, %arg9: memref<1x384xf32, #tpu.memory_space<vmem>>, %arg10: memref<1x128xf32, #tpu.memory_space<vmem>>, %arg11: memref<1x128xf32, #tpu.memory_space<vmem>>, %arg12: memref<1x128xf32, #tpu.memory_space<vmem>>, %arg13: memref<1x1xf32, #tpu.memory_space<smem>>, %arg14: memref<8x8xf32, #tpu.memory_space<vmem>>, %arg15: memref<8x8x384xf32, #tpu.memory_space<vmem>>, %arg16: memref<8x8x384xf32, #tpu.memory_space<vmem>>, %arg17: memref<8x8x128xf32, #tpu.memory_space<vmem>>, %arg18: memref<8x8x128xf32, #tpu.memory_space<vmem>>) attributes {dimension_semantics = [#tpu.dimension_semantics<parallel>], iteration_bounds = array<i64: 1>, scalar_prefetch = 0 : i64, scratch_operands = 4 : i64, tpu.core_type = #tpu.core_type<tc>, window_params = [{transform_indices = @transform_0, window_bounds = array<i64: 8, 8>}, {transform_indices = @transform_1, window_bounds = array<i64: 8, 8, 1>}, {pipeline_mode = #tpu.pipeline_mode<synchronous>, transform_indices = @transform_2, window_bounds = array<i64: 1, 384>}, {pipeline_mode = #tpu.pipeline_mode<synchronous>, transform_indices = @transform_3, window_bounds = array<i64: 128, 384>}, {pipeline_mode = #tpu.pipeline_mode<synchronous>, transform_indices = @transform_4, window_bounds = array<i64: 1, 384>}, {pipeline_mode = #tpu.pipeline_mode<synchronous>, transform_indices = @transform_5, window_bounds = array<i64: 1, 128>}, {pipeline_mode = #tpu.pipeline_mode<synchronous>, transform_indices = @transform_6, window_bounds = array<i64: 1, 384>}, {pipeline_mode = #tpu.pipeline_mode<synchronous>, transform_indices = @transform_7, window_bounds = array<i64: 128, 384>}, {pipeline_mode = #tpu.pipeline_mode<synchronous>, transform_indices = @transform_8, window_bounds = array<i64: 1, 384>}, {pipeline_mode = #tpu.pipeline_mode<synchronous>, transform_indices = @transform_9, window_bounds = array<i64: 1, 128>}, {pipeline_mode = #tpu.pipeline_mode<synchronous>, transform_indices = @transform_10, window_bounds = array<i64: 1, 128>}, {pipeline_mode = #tpu.pipeline_mode<synchronous>, transform_indices = @transform_11, window_bounds = array<i64: 1, 128>}, {transform_indices = @transform_12, window_bounds = array<i64: 1, 1>}, {transform_indices = @transform_13, window_bounds = array<i64: 8, 8>}]} {
    %c0 = arith.constant 0 : index
    %c0_0 = arith.constant 0 : index
    %c0_1 = arith.constant 0 : index
    %0 = vector.load %arg2[%c0, %c0_0, %c0_1] : memref<8x8x1xf32, #tpu.memory_space<vmem>>, vector<8x8x1xf32>
    %c0_2 = arith.constant 0 : index
    %c0_3 = arith.constant 0 : index
    %1 = vector.load %arg3[%c0_2, %c0_3] : memref<1x384xf32, #tpu.memory_space<vmem>>, vector<1x384xf32>
    %2 = vector.shape_cast %1 : vector<1x384xf32> to vector<1x1x384xf32>
    %3 = vector.broadcast %0 : vector<8x8x1xf32> to vector<8x8x384xf32>
    %4 = vector.broadcast %2 : vector<1x1x384xf32> to vector<8x8x384xf32>
    %5 = arith.mulf %3, %4 : vector<8x8x384xf32>
    %c0_4 = arith.constant 0 : index
    %c0_5 = arith.constant 0 : index
    %6 = vector.load %arg5[%c0_4, %c0_5] : memref<1x384xf32, #tpu.memory_space<vmem>>, vector<1x384xf32>
    %7 = vector.shape_cast %6 : vector<1x384xf32> to vector<1x1x384xf32>
    %8 = vector.broadcast %7 : vector<1x1x384xf32> to vector<8x8x384xf32>
    %9 = arith.addf %5, %8 : vector<8x8x384xf32>
    %c0_6 = arith.constant 0 : index
    %c0_7 = arith.constant 0 : index
    %c0_8 = arith.constant 0 : index
    %10 = vector.load %arg15[%c0_6, %c0_7, %c0_8] : memref<8x8x384xf32, #tpu.memory_space<vmem>>, vector<8x8x384xf32>
    tpu.vector_store %arg15[%c0_6, %c0_7, %c0_8], %9 {strides = array<i32>} : memref<8x8x384xf32, #tpu.memory_space<vmem>>, vector<8x8x384xf32>,
    %c0_9 = arith.constant 0 : index
    %c0_10 = arith.constant 0 : index
    %11 = vector.load %arg7[%c0_9, %c0_10] : memref<1x384xf32, #tpu.memory_space<vmem>>, vector<1x384xf32>
    %12 = vector.shape_cast %11 : vector<1x384xf32> to vector<1x1x384xf32>
    %13 = vector.broadcast %0 : vector<8x8x1xf32> to vector<8x8x384xf32>
    %14 = vector.broadcast %12 : vector<1x1x384xf32> to vector<8x8x384xf32>
    %15 = arith.mulf %13, %14 : vector<8x8x384xf32>
    %c0_11 = arith.constant 0 : index
    %c0_12 = arith.constant 0 : index
    %16 = vector.load %arg9[%c0_11, %c0_12] : memref<1x384xf32, #tpu.memory_space<vmem>>, vector<1x384xf32>
    %17 = vector.shape_cast %16 : vector<1x384xf32> to vector<1x1x384xf32>
    %18 = vector.broadcast %17 : vector<1x1x384xf32> to vector<8x8x384xf32>
    %19 = arith.addf %15, %18 : vector<8x8x384xf32>
    %c0_13 = arith.constant 0 : index
    %c0_14 = arith.constant 0 : index
    %c0_15 = arith.constant 0 : index
    %20 = vector.load %arg16[%c0_13, %c0_14, %c0_15] : memref<8x8x384xf32, #tpu.memory_space<vmem>>, vector<8x8x384xf32>
    tpu.vector_store %arg16[%c0_13, %c0_14, %c0_15], %19 {strides = array<i32>} : memref<8x8x384xf32, #tpu.memory_space<vmem>>, vector<8x8x384xf32>,
    %c0_16 = arith.constant 0 : index
    %c0_17 = arith.constant 0 : index
    %21 = vector.load %arg6[%c0_16, %c0_17] : memref<1x128xf32, #tpu.memory_space<vmem>>, vector<1x128xf32>
    %c0_18 = arith.constant 0 : index
    %c0_19 = arith.constant 0 : index
    %22 = vector.load %arg10[%c0_18, %c0_19] : memref<1x128xf32, #tpu.memory_space<vmem>>, vector<1x128xf32>
    %cst = arith.constant 0.000000e+00 : f32
    %23 = vector.broadcast %cst : f32 to vector<8x128xf32>
    %c0_i32 = arith.constant 0 : i32
    %c7_i32 = arith.constant 7 : i32
    %24 = arith.subi %c7_i32, %c0_i32 : i32
    %25 = arith.index_cast %c0_i32 : i32 to index
    %c0_20 = arith.constant 0 : index
    %c0_21 = arith.constant 0 : index
    %26 = vector.load %arg15[%25, %c0_20, %c0_21] : memref<8x8x384xf32, #tpu.memory_space<vmem>>, vector<1x8x384xf32>
    %27 = vector.shape_cast %26 : vector<1x8x384xf32> to vector<8x384xf32>
    %28 = arith.truncf %23 : vector<8x128xf32> to vector<8x128xbf16>
    %c0_22 = arith.constant 0 : index
    %c0_23 = arith.constant 0 : index
    %29 = vector.load %arg4[%c0_22, %c0_23] : memref<128x384xbf16, #tpu.memory_space<vmem>>, vector<128x384xbf16>
    %cst_24 = arith.constant dense<0.000000e+00> : vector<8x384xf32>
    %30 = tpu.matmul %28, %29, %cst_24 {dimension_numbers = #tpu.dot_dimension_numbers<[1], [0], [0], [1], [0, 0, 1, 1], [], []>} : vector<8x128xbf16>, vector<128x384xbf16>, vector<8x384xf32> -> vector<8x384xf32>
    %31 = vector.extract_strided_slice %27 {offsets = [0, 0], sizes = [8, 128], strides = [1, 1]} : vector<8x384xf32> to vector<8x128xf32>
    %32 = vector.extract_strided_slice %30 {offsets = [0, 0], sizes = [8, 128], strides = [1, 1]} : vector<8x384xf32> to vector<8x128xf32>
    %33 = arith.addf %31, %32 : vector<8x128xf32>
    %34 = arith.negf %33 : vector<8x128xf32>
    %35 = math.exp %34 : vector<8x128xf32>
    %cst_25 = arith.constant 1.000000e+00 : f32
    %36 = vector.broadcast %cst_25 : f32 to vector<8x128xf32>
    %37 = arith.addf %36, %35 : vector<8x128xf32>
    %38 = arith.divf %36, %37 : vector<8x128xf32>
    %39 = vector.extract_strided_slice %27 {offsets = [0, 128], sizes = [8, 128], strides = [1, 1]} : vector<8x384xf32> to vector<8x128xf32>
    %40 = vector.extract_strided_slice %30 {offsets = [0, 128], sizes = [8, 128], strides = [1, 1]} : vector<8x384xf32> to vector<8x128xf32>
    %41 = arith.addf %39, %40 : vector<8x128xf32>
    %42 = arith.negf %41 : vector<8x128xf32>
    %43 = math.exp %42 : vector<8x128xf32>
    %cst_26 = arith.constant 1.000000e+00 : f32
    %44 = vector.broadcast %cst_26 : f32 to vector<8x128xf32>
    %45 = arith.addf %44, %43 : vector<8x128xf32>
    %46 = arith.divf %44, %45 : vector<8x128xf32>
    %47 = vector.extract_strided_slice %27 {offsets = [0, 256], sizes = [8, 128], strides = [1, 1]} : vector<8x384xf32> to vector<8x128xf32>
    %48 = vector.extract_strided_slice %30 {offsets = [0, 256], sizes = [8, 128], strides = [1, 1]} : vector<8x384xf32> to vector<8x128xf32>
    %49 = vector.broadcast %21 : vector<1x128xf32> to vector<8x128xf32>
    %50 = arith.addf %48, %49 : vector<8x128xf32>
    %51 = arith.mulf %38, %50 : vector<8x128xf32>
    %52 = arith.addf %47, %51 : vector<8x128xf32>
    %53 = math.tanh %52 : vector<8x128xf32>
    %cst_27 = arith.constant 1.000000e+00 : f32
    %54 = vector.broadcast %cst_27 : f32 to vector<8x128xf32>
    %55 = arith.subf %54, %46 : vector<8x128xf32>
    %56 = arith.mulf %55, %53 : vector<8x128xf32>
    %57 = arith.mulf %46, %23 : vector<8x128xf32>
    %58 = arith.addf %56, %57 : vector<8x128xf32>
    %59 = arith.index_cast %24 : i32 to index
    %c0_28 = arith.constant 0 : index
    %c0_29 = arith.constant 0 : index
    %60 = vector.load %arg16[%59, %c0_28, %c0_29] : memref<8x8x384xf32, #tpu.memory_space<vmem>>, vector<1x8x384xf32>
    %61 = vector.shape_cast %60 : vector<1x8x384xf32> to vector<8x384xf32>
    %62 = arith.truncf %23 : vector<8x128xf32> to vector<8x128xbf16>
    %c0_30 = arith.constant 0 : index
    %c0_31 = arith.constant 0 : index
    %63 = vector.load %arg8[%c0_30, %c0_31] : memref<128x384xbf16, #tpu.memory_space<vmem>>, vector<128x384xbf16>
    %cst_32 = arith.constant dense<0.000000e+00> : vector<8x384xf32>
    %64 = tpu.matmul %62, %63, %cst_32 {dimension_numbers = #tpu.dot_dimension_numbers<[1], [0], [0], [1], [0, 0, 1, 1], [], []>} : vector<8x128xbf16>, vector<128x384xbf16>, vector<8x384xf32> -> vector<8x384xf32>
    %65 = vector.extract_strided_slice %61 {offsets = [0, 0], sizes = [8, 128], strides = [1, 1]} : vector<8x384xf32> to vector<8x128xf32>
    %66 = vector.extract_strided_slice %64 {offsets = [0, 0], sizes = [8, 128], strides = [1, 1]} : vector<8x384xf32> to vector<8x128xf32>
    %67 = arith.addf %65, %66 : vector<8x128xf32>
    %68 = arith.negf %67 : vector<8x128xf32>
    %69 = math.exp %68 : vector<8x128xf32>
    %cst_33 = arith.constant 1.000000e+00 : f32
    %70 = vector.broadcast %cst_33 : f32 to vector<8x128xf32>
    %71 = arith.addf %70, %69 : vector<8x128xf32>
    %72 = arith.divf %70, %71 : vector<8x128xf32>
    %73 = vector.extract_strided_slice %61 {offsets = [0, 128], sizes = [8, 128], strides = [1, 1]} : vector<8x384xf32> to vector<8x128xf32>
    %74 = vector.extract_strided_slice %64 {offsets = [0, 128], sizes = [8, 128], strides = [1, 1]} : vector<8x384xf32> to vector<8x128xf32>
    %75 = arith.addf %73, %74 : vector<8x128xf32>
    %76 = arith.negf %75 : vector<8x128xf32>
    %77 = math.exp %76 : vector<8x128xf32>
    %cst_34 = arith.constant 1.000000e+00 : f32
    %78 = vector.broadcast %cst_34 : f32 to vector<8x128xf32>
    %79 = arith.addf %78, %77 : vector<8x128xf32>
    %80 = arith.divf %78, %79 : vector<8x128xf32>
    %81 = vector.extract_strided_slice %61 {offsets = [0, 256], sizes = [8, 128], strides = [1, 1]} : vector<8x384xf32> to vector<8x128xf32>
    %82 = vector.extract_strided_slice %64 {offsets = [0, 256], sizes = [8, 128], strides = [1, 1]} : vector<8x384xf32> to vector<8x128xf32>
    %83 = vector.broadcast %22 : vector<1x128xf32> to vector<8x128xf32>
    %84 = arith.addf %82, %83 : vector<8x128xf32>
    %85 = arith.mulf %72, %84 : vector<8x128xf32>
    %86 = arith.addf %81, %85 : vector<8x128xf32>
    %87 = math.tanh %86 : vector<8x128xf32>
    %cst_35 = arith.constant 1.000000e+00 : f32
    %88 = vector.broadcast %cst_35 : f32 to vector<8x128xf32>
    %89 = arith.subf %88, %80 : vector<8x128xf32>
    %90 = arith.mulf %89, %87 : vector<8x128xf32>
    %91 = arith.mulf %80, %23 : vector<8x128xf32>
    %92 = arith.addf %90, %91 : vector<8x128xf32>
    %93 = arith.index_cast %c0_i32 : i32 to index
    %c0_36 = arith.constant 0 : index
    %c0_37 = arith.constant 0 : index
    %94 = vector.load %arg17[%93, %c0_36, %c0_37] : memref<8x8x128xf32, #tpu.memory_space<vmem>>, vector<1x8x128xf32>
    %95 = vector.shape_cast %94 : vector<1x8x128xf32> to vector<8x128xf32>
    %96 = vector.shape_cast %58 : vector<8x128xf32> to vector<1x8x128xf32>
    tpu.vector_store %arg17[%93, %c0_36, %c0_37], %96 {strides = array<i32>} : memref<8x8x128xf32, #tpu.memory_space<vmem>>, vector<1x8x128xf32>,
    %97 = arith.index_cast %24 : i32 to index
    %c0_38 = arith.constant 0 : index
    %c0_39 = arith.constant 0 : index
    %98 = vector.load %arg18[%97, %c0_38, %c0_39] : memref<8x8x128xf32, #tpu.memory_space<vmem>>, vector<1x8x128xf32>
    %99 = vector.shape_cast %98 : vector<1x8x128xf32> to vector<8x128xf32>
    %100 = vector.shape_cast %92 : vector<8x128xf32> to vector<1x8x128xf32>
    tpu.vector_store %arg18[%97, %c0_38, %c0_39], %100 {strides = array<i32>} : memref<8x8x128xf32, #tpu.memory_space<vmem>>, vector<1x8x128xf32>,
    %c1_i32 = arith.constant 1 : i32
    %c7_i32_40 = arith.constant 7 : i32
    %101 = arith.subi %c7_i32_40, %c1_i32 : i32
    %102 = arith.index_cast %c1_i32 : i32 to index
    %c0_41 = arith.constant 0 : index
    %c0_42 = arith.constant 0 : index
    %103 = vector.load %arg15[%102, %c0_41, %c0_42] : memref<8x8x384xf32, #tpu.memory_space<vmem>>, vector<1x8x384xf32>
    %104 = vector.shape_cast %103 : vector<1x8x384xf32> to vector<8x384xf32>
    %105 = arith.truncf %58 : vector<8x128xf32> to vector<8x128xbf16>
    %c0_43 = arith.constant 0 : index
    %c0_44 = arith.constant 0 : index
    %106 = vector.load %arg4[%c0_43, %c0_44] : memref<128x384xbf16, #tpu.memory_space<vmem>>, vector<128x384xbf16>
    %cst_45 = arith.constant dense<0.000000e+00> : vector<8x384xf32>
    %107 = tpu.matmul %105, %106, %cst_45 {dimension_numbers = #tpu.dot_dimension_numbers<[1], [0], [0], [1], [0, 0, 1, 1], [], []>} : vector<8x128xbf16>, vector<128x384xbf16>, vector<8x384xf32> -> vector<8x384xf32>
    %108 = vector.extract_strided_slice %104 {offsets = [0, 0], sizes = [8, 128], strides = [1, 1]} : vector<8x384xf32> to vector<8x128xf32>
    %109 = vector.extract_strided_slice %107 {offsets = [0, 0], sizes = [8, 128], strides = [1, 1]} : vector<8x384xf32> to vector<8x128xf32>
    %110 = arith.addf %108, %109 : vector<8x128xf32>
    %111 = arith.negf %110 : vector<8x128xf32>
    %112 = math.exp %111 : vector<8x128xf32>
    %cst_46 = arith.constant 1.000000e+00 : f32
    %113 = vector.broadcast %cst_46 : f32 to vector<8x128xf32>
    %114 = arith.addf %113, %112 : vector<8x128xf32>
    %115 = arith.divf %113, %114 : vector<8x128xf32>
    %116 = vector.extract_strided_slice %104 {offsets = [0, 128], sizes = [8, 128], strides = [1, 1]} : vector<8x384xf32> to vector<8x128xf32>
    %117 = vector.extract_strided_slice %107 {offsets = [0, 128], sizes = [8, 128], strides = [1, 1]} : vector<8x384xf32> to vector<8x128xf32>
    %118 = arith.addf %116, %117 : vector<8x128xf32>
    %119 = arith.negf %118 : vector<8x128xf32>
    %120 = math.exp %119 : vector<8x128xf32>
    %cst_47 = arith.constant 1.000000e+00 : f32
    %121 = vector.broadcast %cst_47 : f32 to vector<8x128xf32>
    %122 = arith.addf %121, %120 : vector<8x128xf32>
    %123 = arith.divf %121, %122 : vector<8x128xf32>
    %124 = vector.extract_strided_slice %104 {offsets = [0, 256], sizes = [8, 128], strides = [1, 1]} : vector<8x384xf32> to vector<8x128xf32>
    %125 = vector.extract_strided_slice %107 {offsets = [0, 256], sizes = [8, 128], strides = [1, 1]} : vector<8x384xf32> to vector<8x128xf32>
    %126 = vector.broadcast %21 : vector<1x128xf32> to vector<8x128xf32>
    %127 = arith.addf %125, %126 : vector<8x128xf32>
    %128 = arith.mulf %115, %127 : vector<8x128xf32>
    %129 = arith.addf %124, %128 : vector<8x128xf32>
    %130 = math.tanh %129 : vector<8x128xf32>
    %cst_48 = arith.constant 1.000000e+00 : f32
    %131 = vector.broadcast %cst_48 : f32 to vector<8x128xf32>
    %132 = arith.subf %131, %123 : vector<8x128xf32>
    %133 = arith.mulf %132, %130 : vector<8x128xf32>
    %134 = arith.mulf %123, %58 : vector<8x128xf32>
    %135 = arith.addf %133, %134 : vector<8x128xf32>
    %136 = arith.index_cast %101 : i32 to index
    %c0_49 = arith.constant 0 : index
    %c0_50 = arith.constant 0 : index
    %137 = vector.load %arg16[%136, %c0_49, %c0_50] : memref<8x8x384xf32, #tpu.memory_space<vmem>>, vector<1x8x384xf32>
    %138 = vector.shape_cast %137 : vector<1x8x384xf32> to vector<8x384xf32>
    %139 = arith.truncf %92 : vector<8x128xf32> to vector<8x128xbf16>
    %c0_51 = arith.constant 0 : index
    %c0_52 = arith.constant 0 : index
    %140 = vector.load %arg8[%c0_51, %c0_52] : memref<128x384xbf16, #tpu.memory_space<vmem>>, vector<128x384xbf16>
    %cst_53 = arith.constant dense<0.000000e+00> : vector<8x384xf32>
    %141 = tpu.matmul %139, %140, %cst_53 {dimension_numbers = #tpu.dot_dimension_numbers<[1], [0], [0], [1], [0, 0, 1, 1], [], []>} : vector<8x128xbf16>, vector<128x384xbf16>, vector<8x384xf32> -> vector<8x384xf32>
    %142 = vector.extract_strided_slice %138 {offsets = [0, 0], sizes = [8, 128], strides = [1, 1]} : vector<8x384xf32> to vector<8x128xf32>
    %143 = vector.extract_strided_slice %141 {offsets = [0, 0], sizes = [8, 128], strides = [1, 1]} : vector<8x384xf32> to vector<8x128xf32>
    %144 = arith.addf %142, %143 : vector<8x128xf32>
    %145 = arith.negf %144 : vector<8x128xf32>
    %146 = math.exp %145 : vector<8x128xf32>
    %cst_54 = arith.constant 1.000000e+00 : f32
    %147 = vector.broadcast %cst_54 : f32 to vector<8x128xf32>
    %148 = arith.addf %147, %146 : vector<8x128xf32>
    %149 = arith.divf %147, %148 : vector<8x128xf32>
    %150 = vector.extract_strided_slice %138 {offsets = [0, 128], sizes = [8, 128], strides = [1, 1]} : vector<8x384xf32> to vector<8x128xf32>
    %151 = vector.extract_strided_slice %141 {offsets = [0, 128], sizes = [8, 128], strides = [1, 1]} : vector<8x384xf32> to vector<8x128xf32>
    %152 = arith.addf %150, %151 : vector<8x128xf32>
    %153 = arith.negf %152 : vector<8x128xf32>
    %154 = math.exp %153 : vector<8x128xf32>
    %cst_55 = arith.constant 1.000000e+00 : f32
    %155 = vector.broadcast %cst_55 : f32 to vector<8x128xf32>
    %156 = arith.addf %155, %154 : vector<8x128xf32>
    %157 = arith.divf %155, %156 : vector<8x128xf32>
    %158 = vector.extract_strided_slice %138 {offsets = [0, 256], sizes = [8, 128], strides = [1, 1]} : vector<8x384xf32> to vector<8x128xf32>
    %159 = vector.extract_strided_slice %141 {offsets = [0, 256], sizes = [8, 128], strides = [1, 1]} : vector<8x384xf32> to vector<8x128xf32>
    %160 = vector.broadcast %22 : vector<1x128xf32> to vector<8x128xf32>
    %161 = arith.addf %159, %160 : vector<8x128xf32>
    %162 = arith.mulf %149, %161 : vector<8x128xf32>
    %163 = arith.addf %158, %162 : vector<8x128xf32>
    %164 = math.tanh %163 : vector<8x128xf32>
    %cst_56 = arith.constant 1.000000e+00 : f32
    %165 = vector.broadcast %cst_56 : f32 to vector<8x128xf32>
    %166 = arith.subf %165, %157 : vector<8x128xf32>
    %167 = arith.mulf %166, %164 : vector<8x128xf32>
    %168 = arith.mulf %157, %92 : vector<8x128xf32>
    %169 = arith.addf %167, %168 : vector<8x128xf32>
    %170 = arith.index_cast %c1_i32 : i32 to index
    %c0_57 = arith.constant 0 : index
    %c0_58 = arith.constant 0 : index
    %171 = vector.load %arg17[%170, %c0_57, %c0_58] : memref<8x8x128xf32, #tpu.memory_space<vmem>>, vector<1x8x128xf32>
    %172 = vector.shape_cast %171 : vector<1x8x128xf32> to vector<8x128xf32>
    %173 = vector.shape_cast %135 : vector<8x128xf32> to vector<1x8x128xf32>
    tpu.vector_store %arg17[%170, %c0_57, %c0_58], %173 {strides = array<i32>} : memref<8x8x128xf32, #tpu.memory_space<vmem>>, vector<1x8x128xf32>,
    %174 = arith.index_cast %101 : i32 to index
    %c0_59 = arith.constant 0 : index
    %c0_60 = arith.constant 0 : index
    %175 = vector.load %arg18[%174, %c0_59, %c0_60] : memref<8x8x128xf32, #tpu.memory_space<vmem>>, vector<1x8x128xf32>
    %176 = vector.shape_cast %175 : vector<1x8x128xf32> to vector<8x128xf32>
    %177 = vector.shape_cast %169 : vector<8x128xf32> to vector<1x8x128xf32>
    tpu.vector_store %arg18[%174, %c0_59, %c0_60], %177 {strides = array<i32>} : memref<8x8x128xf32, #tpu.memory_space<vmem>>, vector<1x8x128xf32>,
    %c2_i32 = arith.constant 2 : i32
    %c7_i32_61 = arith.constant 7 : i32
    %178 = arith.subi %c7_i32_61, %c2_i32 : i32
    %179 = arith.index_cast %c2_i32 : i32 to index
    %c0_62 = arith.constant 0 : index
    %c0_63 = arith.constant 0 : index
    %180 = vector.load %arg15[%179, %c0_62, %c0_63] : memref<8x8x384xf32, #tpu.memory_space<vmem>>, vector<1x8x384xf32>
    %181 = vector.shape_cast %180 : vector<1x8x384xf32> to vector<8x384xf32>
    %182 = arith.truncf %135 : vector<8x128xf32> to vector<8x128xbf16>
    %c0_64 = arith.constant 0 : index
    %c0_65 = arith.constant 0 : index
    %183 = vector.load %arg4[%c0_64, %c0_65] : memref<128x384xbf16, #tpu.memory_space<vmem>>, vector<128x384xbf16>
    %cst_66 = arith.constant dense<0.000000e+00> : vector<8x384xf32>
    %184 = tpu.matmul %182, %183, %cst_66 {dimension_numbers = #tpu.dot_dimension_numbers<[1], [0], [0], [1], [0, 0, 1, 1], [], []>} : vector<8x128xbf16>, vector<128x384xbf16>, vector<8x384xf32> -> vector<8x384xf32>
    %185 = vector.extract_strided_slice %181 {offsets = [0, 0], sizes = [8, 128], strides = [1, 1]} : vector<8x384xf32> to vector<8x128xf32>
    %186 = vector.extract_strided_slice %184 {offsets = [0, 0], sizes = [8, 128], strides = [1, 1]} : vector<8x384xf32> to vector<8x128xf32>
    %187 = arith.addf %185, %186 : vector<8x128xf32>
    %188 = arith.negf %187 : vector<8x128xf32>
    %189 = math.exp %188 : vector<8x128xf32>
    %cst_67 = arith.constant 1.000000e+00 : f32
    %190 = vector.broadcast %cst_67 : f32 to vector<8x128xf32>
    %191 = arith.addf %190, %189 : vector<8x128xf32>
    %192 = arith.divf %190, %191 : vector<8x128xf32>
    %193 = vector.extract_strided_slice %181 {offsets = [0, 128], sizes = [8, 128], strides = [1, 1]} : vector<8x384xf32> to vector<8x128xf32>
    %194 = vector.extract_strided_slice %184 {offsets = [0, 128], sizes = [8, 128], strides = [1, 1]} : vector<8x384xf32> to vector<8x128xf32>
    %195 = arith.addf %193, %194 : vector<8x128xf32>
    %196 = arith.negf %195 : vector<8x128xf32>
    %197 = math.exp %196 : vector<8x128xf32>
    %cst_68 = arith.constant 1.000000e+00 : f32
    %198 = vector.broadcast %cst_68 : f32 to vector<8x128xf32>
    %199 = arith.addf %198, %197 : vector<8x128xf32>
    %200 = arith.divf %198, %199 : vector<8x128xf32>
    %201 = vector.extract_strided_slice %181 {offsets = [0, 256], sizes = [8, 128], strides = [1, 1]} : vector<8x384xf32> to vector<8x128xf32>
    %202 = vector.extract_strided_slice %184 {offsets = [0, 256], sizes = [8, 128], strides = [1, 1]} : vector<8x384xf32> to vector<8x128xf32>
    %203 = vector.broadcast %21 : vector<1x128xf32> to vector<8x128xf32>
    %204 = arith.addf %202, %203 : vector<8x128xf32>
    %205 = arith.mulf %192, %204 : vector<8x128xf32>
    %206 = arith.addf %201, %205 : vector<8x128xf32>
    %207 = math.tanh %206 : vector<8x128xf32>
    %cst_69 = arith.constant 1.000000e+00 : f32
    %208 = vector.broadcast %cst_69 : f32 to vector<8x128xf32>
    %209 = arith.subf %208, %200 : vector<8x128xf32>
    %210 = arith.mulf %209, %207 : vector<8x128xf32>
    %211 = arith.mulf %200, %135 : vector<8x128xf32>
    %212 = arith.addf %210, %211 : vector<8x128xf32>
    %213 = arith.index_cast %178 : i32 to index
    %c0_70 = arith.constant 0 : index
    %c0_71 = arith.constant 0 : index
    %214 = vector.load %arg16[%213, %c0_70, %c0_71] : memref<8x8x384xf32, #tpu.memory_space<vmem>>, vector<1x8x384xf32>
    %215 = vector.shape_cast %214 : vector<1x8x384xf32> to vector<8x384xf32>
    %216 = arith.truncf %169 : vector<8x128xf32> to vector<8x128xbf16>
    %c0_72 = arith.constant 0 : index
    %c0_73 = arith.constant 0 : index
    %217 = vector.load %arg8[%c0_72, %c0_73] : memref<128x384xbf16, #tpu.memory_space<vmem>>, vector<128x384xbf16>
    %cst_74 = arith.constant dense<0.000000e+00> : vector<8x384xf32>
    %218 = tpu.matmul %216, %217, %cst_74 {dimension_numbers = #tpu.dot_dimension_numbers<[1], [0], [0], [1], [0, 0, 1, 1], [], []>} : vector<8x128xbf16>, vector<128x384xbf16>, vector<8x384xf32> -> vector<8x384xf32>
    %219 = vector.extract_strided_slice %215 {offsets = [0, 0], sizes = [8, 128], strides = [1, 1]} : vector<8x384xf32> to vector<8x128xf32>
    %220 = vector.extract_strided_slice %218 {offsets = [0, 0], sizes = [8, 128], strides = [1, 1]} : vector<8x384xf32> to vector<8x128xf32>
    %221 = arith.addf %219, %220 : vector<8x128xf32>
    %222 = arith.negf %221 : vector<8x128xf32>
    %223 = math.exp %222 : vector<8x128xf32>
    %cst_75 = arith.constant 1.000000e+00 : f32
    %224 = vector.broadcast %cst_75 : f32 to vector<8x128xf32>
    %225 = arith.addf %224, %223 : vector<8x128xf32>
    %226 = arith.divf %224, %225 : vector<8x128xf32>
    %227 = vector.extract_strided_slice %215 {offsets = [0, 128], sizes = [8, 128], strides = [1, 1]} : vector<8x384xf32> to vector<8x128xf32>
    %228 = vector.extract_strided_slice %218 {offsets = [0, 128], sizes = [8, 128], strides = [1, 1]} : vector<8x384xf32> to vector<8x128xf32>
    %229 = arith.addf %227, %228 : vector<8x128xf32>
    %230 = arith.negf %229 : vector<8x128xf32>
    %231 = math.exp %230 : vector<8x128xf32>
    %cst_76 = arith.constant 1.000000e+00 : f32
    %232 = vector.broadcast %cst_76 : f32 to vector<8x128xf32>
    %233 = arith.addf %232, %231 : vector<8x128xf32>
    %234 = arith.divf %232, %233 : vector<8x128xf32>
    %235 = vector.extract_strided_slice %215 {offsets = [0, 256], sizes = [8, 128], strides = [1, 1]} : vector<8x384xf32> to vector<8x128xf32>
    %236 = vector.extract_strided_slice %218 {offsets = [0, 256], sizes = [8, 128], strides = [1, 1]} : vector<8x384xf32> to vector<8x128xf32>
    %237 = vector.broadcast %22 : vector<1x128xf32> to vector<8x128xf32>
    %238 = arith.addf %236, %237 : vector<8x128xf32>
    %239 = arith.mulf %226, %238 : vector<8x128xf32>
    %240 = arith.addf %235, %239 : vector<8x128xf32>
    %241 = math.tanh %240 : vector<8x128xf32>
    %cst_77 = arith.constant 1.000000e+00 : f32
    %242 = vector.broadcast %cst_77 : f32 to vector<8x128xf32>
    %243 = arith.subf %242, %234 : vector<8x128xf32>
    %244 = arith.mulf %243, %241 : vector<8x128xf32>
    %245 = arith.mulf %234, %169 : vector<8x128xf32>
    %246 = arith.addf %244, %245 : vector<8x128xf32>
    %247 = arith.index_cast %c2_i32 : i32 to index
    %c0_78 = arith.constant 0 : index
    %c0_79 = arith.constant 0 : index
    %248 = vector.load %arg17[%247, %c0_78, %c0_79] : memref<8x8x128xf32, #tpu.memory_space<vmem>>, vector<1x8x128xf32>
    %249 = vector.shape_cast %248 : vector<1x8x128xf32> to vector<8x128xf32>
    %250 = vector.shape_cast %212 : vector<8x128xf32> to vector<1x8x128xf32>
    tpu.vector_store %arg17[%247, %c0_78, %c0_79], %250 {strides = array<i32>} : memref<8x8x128xf32, #tpu.memory_space<vmem>>, vector<1x8x128xf32>,
    %251 = arith.index_cast %178 : i32 to index
    %c0_80 = arith.constant 0 : index
    %c0_81 = arith.constant 0 : index
    %252 = vector.load %arg18[%251, %c0_80, %c0_81] : memref<8x8x128xf32, #tpu.memory_space<vmem>>, vector<1x8x128xf32>
    %253 = vector.shape_cast %252 : vector<1x8x128xf32> to vector<8x128xf32>
    %254 = vector.shape_cast %246 : vector<8x128xf32> to vector<1x8x128xf32>
    tpu.vector_store %arg18[%251, %c0_80, %c0_81], %254 {strides = array<i32>} : memref<8x8x128xf32, #tpu.memory_space<vmem>>, vector<1x8x128xf32>,
    %c3_i32 = arith.constant 3 : i32
    %c7_i32_82 = arith.constant 7 : i32
    %255 = arith.subi %c7_i32_82, %c3_i32 : i32
    %256 = arith.index_cast %c3_i32 : i32 to index
    %c0_83 = arith.constant 0 : index
    %c0_84 = arith.constant 0 : index
    %257 = vector.load %arg15[%256, %c0_83, %c0_84] : memref<8x8x384xf32, #tpu.memory_space<vmem>>, vector<1x8x384xf32>
    %258 = vector.shape_cast %257 : vector<1x8x384xf32> to vector<8x384xf32>
    %259 = arith.truncf %212 : vector<8x128xf32> to vector<8x128xbf16>
    %c0_85 = arith.constant 0 : index
    %c0_86 = arith.constant 0 : index
    %260 = vector.load %arg4[%c0_85, %c0_86] : memref<128x384xbf16, #tpu.memory_space<vmem>>, vector<128x384xbf16>
    %cst_87 = arith.constant dense<0.000000e+00> : vector<8x384xf32>
    %261 = tpu.matmul %259, %260, %cst_87 {dimension_numbers = #tpu.dot_dimension_numbers<[1], [0], [0], [1], [0, 0, 1, 1], [], []>} : vector<8x128xbf16>, vector<128x384xbf16>, vector<8x384xf32> -> vector<8x384xf32>
    %262 = vector.extract_strided_slice %258 {offsets = [0, 0], sizes = [8, 128], strides = [1, 1]} : vector<8x384xf32> to vector<8x128xf32>
    %263 = vector.extract_strided_slice %261 {offsets = [0, 0], sizes = [8, 128], strides = [1, 1]} : vector<8x384xf32> to vector<8x128xf32>
    %264 = arith.addf %262, %263 : vector<8x128xf32>
    %265 = arith.negf %264 : vector<8x128xf32>
    %266 = math.exp %265 : vector<8x128xf32>
    %cst_88 = arith.constant 1.000000e+00 : f32
    %267 = vector.broadcast %cst_88 : f32 to vector<8x128xf32>
    %268 = arith.addf %267, %266 : vector<8x128xf32>
    %269 = arith.divf %267, %268 : vector<8x128xf32>
    %270 = vector.extract_strided_slice %258 {offsets = [0, 128], sizes = [8, 128], strides = [1, 1]} : vector<8x384xf32> to vector<8x128xf32>
    %271 = vector.extract_strided_slice %261 {offsets = [0, 128], sizes = [8, 128], strides = [1, 1]} : vector<8x384xf32> to vector<8x128xf32>
    %272 = arith.addf %270, %271 : vector<8x128xf32>
    %273 = arith.negf %272 : vector<8x128xf32>
    %274 = math.exp %273 : vector<8x128xf32>
    %cst_89 = arith.constant 1.000000e+00 : f32
    %275 = vector.broadcast %cst_89 : f32 to vector<8x128xf32>
    %276 = arith.addf %275, %274 : vector<8x128xf32>
    %277 = arith.divf %275, %276 : vector<8x128xf32>
    %278 = vector.extract_strided_slice %258 {offsets = [0, 256], sizes = [8, 128], strides = [1, 1]} : vector<8x384xf32> to vector<8x128xf32>
    %279 = vector.extract_strided_slice %261 {offsets = [0, 256], sizes = [8, 128], strides = [1, 1]} : vector<8x384xf32> to vector<8x128xf32>
    %280 = vector.broadcast %21 : vector<1x128xf32> to vector<8x128xf32>
    %281 = arith.addf %279, %280 : vector<8x128xf32>
    %282 = arith.mulf %269, %281 : vector<8x128xf32>
    %283 = arith.addf %278, %282 : vector<8x128xf32>
    %284 = math.tanh %283 : vector<8x128xf32>
    %cst_90 = arith.constant 1.000000e+00 : f32
    %285 = vector.broadcast %cst_90 : f32 to vector<8x128xf32>
    %286 = arith.subf %285, %277 : vector<8x128xf32>
    %287 = arith.mulf %286, %284 : vector<8x128xf32>
    %288 = arith.mulf %277, %212 : vector<8x128xf32>
    %289 = arith.addf %287, %288 : vector<8x128xf32>
    %290 = arith.index_cast %255 : i32 to index
    %c0_91 = arith.constant 0 : index
    %c0_92 = arith.constant 0 : index
    %291 = vector.load %arg16[%290, %c0_91, %c0_92] : memref<8x8x384xf32, #tpu.memory_space<vmem>>, vector<1x8x384xf32>
    %292 = vector.shape_cast %291 : vector<1x8x384xf32> to vector<8x384xf32>
    %293 = arith.truncf %246 : vector<8x128xf32> to vector<8x128xbf16>
    %c0_93 = arith.constant 0 : index
    %c0_94 = arith.constant 0 : index
    %294 = vector.load %arg8[%c0_93, %c0_94] : memref<128x384xbf16, #tpu.memory_space<vmem>>, vector<128x384xbf16>
    %cst_95 = arith.constant dense<0.000000e+00> : vector<8x384xf32>
    %295 = tpu.matmul %293, %294, %cst_95 {dimension_numbers = #tpu.dot_dimension_numbers<[1], [0], [0], [1], [0, 0, 1, 1], [], []>} : vector<8x128xbf16>, vector<128x384xbf16>, vector<8x384xf32> -> vector<8x384xf32>
    %296 = vector.extract_strided_slice %292 {offsets = [0, 0], sizes = [8, 128], strides = [1, 1]} : vector<8x384xf32> to vector<8x128xf32>
    %297 = vector.extract_strided_slice %295 {offsets = [0, 0], sizes = [8, 128], strides = [1, 1]} : vector<8x384xf32> to vector<8x128xf32>
    %298 = arith.addf %296, %297 : vector<8x128xf32>
    %299 = arith.negf %298 : vector<8x128xf32>
    %300 = math.exp %299 : vector<8x128xf32>
    %cst_96 = arith.constant 1.000000e+00 : f32
    %301 = vector.broadcast %cst_96 : f32 to vector<8x128xf32>
    %302 = arith.addf %301, %300 : vector<8x128xf32>
    %303 = arith.divf %301, %302 : vector<8x128xf32>
    %304 = vector.extract_strided_slice %292 {offsets = [0, 128], sizes = [8, 128], strides = [1, 1]} : vector<8x384xf32> to vector<8x128xf32>
    %305 = vector.extract_strided_slice %295 {offsets = [0, 128], sizes = [8, 128], strides = [1, 1]} : vector<8x384xf32> to vector<8x128xf32>
    %306 = arith.addf %304, %305 : vector<8x128xf32>
    %307 = arith.negf %306 : vector<8x128xf32>
    %308 = math.exp %307 : vector<8x128xf32>
    %cst_97 = arith.constant 1.000000e+00 : f32
    %309 = vector.broadcast %cst_97 : f32 to vector<8x128xf32>
    %310 = arith.addf %309, %308 : vector<8x128xf32>
    %311 = arith.divf %309, %310 : vector<8x128xf32>
    %312 = vector.extract_strided_slice %292 {offsets = [0, 256], sizes = [8, 128], strides = [1, 1]} : vector<8x384xf32> to vector<8x128xf32>
    %313 = vector.extract_strided_slice %295 {offsets = [0, 256], sizes = [8, 128], strides = [1, 1]} : vector<8x384xf32> to vector<8x128xf32>
    %314 = vector.broadcast %22 : vector<1x128xf32> to vector<8x128xf32>
    %315 = arith.addf %313, %314 : vector<8x128xf32>
    %316 = arith.mulf %303, %315 : vector<8x128xf32>
    %317 = arith.addf %312, %316 : vector<8x128xf32>
    %318 = math.tanh %317 : vector<8x128xf32>
    %cst_98 = arith.constant 1.000000e+00 : f32
    %319 = vector.broadcast %cst_98 : f32 to vector<8x128xf32>
    %320 = arith.subf %319, %311 : vector<8x128xf32>
    %321 = arith.mulf %320, %318 : vector<8x128xf32>
    %322 = arith.mulf %311, %246 : vector<8x128xf32>
    %323 = arith.addf %321, %322 : vector<8x128xf32>
    %324 = arith.index_cast %c3_i32 : i32 to index
    %c0_99 = arith.constant 0 : index
    %c0_100 = arith.constant 0 : index
    %325 = vector.load %arg17[%324, %c0_99, %c0_100] : memref<8x8x128xf32, #tpu.memory_space<vmem>>, vector<1x8x128xf32>
    %326 = vector.shape_cast %325 : vector<1x8x128xf32> to vector<8x128xf32>
    %327 = vector.shape_cast %289 : vector<8x128xf32> to vector<1x8x128xf32>
    tpu.vector_store %arg17[%324, %c0_99, %c0_100], %327 {strides = array<i32>} : memref<8x8x128xf32, #tpu.memory_space<vmem>>, vector<1x8x128xf32>,
    %328 = arith.index_cast %255 : i32 to index
    %c0_101 = arith.constant 0 : index
    %c0_102 = arith.constant 0 : index
    %329 = vector.load %arg18[%328, %c0_101, %c0_102] : memref<8x8x128xf32, #tpu.memory_space<vmem>>, vector<1x8x128xf32>
    %330 = vector.shape_cast %329 : vector<1x8x128xf32> to vector<8x128xf32>
    %331 = vector.shape_cast %323 : vector<8x128xf32> to vector<1x8x128xf32>
    tpu.vector_store %arg18[%328, %c0_101, %c0_102], %331 {strides = array<i32>} : memref<8x8x128xf32, #tpu.memory_space<vmem>>, vector<1x8x128xf32>,
    %c4_i32 = arith.constant 4 : i32
    %c7_i32_103 = arith.constant 7 : i32
    %332 = arith.subi %c7_i32_103, %c4_i32 : i32
    %333 = arith.index_cast %c4_i32 : i32 to index
    %c0_104 = arith.constant 0 : index
    %c0_105 = arith.constant 0 : index
    %334 = vector.load %arg15[%333, %c0_104, %c0_105] : memref<8x8x384xf32, #tpu.memory_space<vmem>>, vector<1x8x384xf32>
    %335 = vector.shape_cast %334 : vector<1x8x384xf32> to vector<8x384xf32>
    %336 = arith.truncf %289 : vector<8x128xf32> to vector<8x128xbf16>
    %c0_106 = arith.constant 0 : index
    %c0_107 = arith.constant 0 : index
    %337 = vector.load %arg4[%c0_106, %c0_107] : memref<128x384xbf16, #tpu.memory_space<vmem>>, vector<128x384xbf16>
    %cst_108 = arith.constant dense<0.000000e+00> : vector<8x384xf32>
    %338 = tpu.matmul %336, %337, %cst_108 {dimension_numbers = #tpu.dot_dimension_numbers<[1], [0], [0], [1], [0, 0, 1, 1], [], []>} : vector<8x128xbf16>, vector<128x384xbf16>, vector<8x384xf32> -> vector<8x384xf32>
    %339 = vector.extract_strided_slice %335 {offsets = [0, 0], sizes = [8, 128], strides = [1, 1]} : vector<8x384xf32> to vector<8x128xf32>
    %340 = vector.extract_strided_slice %338 {offsets = [0, 0], sizes = [8, 128], strides = [1, 1]} : vector<8x384xf32> to vector<8x128xf32>
    %341 = arith.addf %339, %340 : vector<8x128xf32>
    %342 = arith.negf %341 : vector<8x128xf32>
    %343 = math.exp %342 : vector<8x128xf32>
    %cst_109 = arith.constant 1.000000e+00 : f32
    %344 = vector.broadcast %cst_109 : f32 to vector<8x128xf32>
    %345 = arith.addf %344, %343 : vector<8x128xf32>
    %346 = arith.divf %344, %345 : vector<8x128xf32>
    %347 = vector.extract_strided_slice %335 {offsets = [0, 128], sizes = [8, 128], strides = [1, 1]} : vector<8x384xf32> to vector<8x128xf32>
    %348 = vector.extract_strided_slice %338 {offsets = [0, 128], sizes = [8, 128], strides = [1, 1]} : vector<8x384xf32> to vector<8x128xf32>
    %349 = arith.addf %347, %348 : vector<8x128xf32>
    %350 = arith.negf %349 : vector<8x128xf32>
    %351 = math.exp %350 : vector<8x128xf32>
    %cst_110 = arith.constant 1.000000e+00 : f32
    %352 = vector.broadcast %cst_110 : f32 to vector<8x128xf32>
    %353 = arith.addf %352, %351 : vector<8x128xf32>
    %354 = arith.divf %352, %353 : vector<8x128xf32>
    %355 = vector.extract_strided_slice %335 {offsets = [0, 256], sizes = [8, 128], strides = [1, 1]} : vector<8x384xf32> to vector<8x128xf32>
    %356 = vector.extract_strided_slice %338 {offsets = [0, 256], sizes = [8, 128], strides = [1, 1]} : vector<8x384xf32> to vector<8x128xf32>
    %357 = vector.broadcast %21 : vector<1x128xf32> to vector<8x128xf32>
    %358 = arith.addf %356, %357 : vector<8x128xf32>
    %359 = arith.mulf %346, %358 : vector<8x128xf32>
    %360 = arith.addf %355, %359 : vector<8x128xf32>
    %361 = math.tanh %360 : vector<8x128xf32>
    %cst_111 = arith.constant 1.000000e+00 : f32
    %362 = vector.broadcast %cst_111 : f32 to vector<8x128xf32>
    %363 = arith.subf %362, %354 : vector<8x128xf32>
    %364 = arith.mulf %363, %361 : vector<8x128xf32>
    %365 = arith.mulf %354, %289 : vector<8x128xf32>
    %366 = arith.addf %364, %365 : vector<8x128xf32>
    %367 = arith.index_cast %332 : i32 to index
    %c0_112 = arith.constant 0 : index
    %c0_113 = arith.constant 0 : index
    %368 = vector.load %arg16[%367, %c0_112, %c0_113] : memref<8x8x384xf32, #tpu.memory_space<vmem>>, vector<1x8x384xf32>
    %369 = vector.shape_cast %368 : vector<1x8x384xf32> to vector<8x384xf32>
    %370 = arith.truncf %323 : vector<8x128xf32> to vector<8x128xbf16>
    %c0_114 = arith.constant 0 : index
    %c0_115 = arith.constant 0 : index
    %371 = vector.load %arg8[%c0_114, %c0_115] : memref<128x384xbf16, #tpu.memory_space<vmem>>, vector<128x384xbf16>
    %cst_116 = arith.constant dense<0.000000e+00> : vector<8x384xf32>
    %372 = tpu.matmul %370, %371, %cst_116 {dimension_numbers = #tpu.dot_dimension_numbers<[1], [0], [0], [1], [0, 0, 1, 1], [], []>} : vector<8x128xbf16>, vector<128x384xbf16>, vector<8x384xf32> -> vector<8x384xf32>
    %373 = vector.extract_strided_slice %369 {offsets = [0, 0], sizes = [8, 128], strides = [1, 1]} : vector<8x384xf32> to vector<8x128xf32>
    %374 = vector.extract_strided_slice %372 {offsets = [0, 0], sizes = [8, 128], strides = [1, 1]} : vector<8x384xf32> to vector<8x128xf32>
    %375 = arith.addf %373, %374 : vector<8x128xf32>
    %376 = arith.negf %375 : vector<8x128xf32>
    %377 = math.exp %376 : vector<8x128xf32>
    %cst_117 = arith.constant 1.000000e+00 : f32
    %378 = vector.broadcast %cst_117 : f32 to vector<8x128xf32>
    %379 = arith.addf %378, %377 : vector<8x128xf32>
    %380 = arith.divf %378, %379 : vector<8x128xf32>
    %381 = vector.extract_strided_slice %369 {offsets = [0, 128], sizes = [8, 128], strides = [1, 1]} : vector<8x384xf32> to vector<8x128xf32>
    %382 = vector.extract_strided_slice %372 {offsets = [0, 128], sizes = [8, 128], strides = [1, 1]} : vector<8x384xf32> to vector<8x128xf32>
    %383 = arith.addf %381, %382 : vector<8x128xf32>
    %384 = arith.negf %383 : vector<8x128xf32>
    %385 = math.exp %384 : vector<8x128xf32>
    %cst_118 = arith.constant 1.000000e+00 : f32
    %386 = vector.broadcast %cst_118 : f32 to vector<8x128xf32>
    %387 = arith.addf %386, %385 : vector<8x128xf32>
    %388 = arith.divf %386, %387 : vector<8x128xf32>
    %389 = vector.extract_strided_slice %369 {offsets = [0, 256], sizes = [8, 128], strides = [1, 1]} : vector<8x384xf32> to vector<8x128xf32>
    %390 = vector.extract_strided_slice %372 {offsets = [0, 256], sizes = [8, 128], strides = [1, 1]} : vector<8x384xf32> to vector<8x128xf32>
    %391 = vector.broadcast %22 : vector<1x128xf32> to vector<8x128xf32>
    %392 = arith.addf %390, %391 : vector<8x128xf32>
    %393 = arith.mulf %380, %392 : vector<8x128xf32>
    %394 = arith.addf %389, %393 : vector<8x128xf32>
    %395 = math.tanh %394 : vector<8x128xf32>
    %cst_119 = arith.constant 1.000000e+00 : f32
    %396 = vector.broadcast %cst_119 : f32 to vector<8x128xf32>
    %397 = arith.subf %396, %388 : vector<8x128xf32>
    %398 = arith.mulf %397, %395 : vector<8x128xf32>
    %399 = arith.mulf %388, %323 : vector<8x128xf32>
    %400 = arith.addf %398, %399 : vector<8x128xf32>
    %401 = arith.index_cast %c4_i32 : i32 to index
    %c0_120 = arith.constant 0 : index
    %c0_121 = arith.constant 0 : index
    %402 = vector.load %arg17[%401, %c0_120, %c0_121] : memref<8x8x128xf32, #tpu.memory_space<vmem>>, vector<1x8x128xf32>
    %403 = vector.shape_cast %402 : vector<1x8x128xf32> to vector<8x128xf32>
    %404 = vector.shape_cast %366 : vector<8x128xf32> to vector<1x8x128xf32>
    tpu.vector_store %arg17[%401, %c0_120, %c0_121], %404 {strides = array<i32>} : memref<8x8x128xf32, #tpu.memory_space<vmem>>, vector<1x8x128xf32>,
    %405 = arith.index_cast %332 : i32 to index
    %c0_122 = arith.constant 0 : index
    %c0_123 = arith.constant 0 : index
    %406 = vector.load %arg18[%405, %c0_122, %c0_123] : memref<8x8x128xf32, #tpu.memory_space<vmem>>, vector<1x8x128xf32>
    %407 = vector.shape_cast %406 : vector<1x8x128xf32> to vector<8x128xf32>
    %408 = vector.shape_cast %400 : vector<8x128xf32> to vector<1x8x128xf32>
    tpu.vector_store %arg18[%405, %c0_122, %c0_123], %408 {strides = array<i32>} : memref<8x8x128xf32, #tpu.memory_space<vmem>>, vector<1x8x128xf32>,
    %c5_i32 = arith.constant 5 : i32
    %c7_i32_124 = arith.constant 7 : i32
    %409 = arith.subi %c7_i32_124, %c5_i32 : i32
    %410 = arith.index_cast %c5_i32 : i32 to index
    %c0_125 = arith.constant 0 : index
    %c0_126 = arith.constant 0 : index
    %411 = vector.load %arg15[%410, %c0_125, %c0_126] : memref<8x8x384xf32, #tpu.memory_space<vmem>>, vector<1x8x384xf32>
    %412 = vector.shape_cast %411 : vector<1x8x384xf32> to vector<8x384xf32>
    %413 = arith.truncf %366 : vector<8x128xf32> to vector<8x128xbf16>
    %c0_127 = arith.constant 0 : index
    %c0_128 = arith.constant 0 : index
    %414 = vector.load %arg4[%c0_127, %c0_128] : memref<128x384xbf16, #tpu.memory_space<vmem>>, vector<128x384xbf16>
    %cst_129 = arith.constant dense<0.000000e+00> : vector<8x384xf32>
    %415 = tpu.matmul %413, %414, %cst_129 {dimension_numbers = #tpu.dot_dimension_numbers<[1], [0], [0], [1], [0, 0, 1, 1], [], []>} : vector<8x128xbf16>, vector<128x384xbf16>, vector<8x384xf32> -> vector<8x384xf32>
    %416 = vector.extract_strided_slice %412 {offsets = [0, 0], sizes = [8, 128], strides = [1, 1]} : vector<8x384xf32> to vector<8x128xf32>
    %417 = vector.extract_strided_slice %415 {offsets = [0, 0], sizes = [8, 128], strides = [1, 1]} : vector<8x384xf32> to vector<8x128xf32>
    %418 = arith.addf %416, %417 : vector<8x128xf32>
    %419 = arith.negf %418 : vector<8x128xf32>
    %420 = math.exp %419 : vector<8x128xf32>
    %cst_130 = arith.constant 1.000000e+00 : f32
    %421 = vector.broadcast %cst_130 : f32 to vector<8x128xf32>
    %422 = arith.addf %421, %420 : vector<8x128xf32>
    %423 = arith.divf %421, %422 : vector<8x128xf32>
    %424 = vector.extract_strided_slice %412 {offsets = [0, 128], sizes = [8, 128], strides = [1, 1]} : vector<8x384xf32> to vector<8x128xf32>
    %425 = vector.extract_strided_slice %415 {offsets = [0, 128], sizes = [8, 128], strides = [1, 1]} : vector<8x384xf32> to vector<8x128xf32>
    %426 = arith.addf %424, %425 : vector<8x128xf32>
    %427 = arith.negf %426 : vector<8x128xf32>
    %428 = math.exp %427 : vector<8x128xf32>
    %cst_131 = arith.constant 1.000000e+00 : f32
    %429 = vector.broadcast %cst_131 : f32 to vector<8x128xf32>
    %430 = arith.addf %429, %428 : vector<8x128xf32>
    %431 = arith.divf %429, %430 : vector<8x128xf32>
    %432 = vector.extract_strided_slice %412 {offsets = [0, 256], sizes = [8, 128], strides = [1, 1]} : vector<8x384xf32> to vector<8x128xf32>
    %433 = vector.extract_strided_slice %415 {offsets = [0, 256], sizes = [8, 128], strides = [1, 1]} : vector<8x384xf32> to vector<8x128xf32>
    %434 = vector.broadcast %21 : vector<1x128xf32> to vector<8x128xf32>
    %435 = arith.addf %433, %434 : vector<8x128xf32>
    %436 = arith.mulf %423, %435 : vector<8x128xf32>
    %437 = arith.addf %432, %436 : vector<8x128xf32>
    %438 = math.tanh %437 : vector<8x128xf32>
    %cst_132 = arith.constant 1.000000e+00 : f32
    %439 = vector.broadcast %cst_132 : f32 to vector<8x128xf32>
    %440 = arith.subf %439, %431 : vector<8x128xf32>
    %441 = arith.mulf %440, %438 : vector<8x128xf32>
    %442 = arith.mulf %431, %366 : vector<8x128xf32>
    %443 = arith.addf %441, %442 : vector<8x128xf32>
    %444 = arith.index_cast %409 : i32 to index
    %c0_133 = arith.constant 0 : index
    %c0_134 = arith.constant 0 : index
    %445 = vector.load %arg16[%444, %c0_133, %c0_134] : memref<8x8x384xf32, #tpu.memory_space<vmem>>, vector<1x8x384xf32>
    %446 = vector.shape_cast %445 : vector<1x8x384xf32> to vector<8x384xf32>
    %447 = arith.truncf %400 : vector<8x128xf32> to vector<8x128xbf16>
    %c0_135 = arith.constant 0 : index
    %c0_136 = arith.constant 0 : index
    %448 = vector.load %arg8[%c0_135, %c0_136] : memref<128x384xbf16, #tpu.memory_space<vmem>>, vector<128x384xbf16>
    %cst_137 = arith.constant dense<0.000000e+00> : vector<8x384xf32>
    %449 = tpu.matmul %447, %448, %cst_137 {dimension_numbers = #tpu.dot_dimension_numbers<[1], [0], [0], [1], [0, 0, 1, 1], [], []>} : vector<8x128xbf16>, vector<128x384xbf16>, vector<8x384xf32> -> vector<8x384xf32>
    %450 = vector.extract_strided_slice %446 {offsets = [0, 0], sizes = [8, 128], strides = [1, 1]} : vector<8x384xf32> to vector<8x128xf32>
    %451 = vector.extract_strided_slice %449 {offsets = [0, 0], sizes = [8, 128], strides = [1, 1]} : vector<8x384xf32> to vector<8x128xf32>
    %452 = arith.addf %450, %451 : vector<8x128xf32>
    %453 = arith.negf %452 : vector<8x128xf32>
    %454 = math.exp %453 : vector<8x128xf32>
    %cst_138 = arith.constant 1.000000e+00 : f32
    %455 = vector.broadcast %cst_138 : f32 to vector<8x128xf32>
    %456 = arith.addf %455, %454 : vector<8x128xf32>
    %457 = arith.divf %455, %456 : vector<8x128xf32>
    %458 = vector.extract_strided_slice %446 {offsets = [0, 128], sizes = [8, 128], strides = [1, 1]} : vector<8x384xf32> to vector<8x128xf32>
    %459 = vector.extract_strided_slice %449 {offsets = [0, 128], sizes = [8, 128], strides = [1, 1]} : vector<8x384xf32> to vector<8x128xf32>
    %460 = arith.addf %458, %459 : vector<8x128xf32>
    %461 = arith.negf %460 : vector<8x128xf32>
    %462 = math.exp %461 : vector<8x128xf32>
    %cst_139 = arith.constant 1.000000e+00 : f32
    %463 = vector.broadcast %cst_139 : f32 to vector<8x128xf32>
    %464 = arith.addf %463, %462 : vector<8x128xf32>
    %465 = arith.divf %463, %464 : vector<8x128xf32>
    %466 = vector.extract_strided_slice %446 {offsets = [0, 256], sizes = [8, 128], strides = [1, 1]} : vector<8x384xf32> to vector<8x128xf32>
    %467 = vector.extract_strided_slice %449 {offsets = [0, 256], sizes = [8, 128], strides = [1, 1]} : vector<8x384xf32> to vector<8x128xf32>
    %468 = vector.broadcast %22 : vector<1x128xf32> to vector<8x128xf32>
    %469 = arith.addf %467, %468 : vector<8x128xf32>
    %470 = arith.mulf %457, %469 : vector<8x128xf32>
    %471 = arith.addf %466, %470 : vector<8x128xf32>
    %472 = math.tanh %471 : vector<8x128xf32>
    %cst_140 = arith.constant 1.000000e+00 : f32
    %473 = vector.broadcast %cst_140 : f32 to vector<8x128xf32>
    %474 = arith.subf %473, %465 : vector<8x128xf32>
    %475 = arith.mulf %474, %472 : vector<8x128xf32>
    %476 = arith.mulf %465, %400 : vector<8x128xf32>
    %477 = arith.addf %475, %476 : vector<8x128xf32>
    %478 = arith.index_cast %c5_i32 : i32 to index
    %c0_141 = arith.constant 0 : index
    %c0_142 = arith.constant 0 : index
    %479 = vector.load %arg17[%478, %c0_141, %c0_142] : memref<8x8x128xf32, #tpu.memory_space<vmem>>, vector<1x8x128xf32>
    %480 = vector.shape_cast %479 : vector<1x8x128xf32> to vector<8x128xf32>
    %481 = vector.shape_cast %443 : vector<8x128xf32> to vector<1x8x128xf32>
    tpu.vector_store %arg17[%478, %c0_141, %c0_142], %481 {strides = array<i32>} : memref<8x8x128xf32, #tpu.memory_space<vmem>>, vector<1x8x128xf32>,
    %482 = arith.index_cast %409 : i32 to index
    %c0_143 = arith.constant 0 : index
    %c0_144 = arith.constant 0 : index
    %483 = vector.load %arg18[%482, %c0_143, %c0_144] : memref<8x8x128xf32, #tpu.memory_space<vmem>>, vector<1x8x128xf32>
    %484 = vector.shape_cast %483 : vector<1x8x128xf32> to vector<8x128xf32>
    %485 = vector.shape_cast %477 : vector<8x128xf32> to vector<1x8x128xf32>
    tpu.vector_store %arg18[%482, %c0_143, %c0_144], %485 {strides = array<i32>} : memref<8x8x128xf32, #tpu.memory_space<vmem>>, vector<1x8x128xf32>,
    %c6_i32 = arith.constant 6 : i32
    %c7_i32_145 = arith.constant 7 : i32
    %486 = arith.subi %c7_i32_145, %c6_i32 : i32
    %487 = arith.index_cast %c6_i32 : i32 to index
    %c0_146 = arith.constant 0 : index
    %c0_147 = arith.constant 0 : index
    %488 = vector.load %arg15[%487, %c0_146, %c0_147] : memref<8x8x384xf32, #tpu.memory_space<vmem>>, vector<1x8x384xf32>
    %489 = vector.shape_cast %488 : vector<1x8x384xf32> to vector<8x384xf32>
    %490 = arith.truncf %443 : vector<8x128xf32> to vector<8x128xbf16>
    %c0_148 = arith.constant 0 : index
    %c0_149 = arith.constant 0 : index
    %491 = vector.load %arg4[%c0_148, %c0_149] : memref<128x384xbf16, #tpu.memory_space<vmem>>, vector<128x384xbf16>
    %cst_150 = arith.constant dense<0.000000e+00> : vector<8x384xf32>
    %492 = tpu.matmul %490, %491, %cst_150 {dimension_numbers = #tpu.dot_dimension_numbers<[1], [0], [0], [1], [0, 0, 1, 1], [], []>} : vector<8x128xbf16>, vector<128x384xbf16>, vector<8x384xf32> -> vector<8x384xf32>
    %493 = vector.extract_strided_slice %489 {offsets = [0, 0], sizes = [8, 128], strides = [1, 1]} : vector<8x384xf32> to vector<8x128xf32>
    %494 = vector.extract_strided_slice %492 {offsets = [0, 0], sizes = [8, 128], strides = [1, 1]} : vector<8x384xf32> to vector<8x128xf32>
    %495 = arith.addf %493, %494 : vector<8x128xf32>
    %496 = arith.negf %495 : vector<8x128xf32>
    %497 = math.exp %496 : vector<8x128xf32>
    %cst_151 = arith.constant 1.000000e+00 : f32
    %498 = vector.broadcast %cst_151 : f32 to vector<8x128xf32>
    %499 = arith.addf %498, %497 : vector<8x128xf32>
    %500 = arith.divf %498, %499 : vector<8x128xf32>
    %501 = vector.extract_strided_slice %489 {offsets = [0, 128], sizes = [8, 128], strides = [1, 1]} : vector<8x384xf32> to vector<8x128xf32>
    %502 = vector.extract_strided_slice %492 {offsets = [0, 128], sizes = [8, 128], strides = [1, 1]} : vector<8x384xf32> to vector<8x128xf32>
    %503 = arith.addf %501, %502 : vector<8x128xf32>
    %504 = arith.negf %503 : vector<8x128xf32>
    %505 = math.exp %504 : vector<8x128xf32>
    %cst_152 = arith.constant 1.000000e+00 : f32
    %506 = vector.broadcast %cst_152 : f32 to vector<8x128xf32>
    %507 = arith.addf %506, %505 : vector<8x128xf32>
    %508 = arith.divf %506, %507 : vector<8x128xf32>
    %509 = vector.extract_strided_slice %489 {offsets = [0, 256], sizes = [8, 128], strides = [1, 1]} : vector<8x384xf32> to vector<8x128xf32>
    %510 = vector.extract_strided_slice %492 {offsets = [0, 256], sizes = [8, 128], strides = [1, 1]} : vector<8x384xf32> to vector<8x128xf32>
    %511 = vector.broadcast %21 : vector<1x128xf32> to vector<8x128xf32>
    %512 = arith.addf %510, %511 : vector<8x128xf32>
    %513 = arith.mulf %500, %512 : vector<8x128xf32>
    %514 = arith.addf %509, %513 : vector<8x128xf32>
    %515 = math.tanh %514 : vector<8x128xf32>
    %cst_153 = arith.constant 1.000000e+00 : f32
    %516 = vector.broadcast %cst_153 : f32 to vector<8x128xf32>
    %517 = arith.subf %516, %508 : vector<8x128xf32>
    %518 = arith.mulf %517, %515 : vector<8x128xf32>
    %519 = arith.mulf %508, %443 : vector<8x128xf32>
    %520 = arith.addf %518, %519 : vector<8x128xf32>
    %521 = arith.index_cast %486 : i32 to index
    %c0_154 = arith.constant 0 : index
    %c0_155 = arith.constant 0 : index
    %522 = vector.load %arg16[%521, %c0_154, %c0_155] : memref<8x8x384xf32, #tpu.memory_space<vmem>>, vector<1x8x384xf32>
    %523 = vector.shape_cast %522 : vector<1x8x384xf32> to vector<8x384xf32>
    %524 = arith.truncf %477 : vector<8x128xf32> to vector<8x128xbf16>
    %c0_156 = arith.constant 0 : index
    %c0_157 = arith.constant 0 : index
    %525 = vector.load %arg8[%c0_156, %c0_157] : memref<128x384xbf16, #tpu.memory_space<vmem>>, vector<128x384xbf16>
    %cst_158 = arith.constant dense<0.000000e+00> : vector<8x384xf32>
    %526 = tpu.matmul %524, %525, %cst_158 {dimension_numbers = #tpu.dot_dimension_numbers<[1], [0], [0], [1], [0, 0, 1, 1], [], []>} : vector<8x128xbf16>, vector<128x384xbf16>, vector<8x384xf32> -> vector<8x384xf32>
    %527 = vector.extract_strided_slice %523 {offsets = [0, 0], sizes = [8, 128], strides = [1, 1]} : vector<8x384xf32> to vector<8x128xf32>
    %528 = vector.extract_strided_slice %526 {offsets = [0, 0], sizes = [8, 128], strides = [1, 1]} : vector<8x384xf32> to vector<8x128xf32>
    %529 = arith.addf %527, %528 : vector<8x128xf32>
    %530 = arith.negf %529 : vector<8x128xf32>
    %531 = math.exp %530 : vector<8x128xf32>
    %cst_159 = arith.constant 1.000000e+00 : f32
    %532 = vector.broadcast %cst_159 : f32 to vector<8x128xf32>
    %533 = arith.addf %532, %531 : vector<8x128xf32>
    %534 = arith.divf %532, %533 : vector<8x128xf32>
    %535 = vector.extract_strided_slice %523 {offsets = [0, 128], sizes = [8, 128], strides = [1, 1]} : vector<8x384xf32> to vector<8x128xf32>
    %536 = vector.extract_strided_slice %526 {offsets = [0, 128], sizes = [8, 128], strides = [1, 1]} : vector<8x384xf32> to vector<8x128xf32>
    %537 = arith.addf %535, %536 : vector<8x128xf32>
    %538 = arith.negf %537 : vector<8x128xf32>
    %539 = math.exp %538 : vector<8x128xf32>
    %cst_160 = arith.constant 1.000000e+00 : f32
    %540 = vector.broadcast %cst_160 : f32 to vector<8x128xf32>
    %541 = arith.addf %540, %539 : vector<8x128xf32>
    %542 = arith.divf %540, %541 : vector<8x128xf32>
    %543 = vector.extract_strided_slice %523 {offsets = [0, 256], sizes = [8, 128], strides = [1, 1]} : vector<8x384xf32> to vector<8x128xf32>
    %544 = vector.extract_strided_slice %526 {offsets = [0, 256], sizes = [8, 128], strides = [1, 1]} : vector<8x384xf32> to vector<8x128xf32>
    %545 = vector.broadcast %22 : vector<1x128xf32> to vector<8x128xf32>
    %546 = arith.addf %544, %545 : vector<8x128xf32>
    %547 = arith.mulf %534, %546 : vector<8x128xf32>
    %548 = arith.addf %543, %547 : vector<8x128xf32>
    %549 = math.tanh %548 : vector<8x128xf32>
    %cst_161 = arith.constant 1.000000e+00 : f32
    %550 = vector.broadcast %cst_161 : f32 to vector<8x128xf32>
    %551 = arith.subf %550, %542 : vector<8x128xf32>
    %552 = arith.mulf %551, %549 : vector<8x128xf32>
    %553 = arith.mulf %542, %477 : vector<8x128xf32>
    %554 = arith.addf %552, %553 : vector<8x128xf32>
    %555 = arith.index_cast %c6_i32 : i32 to index
    %c0_162 = arith.constant 0 : index
    %c0_163 = arith.constant 0 : index
    %556 = vector.load %arg17[%555, %c0_162, %c0_163] : memref<8x8x128xf32, #tpu.memory_space<vmem>>, vector<1x8x128xf32>
    %557 = vector.shape_cast %556 : vector<1x8x128xf32> to vector<8x128xf32>
    %558 = vector.shape_cast %520 : vector<8x128xf32> to vector<1x8x128xf32>
    tpu.vector_store %arg17[%555, %c0_162, %c0_163], %558 {strides = array<i32>} : memref<8x8x128xf32, #tpu.memory_space<vmem>>, vector<1x8x128xf32>,
    %559 = arith.index_cast %486 : i32 to index
    %c0_164 = arith.constant 0 : index
    %c0_165 = arith.constant 0 : index
    %560 = vector.load %arg18[%559, %c0_164, %c0_165] : memref<8x8x128xf32, #tpu.memory_space<vmem>>, vector<1x8x128xf32>
    %561 = vector.shape_cast %560 : vector<1x8x128xf32> to vector<8x128xf32>
    %562 = vector.shape_cast %554 : vector<8x128xf32> to vector<1x8x128xf32>
    tpu.vector_store %arg18[%559, %c0_164, %c0_165], %562 {strides = array<i32>} : memref<8x8x128xf32, #tpu.memory_space<vmem>>, vector<1x8x128xf32>,
    %c7_i32_166 = arith.constant 7 : i32
    %c7_i32_167 = arith.constant 7 : i32
    %563 = arith.subi %c7_i32_167, %c7_i32_166 : i32
    %564 = arith.index_cast %c7_i32_166 : i32 to index
    %c0_168 = arith.constant 0 : index
    %c0_169 = arith.constant 0 : index
    %565 = vector.load %arg15[%564, %c0_168, %c0_169] : memref<8x8x384xf32, #tpu.memory_space<vmem>>, vector<1x8x384xf32>
    %566 = vector.shape_cast %565 : vector<1x8x384xf32> to vector<8x384xf32>
    %567 = arith.truncf %520 : vector<8x128xf32> to vector<8x128xbf16>
    %c0_170 = arith.constant 0 : index
    %c0_171 = arith.constant 0 : index
    %568 = vector.load %arg4[%c0_170, %c0_171] : memref<128x384xbf16, #tpu.memory_space<vmem>>, vector<128x384xbf16>
    %cst_172 = arith.constant dense<0.000000e+00> : vector<8x384xf32>
    %569 = tpu.matmul %567, %568, %cst_172 {dimension_numbers = #tpu.dot_dimension_numbers<[1], [0], [0], [1], [0, 0, 1, 1], [], []>} : vector<8x128xbf16>, vector<128x384xbf16>, vector<8x384xf32> -> vector<8x384xf32>
    %570 = vector.extract_strided_slice %566 {offsets = [0, 0], sizes = [8, 128], strides = [1, 1]} : vector<8x384xf32> to vector<8x128xf32>
    %571 = vector.extract_strided_slice %569 {offsets = [0, 0], sizes = [8, 128], strides = [1, 1]} : vector<8x384xf32> to vector<8x128xf32>
    %572 = arith.addf %570, %571 : vector<8x128xf32>
    %573 = arith.negf %572 : vector<8x128xf32>
    %574 = math.exp %573 : vector<8x128xf32>
    %cst_173 = arith.constant 1.000000e+00 : f32
    %575 = vector.broadcast %cst_173 : f32 to vector<8x128xf32>
    %576 = arith.addf %575, %574 : vector<8x128xf32>
    %577 = arith.divf %575, %576 : vector<8x128xf32>
    %578 = vector.extract_strided_slice %566 {offsets = [0, 128], sizes = [8, 128], strides = [1, 1]} : vector<8x384xf32> to vector<8x128xf32>
    %579 = vector.extract_strided_slice %569 {offsets = [0, 128], sizes = [8, 128], strides = [1, 1]} : vector<8x384xf32> to vector<8x128xf32>
    %580 = arith.addf %578, %579 : vector<8x128xf32>
    %581 = arith.negf %580 : vector<8x128xf32>
    %582 = math.exp %581 : vector<8x128xf32>
    %cst_174 = arith.constant 1.000000e+00 : f32
    %583 = vector.broadcast %cst_174 : f32 to vector<8x128xf32>
    %584 = arith.addf %583, %582 : vector<8x128xf32>
    %585 = arith.divf %583, %584 : vector<8x128xf32>
    %586 = vector.extract_strided_slice %566 {offsets = [0, 256], sizes = [8, 128], strides = [1, 1]} : vector<8x384xf32> to vector<8x128xf32>
    %587 = vector.extract_strided_slice %569 {offsets = [0, 256], sizes = [8, 128], strides = [1, 1]} : vector<8x384xf32> to vector<8x128xf32>
    %588 = vector.broadcast %21 : vector<1x128xf32> to vector<8x128xf32>
    %589 = arith.addf %587, %588 : vector<8x128xf32>
    %590 = arith.mulf %577, %589 : vector<8x128xf32>
    %591 = arith.addf %586, %590 : vector<8x128xf32>
    %592 = math.tanh %591 : vector<8x128xf32>
    %cst_175 = arith.constant 1.000000e+00 : f32
    %593 = vector.broadcast %cst_175 : f32 to vector<8x128xf32>
    %594 = arith.subf %593, %585 : vector<8x128xf32>
    %595 = arith.mulf %594, %592 : vector<8x128xf32>
    %596 = arith.mulf %585, %520 : vector<8x128xf32>
    %597 = arith.addf %595, %596 : vector<8x128xf32>
    %598 = arith.index_cast %563 : i32 to index
    %c0_176 = arith.constant 0 : index
    %c0_177 = arith.constant 0 : index
    %599 = vector.load %arg16[%598, %c0_176, %c0_177] : memref<8x8x384xf32, #tpu.memory_space<vmem>>, vector<1x8x384xf32>
    %600 = vector.shape_cast %599 : vector<1x8x384xf32> to vector<8x384xf32>
    %601 = arith.truncf %554 : vector<8x128xf32> to vector<8x128xbf16>
    %c0_178 = arith.constant 0 : index
    %c0_179 = arith.constant 0 : index
    %602 = vector.load %arg8[%c0_178, %c0_179] : memref<128x384xbf16, #tpu.memory_space<vmem>>, vector<128x384xbf16>
    %cst_180 = arith.constant dense<0.000000e+00> : vector<8x384xf32>
    %603 = tpu.matmul %601, %602, %cst_180 {dimension_numbers = #tpu.dot_dimension_numbers<[1], [0], [0], [1], [0, 0, 1, 1], [], []>} : vector<8x128xbf16>, vector<128x384xbf16>, vector<8x384xf32> -> vector<8x384xf32>
    %604 = vector.extract_strided_slice %600 {offsets = [0, 0], sizes = [8, 128], strides = [1, 1]} : vector<8x384xf32> to vector<8x128xf32>
    %605 = vector.extract_strided_slice %603 {offsets = [0, 0], sizes = [8, 128], strides = [1, 1]} : vector<8x384xf32> to vector<8x128xf32>
    %606 = arith.addf %604, %605 : vector<8x128xf32>
    %607 = arith.negf %606 : vector<8x128xf32>
    %608 = math.exp %607 : vector<8x128xf32>
    %cst_181 = arith.constant 1.000000e+00 : f32
    %609 = vector.broadcast %cst_181 : f32 to vector<8x128xf32>
    %610 = arith.addf %609, %608 : vector<8x128xf32>
    %611 = arith.divf %609, %610 : vector<8x128xf32>
    %612 = vector.extract_strided_slice %600 {offsets = [0, 128], sizes = [8, 128], strides = [1, 1]} : vector<8x384xf32> to vector<8x128xf32>
    %613 = vector.extract_strided_slice %603 {offsets = [0, 128], sizes = [8, 128], strides = [1, 1]} : vector<8x384xf32> to vector<8x128xf32>
    %614 = arith.addf %612, %613 : vector<8x128xf32>
    %615 = arith.negf %614 : vector<8x128xf32>
    %616 = math.exp %615 : vector<8x128xf32>
    %cst_182 = arith.constant 1.000000e+00 : f32
    %617 = vector.broadcast %cst_182 : f32 to vector<8x128xf32>
    %618 = arith.addf %617, %616 : vector<8x128xf32>
    %619 = arith.divf %617, %618 : vector<8x128xf32>
    %620 = vector.extract_strided_slice %600 {offsets = [0, 256], sizes = [8, 128], strides = [1, 1]} : vector<8x384xf32> to vector<8x128xf32>
    %621 = vector.extract_strided_slice %603 {offsets = [0, 256], sizes = [8, 128], strides = [1, 1]} : vector<8x384xf32> to vector<8x128xf32>
    %622 = vector.broadcast %22 : vector<1x128xf32> to vector<8x128xf32>
    %623 = arith.addf %621, %622 : vector<8x128xf32>
    %624 = arith.mulf %611, %623 : vector<8x128xf32>
    %625 = arith.addf %620, %624 : vector<8x128xf32>
    %626 = math.tanh %625 : vector<8x128xf32>
    %cst_183 = arith.constant 1.000000e+00 : f32
    %627 = vector.broadcast %cst_183 : f32 to vector<8x128xf32>
    %628 = arith.subf %627, %619 : vector<8x128xf32>
    %629 = arith.mulf %628, %626 : vector<8x128xf32>
    %630 = arith.mulf %619, %554 : vector<8x128xf32>
    %631 = arith.addf %629, %630 : vector<8x128xf32>
    %632 = arith.index_cast %c7_i32_166 : i32 to index
    %c0_184 = arith.constant 0 : index
    %c0_185 = arith.constant 0 : index
    %633 = vector.load %arg17[%632, %c0_184, %c0_185] : memref<8x8x128xf32, #tpu.memory_space<vmem>>, vector<1x8x128xf32>
    %634 = vector.shape_cast %633 : vector<1x8x128xf32> to vector<8x128xf32>
    %635 = vector.shape_cast %597 : vector<8x128xf32> to vector<1x8x128xf32>
    tpu.vector_store %arg17[%632, %c0_184, %c0_185], %635 {strides = array<i32>} : memref<8x8x128xf32, #tpu.memory_space<vmem>>, vector<1x8x128xf32>,
    %636 = arith.index_cast %563 : i32 to index
    %c0_186 = arith.constant 0 : index
    %c0_187 = arith.constant 0 : index
    %637 = vector.load %arg18[%636, %c0_186, %c0_187] : memref<8x8x128xf32, #tpu.memory_space<vmem>>, vector<1x8x128xf32>
    %638 = vector.shape_cast %637 : vector<1x8x128xf32> to vector<8x128xf32>
    %639 = vector.shape_cast %631 : vector<8x128xf32> to vector<1x8x128xf32>
    tpu.vector_store %arg18[%636, %c0_186, %c0_187], %639 {strides = array<i32>} : memref<8x8x128xf32, #tpu.memory_space<vmem>>, vector<1x8x128xf32>,
    %c8_i32 = arith.constant 8 : i32
    %c0_188 = arith.constant 0 : index
    %c0_189 = arith.constant 0 : index
    %c0_190 = arith.constant 0 : index
    %640 = vector.load %arg17[%c0_188, %c0_189, %c0_190] : memref<8x8x128xf32, #tpu.memory_space<vmem>>, vector<8x8x128xf32>
    %c0_191 = arith.constant 0 : index
    %c0_192 = arith.constant 0 : index
    %641 = vector.load %arg11[%c0_191, %c0_192] : memref<1x128xf32, #tpu.memory_space<vmem>>, vector<1x128xf32>
    %642 = vector.shape_cast %641 : vector<1x128xf32> to vector<1x1x128xf32>
    %643 = vector.broadcast %642 : vector<1x1x128xf32> to vector<8x8x128xf32>
    %644 = arith.mulf %640, %643 : vector<8x8x128xf32>
    %cst_193 = arith.constant dense<0.000000e+00> : vector<8x8xf32>
    %645 = vector.multi_reduction <add>, %644, %cst_193 [2] : vector<8x8x128xf32> to vector<8x8xf32>
    %c0_194 = arith.constant 0 : index
    %c0_195 = arith.constant 0 : index
    %c0_196 = arith.constant 0 : index
    %646 = vector.load %arg18[%c0_194, %c0_195, %c0_196] : memref<8x8x128xf32, #tpu.memory_space<vmem>>, vector<8x8x128xf32>
    %c0_197 = arith.constant 0 : index
    %c0_198 = arith.constant 0 : index
    %647 = vector.load %arg12[%c0_197, %c0_198] : memref<1x128xf32, #tpu.memory_space<vmem>>, vector<1x128xf32>
    %648 = vector.shape_cast %647 : vector<1x128xf32> to vector<1x1x128xf32>
    %649 = vector.broadcast %648 : vector<1x1x128xf32> to vector<8x8x128xf32>
    %650 = arith.mulf %646, %649 : vector<8x8x128xf32>
    %cst_199 = arith.constant dense<0.000000e+00> : vector<8x8xf32>
    %651 = vector.multi_reduction <add>, %650, %cst_199 [2] : vector<8x8x128xf32> to vector<8x8xf32>
    %652 = arith.addf %645, %651 : vector<8x8xf32>
    %c0_200 = arith.constant 0 : index
    %c0_201 = arith.constant 0 : index
    %653 = memref.load %arg13[%c0_200, %c0_201] : memref<1x1xf32, #tpu.memory_space<smem>>
    %654 = vector.broadcast %653 : f32 to vector<8x8xf32>
    %655 = arith.addf %652, %654 : vector<8x8xf32>
    %c0_202 = arith.constant 0 : index
    %c0_203 = arith.constant 0 : index
    %656 = vector.load %arg1[%c0_202, %c0_203] : memref<8x8xf32, #tpu.memory_space<vmem>>, vector<8x8xf32>
    %657 = arith.minimumf %655, %656 : vector<8x8xf32>
    %c0_204 = arith.constant 0 : index
    %c0_205 = arith.constant 0 : index
    %658 = vector.load %arg14[%c0_204, %c0_205] : memref<8x8xf32, #tpu.memory_space<vmem>>, vector<8x8xf32>
    tpu.vector_store %arg14[%c0_204, %c0_205], %657 {strides = array<i32>} : memref<8x8xf32, #tpu.memory_space<vmem>>, vector<8x8xf32>,
    return
  }
  func.func @transform_0(%arg0: i32) -> (i32, i32) {
    %c0_i32 = arith.constant 0 : i32
    %c0_i32_0 = arith.constant 0 : i32
    return %c0_i32, %arg0 : i32, i32
  }
  func.func @transform_1(%arg0: i32) -> (i32, i32, i32) {
    %c0_i32 = arith.constant 0 : i32
    %c0_i32_0 = arith.constant 0 : i32
    %c0_i32_1 = arith.constant 0 : i32
    return %c0_i32, %arg0, %c0_i32_0 : i32, i32, i32
  }
  func.func @transform_2(%arg0: i32) -> (i32, i32) {
    %c0_i32 = arith.constant 0 : i32
    %c0_i32_0 = arith.constant 0 : i32
    %c0_i32_1 = arith.constant 0 : i32
    return %c0_i32, %c0_i32_0 : i32, i32
  }
  func.func @transform_3(%arg0: i32) -> (i32, i32) {
    %c0_i32 = arith.constant 0 : i32
    %c0_i32_0 = arith.constant 0 : i32
    %c0_i32_1 = arith.constant 0 : i32
    return %c0_i32, %c0_i32_0 : i32, i32
  }
  func.func @transform_4(%arg0: i32) -> (i32, i32) {
    %c0_i32 = arith.constant 0 : i32
    %c0_i32_0 = arith.constant 0 : i32
    %c0_i32_1 = arith.constant 0 : i32
    return %c0_i32, %c0_i32_0 : i32, i32
  }
  func.func @transform_5(%arg0: i32) -> (i32, i32) {
    %c0_i32 = arith.constant 0 : i32
    %c0_i32_0 = arith.constant 0 : i32
    %c0_i32_1 = arith.constant 0 : i32
    return %c0_i32, %c0_i32_0 : i32, i32
  }
  func.func @transform_6(%arg0: i32) -> (i32, i32) {
    %c0_i32 = arith.constant 0 : i32
    %c0_i32_0 = arith.constant 0 : i32
    %c0_i32_1 = arith.constant 0 : i32
    return %c0_i32, %c0_i32_0 : i32, i32
  }
  func.func @transform_7(%arg0: i32) -> (i32, i32) {
    %c0_i32 = arith.constant 0 : i32
    %c0_i32_0 = arith.constant 0 : i32
    %c0_i32_1 = arith.constant 0 : i32
    return %c0_i32, %c0_i32_0 : i32, i32
  }
  func.func @transform_8(%arg0: i32) -> (i32, i32) {
    %c0_i32 = arith.constant 0 : i32
    %c0_i32_0 = arith.constant 0 : i32
    %c0_i32_1 = arith.constant 0 : i32
    return %c0_i32, %c0_i32_0 : i32, i32
  }
  func.func @transform_9(%arg0: i32) -> (i32, i32) {
    %c0_i32 = arith.constant 0 : i32
    %c0_i32_0 = arith.constant 0 : i32
    %c0_i32_1 = arith.constant 0 : i32
    return %c0_i32, %c0_i32_0 : i32, i32
  }
  func.func @transform_10(%arg0: i32) -> (i32, i32) {
    %c0_i32 = arith.constant 0 : i32
    %c0_i32_0 = arith.constant 0 : i32
    %c0_i32_1 = arith.constant 0 : i32
    return %c0_i32, %c0_i32_0 : i32, i32
  }
  func.func @transform_11(%arg0: i32) -> (i32, i32) {
    %c0_i32 = arith.constant 0 : i32
    %c0_i32_0 = arith.constant 0 : i32
    %c0_i32_1 = arith.constant 0 : i32
    return %c0_i32, %c0_i32_0 : i32, i32
  }
  func.func @transform_12(%arg0: i32) -> (i32, i32) {
    %c0_i32 = arith.constant 0 : i32
    %c0_i32_0 = arith.constant 0 : i32
    %c0_i32_1 = arith.constant 0 : i32
    return %c0_i32, %c0_i32_0 : i32, i32
  }
  func.func @transform_13(%arg0: i32) -> (i32, i32) {
    %c0_i32 = arith.constant 0 : i32
    %c0_i32_0 = arith.constant 0 : i32
    return %c0_i32, %arg0 : i32, i32
  }
}

</mosaic_0001>

<llo_original>
// kernel: custom_rnn_forward.1
$region0: #{custom_rnn_forward.1}
  #allocation0 [shape = 'u32[]', space=smem, size = 0x4, offset = 0x4, fixed_abs, tag = 'smem constant byte address 0x4 - core index']
  #allocation1 [shape = 'u32[144,128]{1,0:T(1,128)}', space=vmem, size = 0x12000, scoped, tag = 'internal scratch']
  #allocation2 [shape = 'f32[8,8,384]{2,1,0:T(8,128)}', space=vmem, size = 0x18000, scoped, tag = 'scratch operand']
  #allocation3 [shape = 'f32[8,8,384]{2,1,0:T(8,128)}', space=vmem, size = 0x18000, scoped, tag = 'scratch operand']
  #allocation4 [shape = 'f32[8,8,128]{2,1,0:T(8,128)}', space=vmem, size = 0x8000, scoped, tag = 'scratch operand']
  #allocation5 [shape = 'f32[8,8,128]{2,1,0:T(8,128)}', space=vmem, size = 0x8000, scoped, tag = 'scratch operand']
  #allocation6 [shape = 'f32[1,1]{1,0:T(1,128)S(6)}', space=smem, size = 0x200, scoped, tag = 'scoped memory for custom_rnn_forward.1']
  %s0 = inlined_call_operand.vmem [shape: f32[8,8], index: 0, kind: input, shape index: {}]
  %s1 = inlined_call_operand.vmem [shape: f32[8,8,1], index: 1, kind: input, shape index: {}]
  %s2 = inlined_call_operand.vmem [shape: f32[1,384], index: 2, kind: input, shape index: {}]
  %s3 = inlined_call_operand.vmem [shape: bf16[128,384], index: 3, kind: input, shape index: {}]
  %s4 = inlined_call_operand.vmem [shape: f32[1,384], index: 4, kind: input, shape index: {}]
  %s5 = inlined_call_operand.vmem [shape: f32[1,128], index: 5, kind: input, shape index: {}]
  %s6 = inlined_call_operand.vmem [shape: f32[1,384], index: 6, kind: input, shape index: {}]
  %s7 = inlined_call_operand.vmem [shape: bf16[128,384], index: 7, kind: input, shape index: {}]
  %s8 = inlined_call_operand.vmem [shape: f32[1,384], index: 8, kind: input, shape index: {}]
  %s9 = inlined_call_operand.vmem [shape: f32[1,128], index: 9, kind: input, shape index: {}]
  %s10 = inlined_call_operand.vmem [shape: f32[1,128], index: 10, kind: input, shape index: {}]
  %s11 = inlined_call_operand.vmem [shape: f32[1,128], index: 11, kind: input, shape index: {}]
  %s12 = inlined_call_operand.<no memory space> [shape: f32[1,1], index: 12, kind: input, shape index: {}]
  %s13 = inlined_call_operand.vmem [shape: f32[8,8], index: 13, kind: output, shape index: {}]
  %s14 = sld [smem:[#allocation0]]
  $region62: #{custom_rnn_forward.1} parent=0
    _
  %s16 = ssub.s32 1, %s14
  %s17 = scalar_select 0, %s16, %s14
  %18 = sst [smem:[#allocation6]] %s12
  // Predicated region
  $region2: #{custom_rnn_forward.1} parent=0 // pred_check
    _
  $region3: #{custom_rnn_forward.1} parent=0 // pred_check_branch
    %20 = sbr.rel (0) target = $region5
  $region4: #{custom_rnn_forward.1} parent=0 // pred_region
    _
  $region5: #{custom_rnn_forward.1} parent=0 // pred_fallthru
    _
  // Predicated region
  $region6: #{custom_rnn_forward.1} parent=0 // pred_check
    _
  $region7: #{custom_rnn_forward.1} parent=0 // pred_check_branch
    %22 = sbr.rel (0) target = $region9
  $region8: #{custom_rnn_forward.1} parent=0 // pred_region
    _
  $region9: #{custom_rnn_forward.1} parent=0 // pred_fallthru
    _
  // Predicated region
  $region10: #{custom_rnn_forward.1} parent=0 // pred_check
    _
  $region11: #{custom_rnn_forward.1} parent=0 // pred_check_branch
    %24 = sbr.rel (0) target = $region13
  $region12: #{custom_rnn_forward.1} parent=0 // pred_region
    _
  $region13: #{custom_rnn_forward.1} parent=0 // pred_fallthru
    _
  // Predicated region
  $region14: #{custom_rnn_forward.1} parent=0 // pred_check
    _
  $region15: #{custom_rnn_forward.1} parent=0 // pred_check_branch
    %26 = sbr.rel (0) target = $region17
  $region16: #{custom_rnn_forward.1} parent=0 // pred_region
    _
  $region17: #{custom_rnn_forward.1} parent=0 // pred_fallthru
    _
  // Predicated region
  $region18: #{custom_rnn_forward.1} parent=0 // pred_check
    _
  $region19: #{custom_rnn_forward.1} parent=0 // pred_check_branch
    %28 = sbr.rel (0) target = $region21
  $region20: #{custom_rnn_forward.1} parent=0 // pred_region
    _
  $region21: #{custom_rnn_forward.1} parent=0 // pred_fallthru
    _
  // Predicated region
  $region22: #{custom_rnn_forward.1} parent=0 // pred_check
    _
  $region23: #{custom_rnn_forward.1} parent=0 // pred_check_branch
    %30 = sbr.rel (0) target = $region25
  $region24: #{custom_rnn_forward.1} parent=0 // pred_region
    _
  $region25: #{custom_rnn_forward.1} parent=0 // pred_fallthru
    _
  // Predicated region
  $region26: #{custom_rnn_forward.1} parent=0 // pred_check
    _
  $region27: #{custom_rnn_forward.1} parent=0 // pred_check_branch
    %32 = sbr.rel (0) target = $region29
  $region28: #{custom_rnn_forward.1} parent=0 // pred_region
    _
  $region29: #{custom_rnn_forward.1} parent=0 // pred_fallthru
    _
  // Predicated region
  $region30: #{custom_rnn_forward.1} parent=0 // pred_check
    _
  $region31: #{custom_rnn_forward.1} parent=0 // pred_check_branch
    %34 = sbr.rel (0) target = $region33
  $region32: #{custom_rnn_forward.1} parent=0 // pred_region
    _
  $region33: #{custom_rnn_forward.1} parent=0 // pred_fallthru
    _
  // Predicated region
  $region34: #{custom_rnn_forward.1} parent=0 // pred_check
    _
  $region35: #{custom_rnn_forward.1} parent=0 // pred_check_branch
    %36 = sbr.rel (0) target = $region37
  $region36: #{custom_rnn_forward.1} parent=0 // pred_region
    _
  $region37: #{custom_rnn_forward.1} parent=0 // pred_fallthru
    _
  // Predicated region
  $region38: #{custom_rnn_forward.1} parent=0 // pred_check
    _
  $region39: #{custom_rnn_forward.1} parent=0 // pred_check_branch
    %38 = sbr.rel (0) target = $region41
  $region40: #{custom_rnn_forward.1} parent=0 // pred_region
    _
  $region41: #{custom_rnn_forward.1} parent=0 // pred_fallthru
    _
  // Predicated region
  $region42: #{custom_rnn_forward.1} parent=0 // pred_check
    _
  $region43: #{custom_rnn_forward.1} parent=0 // pred_check_branch
    %40 = sbr.rel (0) target = $region45
  $region44: #{custom_rnn_forward.1} parent=0 // pred_region
    _
  $region45: #{custom_rnn_forward.1} parent=0 // pred_fallthru
    _
  // Predicated region
  $region46: #{custom_rnn_forward.1} parent=0 // pred_check
    _
  $region47: #{custom_rnn_forward.1} parent=0 // pred_check_branch
    %42 = sbr.rel (0) target = $region49
  $region48: #{custom_rnn_forward.1} parent=0 // pred_region
    _
  $region49: #{custom_rnn_forward.1} parent=0 // pred_fallthru
    _
  // Predicated region
  $region50: #{custom_rnn_forward.1} parent=0 // pred_check
    _
  $region51: #{custom_rnn_forward.1} parent=0 // pred_check_branch
    %44 = sbr.rel (0) target = $region53
  $region52: #{custom_rnn_forward.1} parent=0 // pred_region
    _
  $region53: #{custom_rnn_forward.1} parent=0 // pred_fallthru
    _
  %v46 = vld [vmem:[%s1] sm:$0xff]
  %v47 = vld [vmem:[%s1 + $0x8] sm:$0xff]
  %v48 = vld [vmem:[%s1 + $0x10] sm:$0xff]
  %v49 = vld [vmem:[%s1 + $0x18] sm:$0xff]
  %v50 = vld [vmem:[%s1 + $0x20] sm:$0xff]
  %v51 = vld [vmem:[%s1 + $0x28] sm:$0xff]
  %v52 = vld [vmem:[%s1 + $0x30] sm:$0xff]
  %v53 = vld [vmem:[%s1 + $0x38] sm:$0xff]
  %v54 = vld [vmem:[%s2] sm:$0x7]
  %56 = vset.pattern.permute.xlu0 0
  %57 = vperm.xlu0 %56, %v46
  %v58 = vpop.permute.xlu0 %57
  %61 = vset.pattern.permute.xlu0 0
  %62 = vperm.xlu0 %61, %v47
  %v63 = vpop.permute.xlu0 %62
  %66 = vset.pattern.permute.xlu0 0
  %67 = vperm.xlu0 %66, %v48
  %v68 = vpop.permute.xlu0 %67
  %71 = vset.pattern.permute.xlu0 0
  %72 = vperm.xlu0 %71, %v49
  %v73 = vpop.permute.xlu0 %72
  %76 = vset.pattern.permute.xlu0 0
  %77 = vperm.xlu0 %76, %v50
  %v78 = vpop.permute.xlu0 %77
  %81 = vset.pattern.permute.xlu0 0
  %82 = vperm.xlu0 %81, %v51
  %v83 = vpop.permute.xlu0 %82
  %86 = vset.pattern.permute.xlu0 0
  %87 = vperm.xlu0 %86, %v52
  %v88 = vpop.permute.xlu0 %87
  %91 = vset.pattern.permute.xlu0 0
  %92 = vperm.xlu0 %91, %v53
  %v93 = vpop.permute.xlu0 %92
  %v96 = vlaneseq
  %v97 = vshrl.u32 %v96, 7
  %v98 = vsub.s32 0, %v97
  %v99 = vrot.slane %v54, %v98
  %v100 = vlaneseq
  %v101 = vshrl.u32 %v100, 7
  %v102 = vsub.s32 1, %v101
  %v103 = vrot.slane %v54, %v102
  %v104 = vlaneseq
  %v105 = vshrl.u32 %v104, 7
  %v106 = vsub.s32 2, %v105
  %v107 = vrot.slane %v54, %v106
  %v111 = vmul.f32 %v58, %v99
  %v112 = vmul.f32 %v58, %v103
  %v113 = vmul.f32 %v58, %v107
  %v114 = vmul.f32 %v63, %v99
  %v115 = vmul.f32 %v63, %v103
  %v116 = vmul.f32 %v63, %v107
  %v117 = vmul.f32 %v68, %v99
  %v118 = vmul.f32 %v68, %v103
  %v119 = vmul.f32 %v68, %v107
  %v120 = vmul.f32 %v73, %v99
  %v121 = vmul.f32 %v73, %v103
  %v122 = vmul.f32 %v73, %v107
  %v123 = vmul.f32 %v78, %v99
  %v124 = vmul.f32 %v78, %v103
  %v125 = vmul.f32 %v78, %v107
  %v126 = vmul.f32 %v83, %v99
  %v127 = vmul.f32 %v83, %v103
  %v128 = vmul.f32 %v83, %v107
  %v129 = vmul.f32 %v88, %v99
  %v130 = vmul.f32 %v88, %v103
  %v131 = vmul.f32 %v88, %v107
  %v132 = vmul.f32 %v93, %v99
  %v133 = vmul.f32 %v93, %v103
  %v134 = vmul.f32 %v93, %v107
  %v135 = vld [vmem:[%s4] sm:$0x7]
  %v137 = vlaneseq
  %v138 = vshrl.u32 %v137, 7
  %v139 = vsub.s32 0, %v138
  %v140 = vrot.slane %v135, %v139
  %v141 = vlaneseq
  %v142 = vshrl.u32 %v141, 7
  %v143 = vsub.s32 1, %v142
  %v144 = vrot.slane %v135, %v143
  %v145 = vlaneseq
  %v146 = vshrl.u32 %v145, 7
  %v147 = vsub.s32 2, %v146
  %v148 = vrot.slane %v135, %v147
  %v152 = vadd.f32 %v111, %v140
  %v153 = vadd.f32 %v112, %v144
  %v154 = vadd.f32 %v113, %v148
  %v155 = vadd.f32 %v114, %v140
  %v156 = vadd.f32 %v115, %v144
  %v157 = vadd.f32 %v116, %v148
  %v158 = vadd.f32 %v117, %v140
  %v159 = vadd.f32 %v118, %v144
  %v160 = vadd.f32 %v119, %v148
  %v161 = vadd.f32 %v120, %v140
  %v162 = vadd.f32 %v121, %v144
  %v163 = vadd.f32 %v122, %v148
  %v164 = vadd.f32 %v123, %v140
  %v165 = vadd.f32 %v124, %v144
  %v166 = vadd.f32 %v125, %v148
  %v167 = vadd.f32 %v126, %v140
  %v168 = vadd.f32 %v127, %v144
  %v169 = vadd.f32 %v128, %v148
  %v170 = vadd.f32 %v129, %v140
  %v171 = vadd.f32 %v130, %v144
  %v172 = vadd.f32 %v131, %v148
  %v173 = vadd.f32 %v132, %v140
  %v174 = vadd.f32 %v133, %v144
  %v175 = vadd.f32 %v134, %v148
  %176 = vst [vmem:[#allocation2] sm:$0xff] %v152
  %177 = vst [vmem:[#allocation2 + $0x8] sm:$0xff] %v153
  %178 = vst [vmem:[#allocation2 + $0x10] sm:$0xff] %v154
  %179 = vst [vmem:[#allocation2 + $0x18] sm:$0xff] %v155
  %180 = vst [vmem:[#allocation2 + $0x20] sm:$0xff] %v156
  %181 = vst [vmem:[#allocation2 + $0x28] sm:$0xff] %v157
  %182 = vst [vmem:[#allocation2 + $0x30] sm:$0xff] %v158
  %183 = vst [vmem:[#allocation2 + $0x38] sm:$0xff] %v159
  %184 = vst [vmem:[#allocation2 + $0x40] sm:$0xff] %v160
  %185 = vst [vmem:[#allocation2 + $0x48] sm:$0xff] %v161
  %186 = vst [vmem:[#allocation2 + $0x50] sm:$0xff] %v162
  %187 = vst [vmem:[#allocation2 + $0x58] sm:$0xff] %v163
  %188 = vst [vmem:[#allocation2 + $0x60] sm:$0xff] %v164
  %189 = vst [vmem:[#allocation2 + $0x68] sm:$0xff] %v165
  %190 = vst [vmem:[#allocation2 + $0x70] sm:$0xff] %v166
  %191 = vst [vmem:[#allocation2 + $0x78] sm:$0xff] %v167
  %192 = vst [vmem:[#allocation2 + $0x80] sm:$0xff] %v168
  %193 = vst [vmem:[#allocation2 + $0x88] sm:$0xff] %v169
  %194 = vst [vmem:[#allocation2 + $0x90] sm:$0xff] %v170
  %195 = vst [vmem:[#allocation2 + $0x98] sm:$0xff] %v171
  %196 = vst [vmem:[#allocation2 + $0xa0] sm:$0xff] %v172
  %197 = vst [vmem:[#allocation2 + $0xa8] sm:$0xff] %v173
  %198 = vst [vmem:[#allocation2 + $0xb0] sm:$0xff] %v174
  %199 = vst [vmem:[#allocation2 + $0xb8] sm:$0xff] %v175
  %v200 = vld [vmem:[%s6] sm:$0x7]
  %v202 = vlaneseq
  %v203 = vshrl.u32 %v202, 7
  %v204 = vsub.s32 0, %v203
  %v205 = vrot.slane %v200, %v204
  %v206 = vlaneseq
  %v207 = vshrl.u32 %v206, 7
  %v208 = vsub.s32 1, %v207
  %v209 = vrot.slane %v200, %v208
  %v210 = vlaneseq
  %v211 = vshrl.u32 %v210, 7
  %v212 = vsub.s32 2, %v211
  %v213 = vrot.slane %v200, %v212
  %v217 = vmul.f32 %v58, %v205
  %v218 = vmul.f32 %v58, %v209
  %v219 = vmul.f32 %v58, %v213
  %v220 = vmul.f32 %v63, %v205
  %v221 = vmul.f32 %v63, %v209
  %v222 = vmul.f32 %v63, %v213
  %v223 = vmul.f32 %v68, %v205
  %v224 = vmul.f32 %v68, %v209
  %v225 = vmul.f32 %v68, %v213
  %v226 = vmul.f32 %v73, %v205
  %v227 = vmul.f32 %v73, %v209
  %v228 = vmul.f32 %v73, %v213
  %v229 = vmul.f32 %v78, %v205
  %v230 = vmul.f32 %v78, %v209
  %v231 = vmul.f32 %v78, %v213
  %v232 = vmul.f32 %v83, %v205
  %v233 = vmul.f32 %v83, %v209
  %v234 = vmul.f32 %v83, %v213
  %v235 = vmul.f32 %v88, %v205
  %v236 = vmul.f32 %v88, %v209
  %v237 = vmul.f32 %v88, %v213
  %v238 = vmul.f32 %v93, %v205
  %v239 = vmul.f32 %v93, %v209
  %v240 = vmul.f32 %v93, %v213
  %v241 = vld [vmem:[%s8] sm:$0x7]
  %v243 = vlaneseq
  %v244 = vshrl.u32 %v243, 7
  %v245 = vsub.s32 0, %v244
  %v246 = vrot.slane %v241, %v245
  %v247 = vlaneseq
  %v248 = vshrl.u32 %v247, 7
  %v249 = vsub.s32 1, %v248
  %v250 = vrot.slane %v241, %v249
  %v251 = vlaneseq
  %v252 = vshrl.u32 %v251, 7
  %v253 = vsub.s32 2, %v252
  %v254 = vrot.slane %v241, %v253
  %v258 = vadd.f32 %v217, %v246
  %v259 = vadd.f32 %v218, %v250
  %v260 = vadd.f32 %v219, %v254
  %v261 = vadd.f32 %v220, %v246
  %v262 = vadd.f32 %v221, %v250
  %v263 = vadd.f32 %v222, %v254
  %v264 = vadd.f32 %v223, %v246
  %v265 = vadd.f32 %v224, %v250
  %v266 = vadd.f32 %v225, %v254
  %v267 = vadd.f32 %v226, %v246
  %v268 = vadd.f32 %v227, %v250
  %v269 = vadd.f32 %v228, %v254
  %v270 = vadd.f32 %v229, %v246
  %v271 = vadd.f32 %v230, %v250
  %v272 = vadd.f32 %v231, %v254
  %v273 = vadd.f32 %v232, %v246
  %v274 = vadd.f32 %v233, %v250
  %v275 = vadd.f32 %v234, %v254
  %v276 = vadd.f32 %v235, %v246
  %v277 = vadd.f32 %v236, %v250
  %v278 = vadd.f32 %v237, %v254
  %v279 = vadd.f32 %v238, %v246
  %v280 = vadd.f32 %v239, %v250
  %v281 = vadd.f32 %v240, %v254
  %282 = vst [vmem:[#allocation3] sm:$0xff] %v258
  %283 = vst [vmem:[#allocation3 + $0x8] sm:$0xff] %v259
  %284 = vst [vmem:[#allocation3 + $0x10] sm:$0xff] %v260
  %285 = vst [vmem:[#allocation3 + $0x18] sm:$0xff] %v261
  %286 = vst [vmem:[#allocation3 + $0x20] sm:$0xff] %v262
  %287 = vst [vmem:[#allocation3 + $0x28] sm:$0xff] %v263
  %288 = vst [vmem:[#allocation3 + $0x30] sm:$0xff] %v264
  %289 = vst [vmem:[#allocation3 + $0x38] sm:$0xff] %v265
  %290 = vst [vmem:[#allocation3 + $0x40] sm:$0xff] %v266
  %291 = vst [vmem:[#allocation3 + $0x48] sm:$0xff] %v267
  %292 = vst [vmem:[#allocation3 + $0x50] sm:$0xff] %v268
  %293 = vst [vmem:[#allocation3 + $0x58] sm:$0xff] %v269
  %294 = vst [vmem:[#allocation3 + $0x60] sm:$0xff] %v270
  %295 = vst [vmem:[#allocation3 + $0x68] sm:$0xff] %v271
  %296 = vst [vmem:[#allocation3 + $0x70] sm:$0xff] %v272
  %297 = vst [vmem:[#allocation3 + $0x78] sm:$0xff] %v273
  %298 = vst [vmem:[#allocation3 + $0x80] sm:$0xff] %v274
  %299 = vst [vmem:[#allocation3 + $0x88] sm:$0xff] %v275
  %300 = vst [vmem:[#allocation3 + $0x90] sm:$0xff] %v276
  %301 = vst [vmem:[#allocation3 + $0x98] sm:$0xff] %v277
  %302 = vst [vmem:[#allocation3 + $0xa0] sm:$0xff] %v278
  %303 = vst [vmem:[#allocation3 + $0xa8] sm:$0xff] %v279
  %304 = vst [vmem:[#allocation3 + $0xb0] sm:$0xff] %v280
  %305 = vst [vmem:[#allocation3 + $0xb8] sm:$0xff] %v281
  %v306 = vld [vmem:[%s5] sm:$0x1]
  %v307 = vld [vmem:[%s9] sm:$0x1]
  %v308 = vld [vmem:[#allocation2] sm:$0xff]
  %v309 = vld [vmem:[#allocation2 + $0x8] sm:$0xff]
  %v310 = vld [vmem:[#allocation2 + $0x10] sm:$0xff]
  %v311 = vld [vmem:[%s3] sm:$0xff]
  %v312 = vld [vmem:[%s3 + $0x8] sm:$0xf]
  %v313 = vld [vmem:[%s3 + $0xc] sm:$0xff]
  %v314 = vld [vmem:[%s3 + $0x14] sm:$0xf]
  %v315 = vld [vmem:[%s3 + $0x18] sm:$0xff]
  %v316 = vld [vmem:[%s3 + $0x20] sm:$0xf]
  %v317 = vld [vmem:[%s3 + $0x24] sm:$0xff]
  %v318 = vld [vmem:[%s3 + $0x2c] sm:$0xf]
  %v319 = vld [vmem:[%s3 + $0x30] sm:$0xff]
  %v320 = vld [vmem:[%s3 + $0x38] sm:$0xf]
  %v321 = vld [vmem:[%s3 + $0x3c] sm:$0xff]
  %v322 = vld [vmem:[%s3 + $0x44] sm:$0xf]
  %v323 = vld [vmem:[%s3 + $0x48] sm:$0xff]
  %v324 = vld [vmem:[%s3 + $0x50] sm:$0xf]
  %v325 = vld [vmem:[%s3 + $0x54] sm:$0xff]
  %v326 = vld [vmem:[%s3 + $0x5c] sm:$0xf]
  %v327 = vld [vmem:[%s3 + $0x60] sm:$0xff]
  %v328 = vld [vmem:[%s3 + $0x68] sm:$0xf]
  %v329 = vld [vmem:[%s3 + $0x6c] sm:$0xff]
  %v330 = vld [vmem:[%s3 + $0x74] sm:$0xf]
  %v331 = vld [vmem:[%s3 + $0x78] sm:$0xff]
  %v332 = vld [vmem:[%s3 + $0x80] sm:$0xf]
  %v333 = vld [vmem:[%s3 + $0x84] sm:$0xff]
  %v334 = vld [vmem:[%s3 + $0x8c] sm:$0xf]
  %v335 = vld [vmem:[%s3 + $0x90] sm:$0xff]
  %v336 = vld [vmem:[%s3 + $0x98] sm:$0xf]
  %v337 = vld [vmem:[%s3 + $0x9c] sm:$0xff]
  %v338 = vld [vmem:[%s3 + $0xa4] sm:$0xf]
  %v339 = vld [vmem:[%s3 + $0xa8] sm:$0xff]
  %v340 = vld [vmem:[%s3 + $0xb0] sm:$0xf]
  %v341 = vld [vmem:[%s3 + $0xb4] sm:$0xff]
  %v342 = vld [vmem:[%s3 + $0xbc] sm:$0xf]
  %v375 = vunpack.c.l.b16 %v311
  %v376 = vunpack.c.h.b16 %v311
  %v377 = vunpack.c.l.b16 %v312
  %v378 = vunpack.c.l.b16 %v313
  %v379 = vunpack.c.h.b16 %v313
  %v380 = vunpack.c.l.b16 %v314
  %v381 = vunpack.c.l.b16 %v315
  %v382 = vunpack.c.h.b16 %v315
  %v383 = vunpack.c.l.b16 %v316
  %v384 = vunpack.c.l.b16 %v317
  %v385 = vunpack.c.h.b16 %v317
  %v386 = vunpack.c.l.b16 %v318
  %v387 = vunpack.c.l.b16 %v319
  %v388 = vunpack.c.h.b16 %v319
  %v389 = vunpack.c.l.b16 %v320
  %v390 = vunpack.c.l.b16 %v321
  %v391 = vunpack.c.h.b16 %v321
  %v392 = vunpack.c.l.b16 %v322
  %v393 = vunpack.c.l.b16 %v323
  %v394 = vunpack.c.h.b16 %v323
  %v395 = vunpack.c.l.b16 %v324
  %v396 = vunpack.c.l.b16 %v325
  %v397 = vunpack.c.h.b16 %v325
  %v398 = vunpack.c.l.b16 %v326
  %v399 = vunpack.c.l.b16 %v327
  %v400 = vunpack.c.h.b16 %v327
  %v401 = vunpack.c.l.b16 %v328
  %v402 = vunpack.c.l.b16 %v329
  %v403 = vunpack.c.h.b16 %v329
  %v404 = vunpack.c.l.b16 %v330
  %v405 = vunpack.c.l.b16 %v331
  %v406 = vunpack.c.h.b16 %v331
  %v407 = vunpack.c.l.b16 %v332
  %v408 = vunpack.c.l.b16 %v333
  %v409 = vunpack.c.h.b16 %v333
  %v410 = vunpack.c.l.b16 %v334
  %v411 = vunpack.c.l.b16 %v335
  %v412 = vunpack.c.h.b16 %v335
  %v413 = vunpack.c.l.b16 %v336
  %v414 = vunpack.c.l.b16 %v337
  %v415 = vunpack.c.h.b16 %v337
  %v416 = vunpack.c.l.b16 %v338
  %v417 = vunpack.c.l.b16 %v339
  %v418 = vunpack.c.h.b16 %v339
  %v419 = vunpack.c.l.b16 %v340
  %v420 = vunpack.c.l.b16 %v341
  %v421 = vunpack.c.h.b16 %v341
  %v422 = vunpack.c.l.b16 %v342
  %v423 = vpack.c.b16 %v378, %v375
  %v424 = vpack.c.b16 %v379, %v376
  %v425 = vpack.c.b16 %v380, %v377
  %v426 = vpack.c.b16 %v384, %v381
  %v427 = vpack.c.b16 %v385, %v382
  %v428 = vpack.c.b16 %v386, %v383
  %v429 = vpack.c.b16 %v390, %v387
  %v430 = vpack.c.b16 %v391, %v388
  %v431 = vpack.c.b16 %v392, %v389
  %v432 = vpack.c.b16 %v396, %v393
  %v433 = vpack.c.b16 %v397, %v394
  %v434 = vpack.c.b16 %v398, %v395
  %v435 = vpack.c.b16 %v402, %v399
  %v436 = vpack.c.b16 %v403, %v400
  %v437 = vpack.c.b16 %v404, %v401
  %v438 = vpack.c.b16 %v408, %v405
  %v439 = vpack.c.b16 %v409, %v406
  %v440 = vpack.c.b16 %v410, %v407
  %v441 = vpack.c.b16 %v414, %v411
  %v442 = vpack.c.b16 %v415, %v412
  %v443 = vpack.c.b16 %v416, %v413
  %v444 = vpack.c.b16 %v420, %v417
  %v445 = vpack.c.b16 %v421, %v418
  %v446 = vpack.c.b16 %v422, %v419
  %471 = vmatprep.subr.bf16.mxu0 %v445
  %472 = vmatpush1.bf16.msra.mxu0 %v444
  %473 = vmatprep.subr.bf16.mxu0 %v442
  %474 = vmatpush1.bf16.msra.mxu0 %v441
  %475 = vmatprep.subr.bf16.mxu0 %v439
  %476 = vmatpush1.bf16.msra.mxu0 %v438
  %477 = vmatprep.subr.bf16.mxu0 %v436
  %478 = vmatpush1.bf16.msra.mxu0 %v435
  %479 = vmatprep.subr.bf16.mxu0 %v433
  %480 = vmatpush1.bf16.msra.mxu0 %v432
  %481 = vmatprep.subr.bf16.mxu0 %v430
  %482 = vmatpush1.bf16.msra.mxu0 %v429
  %483 = vmatprep.subr.bf16.mxu0 %v427
  %484 = vmatpush1.bf16.msra.mxu0 %v426
  %485 = vmatprep.subr.bf16.mxu0 %v424
  %486 = vmatpush1.bf16.msra.mxu0 %v423
  %487 = vmatprep.subr.bf16.mxu0 0
  %488 = vmatpush2.bf16.msra.mxu0 0
  %489 = vmatprep.subr.bf16.mxu0 0
  %490 = vmatpush2.bf16.msra.mxu0 0
  %491 = vmatprep.subr.bf16.mxu0 0
  %492 = vmatpush2.bf16.msra.mxu0 0
  %493 = vmatprep.subr.bf16.mxu0 0
  %494 = vmatpush2.bf16.msra.mxu0 0
  %495 = vmatprep.subr.bf16.mxu0 0
  %496 = vmatpush2.bf16.msra.mxu0 0
  %497 = vmatprep.subr.bf16.mxu0 0
  %498 = vmatpush2.bf16.msra.mxu0 0
  %499 = vmatprep.subr.bf16.mxu0 0
  %500 = vmatpush2.bf16.msra.mxu0 0
  %501 = vmatprep.subr.bf16.mxu0 0
  %502 = vmatpush2.bf16.msra.mxu0 0
  %503 = vmatprep.mubr.bf16.mxu0 0
  %504 = vmatmul.mubr.bf16.gmra.mxu0 0
  %v505 = vpop.f32.mrf.mxu0
  %v506 = vadd.f32 0.0, %v505
  %v507 = vpop.f32.mrf.mxu0
  %v508 = vadd.f32 0.0, %v507
  %v509 = vpop.f32.mrf.mxu0
  %v510 = vpop.f32.mrf.mxu0
  %511 = vdwg.mxu0
  %512 = vmatprep.subr.bf16.mxu0 0
  %513 = vmatpush1.bf16.msra.mxu0 %v446
  %514 = vmatprep.subr.bf16.mxu0 0
  %515 = vmatpush1.bf16.msra.mxu0 %v443
  %516 = vmatprep.subr.bf16.mxu0 0
  %517 = vmatpush1.bf16.msra.mxu0 %v440
  %518 = vmatprep.subr.bf16.mxu0 0
  %519 = vmatpush1.bf16.msra.mxu0 %v437
  %520 = vmatprep.subr.bf16.mxu0 0
  %521 = vmatpush1.bf16.msra.mxu0 %v434
  %522 = vmatprep.subr.bf16.mxu0 0
  %523 = vmatpush1.bf16.msra.mxu0 %v431
  %524 = vmatprep.subr.bf16.mxu0 0
  %525 = vmatpush1.bf16.msra.mxu0 %v428
  %526 = vmatprep.subr.bf16.mxu0 0
  %527 = vmatpush1.bf16.msra.mxu0 %v425
  %528 = vmatprep.subr.bf16.mxu0 0
  %529 = vmatpush2.bf16.msra.mxu0 0
  %530 = vmatprep.subr.bf16.mxu0 0
  %531 = vmatpush2.bf16.msra.mxu0 0
  %532 = vmatprep.subr.bf16.mxu0 0
  %533 = vmatpush2.bf16.msra.mxu0 0
  %534 = vmatprep.subr.bf16.mxu0 0
  %535 = vmatpush2.bf16.msra.mxu0 0
  %536 = vmatprep.subr.bf16.mxu0 0
  %537 = vmatpush2.bf16.msra.mxu0 0
  %538 = vmatprep.subr.bf16.mxu0 0
  %539 = vmatpush2.bf16.msra.mxu0 0
  %540 = vmatprep.subr.bf16.mxu0 0
  %541 = vmatpush2.bf16.msra.mxu0 0
  %542 = vmatprep.subr.bf16.mxu0 0
  %543 = vmatpush2.bf16.msra.mxu0 0
  %544 = vmatprep.mubr.bf16.mxu0 0
  %545 = vmatmul.mubr.bf16.gmra.mxu0 0
  %v546 = vpop.f32.mrf.mxu0
  %v547 = vadd.f32 0.0, %v546
  %v548 = vpop.f32.mrf.mxu0
  %v549 = vpop.f32.mrf.mxu0
  %v550 = vpop.f32.mrf.mxu0
  %551 = vdwg.mxu0
  %v552 = vadd.f32 %v308, %v506
  %v553 = vxor.u32 %v552, 2147483648
  %v554 = vmul.f32 %v553, 1.442695
  %v555 = vpow.pop %v554
  %v556 = vadd.f32 %v555, 1.0
  %v557 = vrcp.pop %v556
  %v558 = vmul.f32 1.0, %v557
  %v559 = vadd.f32 %v309, %v508
  %v560 = vxor.u32 %v559, 2147483648
  %v561 = vmul.f32 %v560, 1.442695
  %v562 = vpow.pop %v561
  %v563 = vadd.f32 %v562, 1.0
  %v564 = vrcp.pop %v563
  %v565 = vmul.f32 1.0, %v564
  %v567 = vlaneseq
  %v568 = vshrl.u32 %v567, 7
  %v569 = vsub.s32 0, %v568
  %v570 = vrot.slane %v306, %v569
  %v572 = vadd.f32 %v547, %v570
  %v573 = vmul.f32 %v558, %v572
  %v574 = vadd.f32 %v310, %v573
  %v575 = vtanh.pop %v574
  %v576 = vsub.f32 1.0, %v565
  %v577 = vmul.f32 %v576, %v575
  %v578 = vmul.f32 %v565, 0.0
  %v579 = vadd.f32 %v577, %v578
  %s580 = scalar_lea.vmem [#allocation3], 168
  %v581 = vld [vmem:[%s580] sm:$0xff]
  %v582 = vld [vmem:[%s580 + $0x8] sm:$0xff]
  %v583 = vld [vmem:[%s580 + $0x10] sm:$0xff]
  %v584 = vld [vmem:[%s7] sm:$0xff]
  %v585 = vld [vmem:[%s7 + $0x8] sm:$0xf]
  %v586 = vld [vmem:[%s7 + $0xc] sm:$0xff]
  %v587 = vld [vmem:[%s7 + $0x14] sm:$0xf]
  %v588 = vld [vmem:[%s7 + $0x18] sm:$0xff]
  %v589 = vld [vmem:[%s7 + $0x20] sm:$0xf]
  %v590 = vld [vmem:[%s7 + $0x24] sm:$0xff]
  %v591 = vld [vmem:[%s7 + $0x2c] sm:$0xf]
  %v592 = vld [vmem:[%s7 + $0x30] sm:$0xff]
  %v593 = vld [vmem:[%s7 + $0x38] sm:$0xf]
  %v594 = vld [vmem:[%s7 + $0x3c] sm:$0xff]
  %v595 = vld [vmem:[%s7 + $0x44] sm:$0xf]
  %v596 = vld [vmem:[%s7 + $0x48] sm:$0xff]
  %v597 = vld [vmem:[%s7 + $0x50] sm:$0xf]
  %v598 = vld [vmem:[%s7 + $0x54] sm:$0xff]
  %v599 = vld [vmem:[%s7 + $0x5c] sm:$0xf]
  %v600 = vld [vmem:[%s7 + $0x60] sm:$0xff]
  %v601 = vld [vmem:[%s7 + $0x68] sm:$0xf]
  %v602 = vld [vmem:[%s7 + $0x6c] sm:$0xff]
  %v603 = vld [vmem:[%s7 + $0x74] sm:$0xf]
  %v604 = vld [vmem:[%s7 + $0x78] sm:$0xff]
  %v605 = vld [vmem:[%s7 + $0x80] sm:$0xf]
  %v606 = vld [vmem:[%s7 + $0x84] sm:$0xff]
  %v607 = vld [vmem:[%s7 + $0x8c] sm:$0xf]
  %v608 = vld [vmem:[%s7 + $0x90] sm:$0xff]
  %v609 = vld [vmem:[%s7 + $0x98] sm:$0xf]
  %v610 = vld [vmem:[%s7 + $0x9c] sm:$0xff]
  %v611 = vld [vmem:[%s7 + $0xa4] sm:$0xf]
  %v612 = vld [vmem:[%s7 + $0xa8] sm:$0xff]
  %v613 = vld [vmem:[%s7 + $0xb0] sm:$0xf]
  %v614 = vld [vmem:[%s7 + $0xb4] sm:$0xff]
  %v615 = vld [vmem:[%s7 + $0xbc] sm:$0xf]
  %v648 = vunpack.c.l.b16 %v584
  %v649 = vunpack.c.h.b16 %v584
  %v650 = vunpack.c.l.b16 %v585
  %v651 = vunpack.c.l.b16 %v586
  %v652 = vunpack.c.h.b16 %v586
  %v653 = vunpack.c.l.b16 %v587
  %v654 = vunpack.c.l.b16 %v588
  %v655 = vunpack.c.h.b16 %v588
  %v656 = vunpack.c.l.b16 %v589
  %v657 = vunpack.c.l.b16 %v590
  %v658 = vunpack.c.h.b16 %v590
  %v659 = vunpack.c.l.b16 %v591
  %v660 = vunpack.c.l.b16 %v592
  %v661 = vunpack.c.h.b16 %v592
  %v662 = vunpack.c.l.b16 %v593
  %v663 = vunpack.c.l.b16 %v594
  %v664 = vunpack.c.h.b16 %v594
  %v665 = vunpack.c.l.b16 %v595
  %v666 = vunpack.c.l.b16 %v596
  %v667 = vunpack.c.h.b16 %v596
  %v668 = vunpack.c.l.b16 %v597
  %v669 = vunpack.c.l.b16 %v598
  %v670 = vunpack.c.h.b16 %v598
  %v671 = vunpack.c.l.b16 %v599
  %v672 = vunpack.c.l.b16 %v600
  %v673 = vunpack.c.h.b16 %v600
  %v674 = vunpack.c.l.b16 %v601
  %v675 = vunpack.c.l.b16 %v602
  %v676 = vunpack.c.h.b16 %v602
  %v677 = vunpack.c.l.b16 %v603
  %v678 = vunpack.c.l.b16 %v604
  %v679 = vunpack.c.h.b16 %v604
  %v680 = vunpack.c.l.b16 %v605
  %v681 = vunpack.c.l.b16 %v606
  %v682 = vunpack.c.h.b16 %v606
  %v683 = vunpack.c.l.b16 %v607
  %v684 = vunpack.c.l.b16 %v608
  %v685 = vunpack.c.h.b16 %v608
  %v686 = vunpack.c.l.b16 %v609
  %v687 = vunpack.c.l.b16 %v610
  %v688 = vunpack.c.h.b16 %v610
  %v689 = vunpack.c.l.b16 %v611
  %v690 = vunpack.c.l.b16 %v612
  %v691 = vunpack.c.h.b16 %v612
  %v692 = vunpack.c.l.b16 %v613
  %v693 = vunpack.c.l.b16 %v614
  %v694 = vunpack.c.h.b16 %v614
  %v695 = vunpack.c.l.b16 %v615
  %v696 = vpack.c.b16 %v651, %v648
  %v697 = vpack.c.b16 %v652, %v649
  %v698 = vpack.c.b16 %v653, %v650
  %v699 = vpack.c.b16 %v657, %v654
  %v700 = vpack.c.b16 %v658, %v655
  %v701 = vpack.c.b16 %v659, %v656
  %v702 = vpack.c.b16 %v663, %v660
  %v703 = vpack.c.b16 %v664, %v661
  %v704 = vpack.c.b16 %v665, %v662
  %v705 = vpack.c.b16 %v669, %v666
  %v706 = vpack.c.b16 %v670, %v667
  %v707 = vpack.c.b16 %v671, %v668
  %v708 = vpack.c.b16 %v675, %v672
  %v709 = vpack.c.b16 %v676, %v673
  %v710 = vpack.c.b16 %v677, %v674
  %v711 = vpack.c.b16 %v681, %v678
  %v712 = vpack.c.b16 %v682, %v679
  %v713 = vpack.c.b16 %v683, %v680
  %v714 = vpack.c.b16 %v687, %v684
  %v715 = vpack.c.b16 %v688, %v685
  %v716 = vpack.c.b16 %v689, %v686
  %v717 = vpack.c.b16 %v693, %v690
  %v718 = vpack.c.b16 %v694, %v691
  %v719 = vpack.c.b16 %v695, %v692
  %744 = vmatprep.subr.bf16.mxu0 %v718
  %745 = vmatpush1.bf16.msra.mxu0 %v717
  %746 = vmatprep.subr.bf16.mxu0 %v715
  %747 = vmatpush1.bf16.msra.mxu0 %v714
  %748 = vmatprep.subr.bf16.mxu0 %v712
  %749 = vmatpush1.bf16.msra.mxu0 %v711
  %750 = vmatprep.subr.bf16.mxu0 %v709
  %751 = vmatpush1.bf16.msra.mxu0 %v708
  %752 = vmatprep.subr.bf16.mxu0 %v706
  %753 = vmatpush1.bf16.msra.mxu0 %v705
  %754 = vmatprep.subr.bf16.mxu0 %v703
  %755 = vmatpush1.bf16.msra.mxu0 %v702
  %756 = vmatprep.subr.bf16.mxu0 %v700
  %757 = vmatpush1.bf16.msra.mxu0 %v699
  %758 = vmatprep.subr.bf16.mxu0 %v697
  %759 = vmatpush1.bf16.msra.mxu0 %v696
  %760 = vmatprep.subr.bf16.mxu0 0
  %761 = vmatpush2.bf16.msra.mxu0 0
  %762 = vmatprep.subr.bf16.mxu0 0
  %763 = vmatpush2.bf16.msra.mxu0 0
  %764 = vmatprep.subr.bf16.mxu0 0
  %765 = vmatpush2.bf16.msra.mxu0 0
  %766 = vmatprep.subr.bf16.mxu0 0
  %767 = vmatpush2.bf16.msra.mxu0 0
  %768 = vmatprep.subr.bf16.mxu0 0
  %769 = vmatpush2.bf16.msra.mxu0 0
  %770 = vmatprep.subr.bf16.mxu0 0
  %771 = vmatpush2.bf16.msra.mxu0 0
  %772 = vmatprep.subr.bf16.mxu0 0
  %773 = vmatpush2.bf16.msra.mxu0 0
  %774 = vmatprep.subr.bf16.mxu0 0
  %775 = vmatpush2.bf16.msra.mxu0 0
  %776 = vmatprep.mubr.bf16.mxu0 0
  %777 = vmatmul.mubr.bf16.gmra.mxu0 0
  %v778 = vpop.f32.mrf.mxu0
  %v779 = vadd.f32 0.0, %v778
  %v780 = vpop.f32.mrf.mxu0
  %v781 = vadd.f32 0.0, %v780
  %v782 = vpop.f32.mrf.mxu0
  %v783 = vpop.f32.mrf.mxu0
  %784 = vdwg.mxu0
  %785 = vmatprep.subr.bf16.mxu0 0
  %786 = vmatpush1.bf16.msra.mxu0 %v719
  %787 = vmatprep.subr.bf16.mxu0 0
  %788 = vmatpush1.bf16.msra.mxu0 %v716
  %789 = vmatprep.subr.bf16.mxu0 0
  %790 = vmatpush1.bf16.msra.mxu0 %v713
  %791 = vmatprep.subr.bf16.mxu0 0
  %792 = vmatpush1.bf16.msra.mxu0 %v710
  %793 = vmatprep.subr.bf16.mxu0 0
  %794 = vmatpush1.bf16.msra.mxu0 %v707
  %795 = vmatprep.subr.bf16.mxu0 0
  %796 = vmatpush1.bf16.msra.mxu0 %v704
  %797 = vmatprep.subr.bf16.mxu0 0
  %798 = vmatpush1.bf16.msra.mxu0 %v701
  %799 = vmatprep.subr.bf16.mxu0 0
  %800 = vmatpush1.bf16.msra.mxu0 %v698
  %801 = vmatprep.subr.bf16.mxu0 0
  %802 = vmatpush2.bf16.msra.mxu0 0
  %803 = vmatprep.subr.bf16.mxu0 0
  %804 = vmatpush2.bf16.msra.mxu0 0
  %805 = vmatprep.subr.bf16.mxu0 0
  %806 = vmatpush2.bf16.msra.mxu0 0
  %807 = vmatprep.subr.bf16.mxu0 0
  %808 = vmatpush2.bf16.msra.mxu0 0
  %809 = vmatprep.subr.bf16.mxu0 0
  %810 = vmatpush2.bf16.msra.mxu0 0
  %811 = vmatprep.subr.bf16.mxu0 0
  %812 = vmatpush2.bf16.msra.mxu0 0
  %813 = vmatprep.subr.bf16.mxu0 0
  %814 = vmatpush2.bf16.msra.mxu0 0
  %815 = vmatprep.subr.bf16.mxu0 0
  %816 = vmatpush2.bf16.msra.mxu0 0
  %817 = vmatprep.mubr.bf16.mxu0 0
  %818 = vmatmul.mubr.bf16.gmra.mxu0 0
  %v819 = vpop.f32.mrf.mxu0
  %v820 = vadd.f32 0.0, %v819
  %v821 = vpop.f32.mrf.mxu0
  %v822 = vpop.f32.mrf.mxu0
  %v823 = vpop.f32.mrf.mxu0
  %824 = vdwg.mxu0
  %v825 = vadd.f32 %v581, %v779
  %v826 = vxor.u32 %v825, 2147483648
  %v827 = vmul.f32 %v826, 1.442695
  %v828 = vpow.pop %v827
  %v829 = vadd.f32 %v828, 1.0
  %v830 = vrcp.pop %v829
  %v831 = vmul.f32 1.0, %v830
  %v832 = vadd.f32 %v582, %v781
  %v833 = vxor.u32 %v832, 2147483648
  %v834 = vmul.f32 %v833, 1.442695
  %v835 = vpow.pop %v834
  %v836 = vadd.f32 %v835, 1.0
  %v837 = vrcp.pop %v836
  %v838 = vmul.f32 1.0, %v837
  %v840 = vlaneseq
  %v841 = vshrl.u32 %v840, 7
  %v842 = vsub.s32 0, %v841
  %v843 = vrot.slane %v307, %v842
  %v845 = vadd.f32 %v820, %v843
  %v846 = vmul.f32 %v831, %v845
  %v847 = vadd.f32 %v583, %v846
  %v848 = vtanh.pop %v847
  %v849 = vsub.f32 1.0, %v838
  %v850 = vmul.f32 %v849, %v848
  %v851 = vmul.f32 %v838, 0.0
  %v852 = vadd.f32 %v850, %v851
  %853 = vst [vmem:[#allocation4] sm:$0xff] %v579
  %s854 = scalar_lea.vmem [#allocation5], 56
  %855 = vst [vmem:[%s854] sm:$0xff] %v852
  %s856 = scalar_lea.vmem [#allocation2], 24
  %v857 = vld [vmem:[%s856] sm:$0xff]
  %v858 = vld [vmem:[%s856 + $0x8] sm:$0xff]
  %v859 = vld [vmem:[%s856 + $0x10] sm:$0xff]
  %v860 = vpack.c.bf16 %v579, %v579
  %v861 = vld [vmem:[%s3] sm:$0xff]
  %v862 = vld [vmem:[%s3 + $0x8] sm:$0xf]
  %v863 = vld [vmem:[%s3 + $0xc] sm:$0xff]
  %v864 = vld [vmem:[%s3 + $0x14] sm:$0xf]
  %v865 = vld [vmem:[%s3 + $0x18] sm:$0xff]
  %v866 = vld [vmem:[%s3 + $0x20] sm:$0xf]
  %v867 = vld [vmem:[%s3 + $0x24] sm:$0xff]
  %v868 = vld [vmem:[%s3 + $0x2c] sm:$0xf]
  %v869 = vld [vmem:[%s3 + $0x30] sm:$0xff]
  %v870 = vld [vmem:[%s3 + $0x38] sm:$0xf]
  %v871 = vld [vmem:[%s3 + $0x3c] sm:$0xff]
  %v872 = vld [vmem:[%s3 + $0x44] sm:$0xf]
  %v873 = vld [vmem:[%s3 + $0x48] sm:$0xff]
  %v874 = vld [vmem:[%s3 + $0x50] sm:$0xf]
  %v875 = vld [vmem:[%s3 + $0x54] sm:$0xff]
  %v876 = vld [vmem:[%s3 + $0x5c] sm:$0xf]
  %v877 = vld [vmem:[%s3 + $0x60] sm:$0xff]
  %v878 = vld [vmem:[%s3 + $0x68] sm:$0xf]
  %v879 = vld [vmem:[%s3 + $0x6c] sm:$0xff]
  %v880 = vld [vmem:[%s3 + $0x74] sm:$0xf]
  %v881 = vld [vmem:[%s3 + $0x78] sm:$0xff]
  %v882 = vld [vmem:[%s3 + $0x80] sm:$0xf]
  %v883 = vld [vmem:[%s3 + $0x84] sm:$0xff]
  %v884 = vld [vmem:[%s3 + $0x8c] sm:$0xf]
  %v885 = vld [vmem:[%s3 + $0x90] sm:$0xff]
  %v886 = vld [vmem:[%s3 + $0x98] sm:$0xf]
  %v887 = vld [vmem:[%s3 + $0x9c] sm:$0xff]
  %v888 = vld [vmem:[%s3 + $0xa4] sm:$0xf]
  %v889 = vld [vmem:[%s3 + $0xa8] sm:$0xff]
  %v890 = vld [vmem:[%s3 + $0xb0] sm:$0xf]
  %v891 = vld [vmem:[%s3 + $0xb4] sm:$0xff]
  %v892 = vld [vmem:[%s3 + $0xbc] sm:$0xf]
  %v925 = vunpack.c.l.b16 %v861
  %v926 = vunpack.c.h.b16 %v861
  %v927 = vunpack.c.l.b16 %v862
  %v928 = vunpack.c.l.b16 %v863
  %v929 = vunpack.c.h.b16 %v863
  %v930 = vunpack.c.l.b16 %v864
  %v931 = vunpack.c.l.b16 %v865
  %v932 = vunpack.c.h.b16 %v865
  %v933 = vunpack.c.l.b16 %v866
  %v934 = vunpack.c.l.b16 %v867
  %v935 = vunpack.c.h.b16 %v867
  %v936 = vunpack.c.l.b16 %v868
  %v937 = vunpack.c.l.b16 %v869
  %v938 = vunpack.c.h.b16 %v869
  %v939 = vunpack.c.l.b16 %v870
  %v940 = vunpack.c.l.b16 %v871
  %v941 = vunpack.c.h.b16 %v871
  %v942 = vunpack.c.l.b16 %v872
  %v943 = vunpack.c.l.b16 %v873
  %v944 = vunpack.c.h.b16 %v873
  %v945 = vunpack.c.l.b16 %v874
  %v946 = vunpack.c.l.b16 %v875
  %v947 = vunpack.c.h.b16 %v875
  %v948 = vunpack.c.l.b16 %v876
  %v949 = vunpack.c.l.b16 %v877
  %v950 = vunpack.c.h.b16 %v877
  %v951 = vunpack.c.l.b16 %v878
  %v952 = vunpack.c.l.b16 %v879
  %v953 = vunpack.c.h.b16 %v879
  %v954 = vunpack.c.l.b16 %v880
  %v955 = vunpack.c.l.b16 %v881
  %v956 = vunpack.c.h.b16 %v881
  %v957 = vunpack.c.l.b16 %v882
  %v958 = vunpack.c.l.b16 %v883
  %v959 = vunpack.c.h.b16 %v883
  %v960 = vunpack.c.l.b16 %v884
  %v961 = vunpack.c.l.b16 %v885
  %v962 = vunpack.c.h.b16 %v885
  %v963 = vunpack.c.l.b16 %v886
  %v964 = vunpack.c.l.b16 %v887
  %v965 = vunpack.c.h.b16 %v887
  %v966 = vunpack.c.l.b16 %v888
  %v967 = vunpack.c.l.b16 %v889
  %v968 = vunpack.c.h.b16 %v889
  %v969 = vunpack.c.l.b16 %v890
  %v970 = vunpack.c.l.b16 %v891
  %v971 = vunpack.c.h.b16 %v891
  %v972 = vunpack.c.l.b16 %v892
  %v973 = vpack.c.b16 %v928, %v925
  %v974 = vpack.c.b16 %v929, %v926
  %v975 = vpack.c.b16 %v930, %v927
  %v976 = vpack.c.b16 %v934, %v931
  %v977 = vpack.c.b16 %v935, %v932
  %v978 = vpack.c.b16 %v936, %v933
  %v979 = vpack.c.b16 %v940, %v937
  %v980 = vpack.c.b16 %v941, %v938
  %v981 = vpack.c.b16 %v942, %v939
  %v982 = vpack.c.b16 %v946, %v943
  %v983 = vpack.c.b16 %v947, %v944
  %v984 = vpack.c.b16 %v948, %v945
  %v985 = vpack.c.b16 %v952, %v949
  %v986 = vpack.c.b16 %v953, %v950
  %v987 = vpack.c.b16 %v954, %v951
  %v988 = vpack.c.b16 %v958, %v955
  %v989 = vpack.c.b16 %v959, %v956
  %v990 = vpack.c.b16 %v960, %v957
  %v991 = vpack.c.b16 %v964, %v961
  %v992 = vpack.c.b16 %v965, %v962
  %v993 = vpack.c.b16 %v966, %v963
  %v994 = vpack.c.b16 %v970, %v967
  %v995 = vpack.c.b16 %v971, %v968
  %v996 = vpack.c.b16 %v972, %v969
  %1021 = vmatprep.subr.bf16.mxu0 %v995
  %1022 = vmatpush1.bf16.msra.mxu0 %v994
  %1023 = vmatprep.subr.bf16.mxu0 %v992
  %1024 = vmatpush1.bf16.msra.mxu0 %v991
  %1025 = vmatprep.subr.bf16.mxu0 %v989
  %1026 = vmatpush1.bf16.msra.mxu0 %v988
  %1027 = vmatprep.subr.bf16.mxu0 %v986
  %1028 = vmatpush1.bf16.msra.mxu0 %v985
  %1029 = vmatprep.subr.bf16.mxu0 %v983
  %1030 = vmatpush1.bf16.msra.mxu0 %v982
  %1031 = vmatprep.subr.bf16.mxu0 %v980
  %1032 = vmatpush1.bf16.msra.mxu0 %v979
  %1033 = vmatprep.subr.bf16.mxu0 %v977
  %1034 = vmatpush1.bf16.msra.mxu0 %v976
  %1035 = vmatprep.subr.bf16.mxu0 %v974
  %1036 = vmatpush1.bf16.msra.mxu0 %v973
  %1037 = vmatprep.subr.bf16.mxu0 0
  %1038 = vmatpush2.bf16.msra.mxu0 0
  %1039 = vmatprep.subr.bf16.mxu0 0
  %1040 = vmatpush2.bf16.msra.mxu0 0
  %1041 = vmatprep.subr.bf16.mxu0 0
  %1042 = vmatpush2.bf16.msra.mxu0 0
  %1043 = vmatprep.subr.bf16.mxu0 0
  %1044 = vmatpush2.bf16.msra.mxu0 0
  %1045 = vmatprep.subr.bf16.mxu0 0
  %1046 = vmatpush2.bf16.msra.mxu0 0
  %1047 = vmatprep.subr.bf16.mxu0 0
  %1048 = vmatpush2.bf16.msra.mxu0 0
  %1049 = vmatprep.subr.bf16.mxu0 0
  %1050 = vmatpush2.bf16.msra.mxu0 0
  %1051 = vmatprep.subr.bf16.mxu0 0
  %1052 = vmatpush2.bf16.msra.mxu0 0
  %1053 = vmatprep.mubr.bf16.mxu0 0
  %1054 = vmatmul.mubr.bf16.gmra.mxu0 %v860
  %v1055 = vpop.f32.mrf.mxu0
  %v1056 = vadd.f32 0.0, %v1055
  %v1057 = vpop.f32.mrf.mxu0
  %v1058 = vadd.f32 0.0, %v1057
  %v1059 = vpop.f32.mrf.mxu0
  %v1060 = vpop.f32.mrf.mxu0
  %1061 = vdwg.mxu0
  %1062 = vmatprep.subr.bf16.mxu0 0
  %1063 = vmatpush1.bf16.msra.mxu0 %v996
  %1064 = vmatprep.subr.bf16.mxu0 0
  %1065 = vmatpush1.bf16.msra.mxu0 %v993
  %1066 = vmatprep.subr.bf16.mxu0 0
  %1067 = vmatpush1.bf16.msra.mxu0 %v990
  %1068 = vmatprep.subr.bf16.mxu0 0
  %1069 = vmatpush1.bf16.msra.mxu0 %v987
  %1070 = vmatprep.subr.bf16.mxu0 0
  %1071 = vmatpush1.bf16.msra.mxu0 %v984
  %1072 = vmatprep.subr.bf16.mxu0 0
  %1073 = vmatpush1.bf16.msra.mxu0 %v981
  %1074 = vmatprep.subr.bf16.mxu0 0
  %1075 = vmatpush1.bf16.msra.mxu0 %v978
  %1076 = vmatprep.subr.bf16.mxu0 0
  %1077 = vmatpush1.bf16.msra.mxu0 %v975
  %1078 = vmatprep.subr.bf16.mxu0 0
  %1079 = vmatpush2.bf16.msra.mxu0 0
  %1080 = vmatprep.subr.bf16.mxu0 0
  %1081 = vmatpush2.bf16.msra.mxu0 0
  %1082 = vmatprep.subr.bf16.mxu0 0
  %1083 = vmatpush2.bf16.msra.mxu0 0
  %1084 = vmatprep.subr.bf16.mxu0 0
  %1085 = vmatpush2.bf16.msra.mxu0 0
  %1086 = vmatprep.subr.bf16.mxu0 0
  %1087 = vmatpush2.bf16.msra.mxu0 0
  %1088 = vmatprep.subr.bf16.mxu0 0
  %1089 = vmatpush2.bf16.msra.mxu0 0
  %1090 = vmatprep.subr.bf16.mxu0 0
  %1091 = vmatpush2.bf16.msra.mxu0 0
  %1092 = vmatprep.subr.bf16.mxu0 0
  %1093 = vmatpush2.bf16.msra.mxu0 0
  %1094 = vmatprep.mubr.bf16.mxu0 0
  %1095 = vmatmul.mubr.bf16.gmra.mxu0 %v860
  %v1096 = vpop.f32.mrf.mxu0
  %v1097 = vadd.f32 0.0, %v1096
  %v1098 = vpop.f32.mrf.mxu0
  %v1099 = vpop.f32.mrf.mxu0
  %v1100 = vpop.f32.mrf.mxu0
  %1101 = vdwg.mxu0
  %v1102 = vadd.f32 %v857, %v1056
  %v1103 = vxor.u32 %v1102, 2147483648
  %v1104 = vmul.f32 %v1103, 1.442695
  %v1105 = vpow.pop %v1104
  %v1106 = vadd.f32 %v1105, 1.0
  %v1107 = vrcp.pop %v1106
  %v1108 = vmul.f32 1.0, %v1107
  %v1109 = vadd.f32 %v858, %v1058
  %v1110 = vxor.u32 %v1109, 2147483648
  %v1111 = vmul.f32 %v1110, 1.442695
  %v1112 = vpow.pop %v1111
  %v1113 = vadd.f32 %v1112, 1.0
  %v1114 = vrcp.pop %v1113
  %v1115 = vmul.f32 1.0, %v1114
  %v1116 = vadd.f32 %v1097, %v570
  %v1117 = vmul.f32 %v1108, %v1116
  %v1118 = vadd.f32 %v859, %v1117
  %v1119 = vtanh.pop %v1118
  %v1120 = vsub.f32 1.0, %v1115
  %v1121 = vmul.f32 %v1120, %v1119
  %v1122 = vmul.f32 %v1115, %v579
  %v1123 = vadd.f32 %v1121, %v1122
  %s1124 = scalar_lea.vmem [#allocation3], 144
  %v1125 = vld [vmem:[%s1124] sm:$0xff]
  %v1126 = vld [vmem:[%s1124 + $0x8] sm:$0xff]
  %v1127 = vld [vmem:[%s1124 + $0x10] sm:$0xff]
  %v1128 = vpack.c.bf16 %v852, %v852
  %v1129 = vld [vmem:[%s7] sm:$0xff]
  %v1130 = vld [vmem:[%s7 + $0x8] sm:$0xf]
  %v1131 = vld [vmem:[%s7 + $0xc] sm:$0xff]
  %v1132 = vld [vmem:[%s7 + $0x14] sm:$0xf]
  %v1133 = vld [vmem:[%s7 + $0x18] sm:$0xff]
  %v1134 = vld [vmem:[%s7 + $0x20] sm:$0xf]
  %v1135 = vld [vmem:[%s7 + $0x24] sm:$0xff]
  %v1136 = vld [vmem:[%s7 + $0x2c] sm:$0xf]
  %v1137 = vld [vmem:[%s7 + $0x30] sm:$0xff]
  %v1138 = vld [vmem:[%s7 + $0x38] sm:$0xf]
  %v1139 = vld [vmem:[%s7 + $0x3c] sm:$0xff]
  %v1140 = vld [vmem:[%s7 + $0x44] sm:$0xf]
  %v1141 = vld [vmem:[%s7 + $0x48] sm:$0xff]
  %v1142 = vld [vmem:[%s7 + $0x50] sm:$0xf]
  %v1143 = vld [vmem:[%s7 + $0x54] sm:$0xff]
  %v1144 = vld [vmem:[%s7 + $0x5c] sm:$0xf]
  %v1145 = vld [vmem:[%s7 + $0x60] sm:$0xff]
  %v1146 = vld [vmem:[%s7 + $0x68] sm:$0xf]
  %v1147 = vld [vmem:[%s7 + $0x6c] sm:$0xff]
  %v1148 = vld [vmem:[%s7 + $0x74] sm:$0xf]
  %v1149 = vld [vmem:[%s7 + $0x78] sm:$0xff]
  %v1150 = vld [vmem:[%s7 + $0x80] sm:$0xf]
  %v1151 = vld [vmem:[%s7 + $0x84] sm:$0xff]
  %v1152 = vld [vmem:[%s7 + $0x8c] sm:$0xf]
  %v1153 = vld [vmem:[%s7 + $0x90] sm:$0xff]
  %v1154 = vld [vmem:[%s7 + $0x98] sm:$0xf]
  %v1155 = vld [vmem:[%s7 + $0x9c] sm:$0xff]
  %v1156 = vld [vmem:[%s7 + $0xa4] sm:$0xf]
  %v1157 = vld [vmem:[%s7 + $0xa8] sm:$0xff]
  %v1158 = vld [vmem:[%s7 + $0xb0] sm:$0xf]
  %v1159 = vld [vmem:[%s7 + $0xb4] sm:$0xff]
  %v1160 = vld [vmem:[%s7 + $0xbc] sm:$0xf]
  %v1193 = vunpack.c.l.b16 %v1129
  %v1194 = vunpack.c.h.b16 %v1129
  %v1195 = vunpack.c.l.b16 %v1130
  %v1196 = vunpack.c.l.b16 %v1131
  %v1197 = vunpack.c.h.b16 %v1131
  %v1198 = vunpack.c.l.b16 %v1132
  %v1199 = vunpack.c.l.b16 %v1133
  %v1200 = vunpack.c.h.b16 %v1133
  %v1201 = vunpack.c.l.b16 %v1134
  %v1202 = vunpack.c.l.b16 %v1135
  %v1203 = vunpack.c.h.b16 %v1135
  %v1204 = vunpack.c.l.b16 %v1136
  %v1205 = vunpack.c.l.b16 %v1137
  %v1206 = vunpack.c.h.b16 %v1137
  %v1207 = vunpack.c.l.b16 %v1138
  %v1208 = vunpack.c.l.b16 %v1139
  %v1209 = vunpack.c.h.b16 %v1139
  %v1210 = vunpack.c.l.b16 %v1140
  %v1211 = vunpack.c.l.b16 %v1141
  %v1212 = vunpack.c.h.b16 %v1141
  %v1213 = vunpack.c.l.b16 %v1142
  %v1214 = vunpack.c.l.b16 %v1143
  %v1215 = vunpack.c.h.b16 %v1143
  %v1216 = vunpack.c.l.b16 %v1144
  %v1217 = vunpack.c.l.b16 %v1145
  %v1218 = vunpack.c.h.b16 %v1145
  %v1219 = vunpack.c.l.b16 %v1146
  %v1220 = vunpack.c.l.b16 %v1147
  %v1221 = vunpack.c.h.b16 %v1147
  %v1222 = vunpack.c.l.b16 %v1148
  %v1223 = vunpack.c.l.b16 %v1149
  %v1224 = vunpack.c.h.b16 %v1149
  %v1225 = vunpack.c.l.b16 %v1150
  %v1226 = vunpack.c.l.b16 %v1151
  %v1227 = vunpack.c.h.b16 %v1151
  %v1228 = vunpack.c.l.b16 %v1152
  %v1229 = vunpack.c.l.b16 %v1153
  %v1230 = vunpack.c.h.b16 %v1153
  %v1231 = vunpack.c.l.b16 %v1154
  %v1232 = vunpack.c.l.b16 %v1155
  %v1233 = vunpack.c.h.b16 %v1155
  %v1234 = vunpack.c.l.b16 %v1156
  %v1235 = vunpack.c.l.b16 %v1157
  %v1236 = vunpack.c.h.b16 %v1157
  %v1237 = vunpack.c.l.b16 %v1158
  %v1238 = vunpack.c.l.b16 %v1159
  %v1239 = vunpack.c.h.b16 %v1159
  %v1240 = vunpack.c.l.b16 %v1160
  %v1241 = vpack.c.b16 %v1196, %v1193
  %v1242 = vpack.c.b16 %v1197, %v1194
  %v1243 = vpack.c.b16 %v1198, %v1195
  %v1244 = vpack.c.b16 %v1202, %v1199
  %v1245 = vpack.c.b16 %v1203, %v1200
  %v1246 = vpack.c.b16 %v1204, %v1201
  %v1247 = vpack.c.b16 %v1208, %v1205
  %v1248 = vpack.c.b16 %v1209, %v1206
  %v1249 = vpack.c.b16 %v1210, %v1207
  %v1250 = vpack.c.b16 %v1214, %v1211
  %v1251 = vpack.c.b16 %v1215, %v1212
  %v1252 = vpack.c.b16 %v1216, %v1213
  %v1253 = vpack.c.b16 %v1220, %v1217
  %v1254 = vpack.c.b16 %v1221, %v1218
  %v1255 = vpack.c.b16 %v1222, %v1219
  %v1256 = vpack.c.b16 %v1226, %v1223
  %v1257 = vpack.c.b16 %v1227, %v1224
  %v1258 = vpack.c.b16 %v1228, %v1225
  %v1259 = vpack.c.b16 %v1232, %v1229
  %v1260 = vpack.c.b16 %v1233, %v1230
  %v1261 = vpack.c.b16 %v1234, %v1231
  %v1262 = vpack.c.b16 %v1238, %v1235
  %v1263 = vpack.c.b16 %v1239, %v1236
  %v1264 = vpack.c.b16 %v1240, %v1237
  %1289 = vmatprep.subr.bf16.mxu0 %v1263
  %1290 = vmatpush1.bf16.msra.mxu0 %v1262
  %1291 = vmatprep.subr.bf16.mxu0 %v1260
  %1292 = vmatpush1.bf16.msra.mxu0 %v1259
  %1293 = vmatprep.subr.bf16.mxu0 %v1257
  %1294 = vmatpush1.bf16.msra.mxu0 %v1256
  %1295 = vmatprep.subr.bf16.mxu0 %v1254
  %1296 = vmatpush1.bf16.msra.mxu0 %v1253
  %1297 = vmatprep.subr.bf16.mxu0 %v1251
  %1298 = vmatpush1.bf16.msra.mxu0 %v1250
  %1299 = vmatprep.subr.bf16.mxu0 %v1248
  %1300 = vmatpush1.bf16.msra.mxu0 %v1247
  %1301 = vmatprep.subr.bf16.mxu0 %v1245
  %1302 = vmatpush1.bf16.msra.mxu0 %v1244
  %1303 = vmatprep.subr.bf16.mxu0 %v1242
  %1304 = vmatpush1.bf16.msra.mxu0 %v1241
  %1305 = vmatprep.subr.bf16.mxu0 0
  %1306 = vmatpush2.bf16.msra.mxu0 0
  %1307 = vmatprep.subr.bf16.mxu0 0
  %1308 = vmatpush2.bf16.msra.mxu0 0
  %1309 = vmatprep.subr.bf16.mxu0 0
  %1310 = vmatpush2.bf16.msra.mxu0 0
  %1311 = vmatprep.subr.bf16.mxu0 0
  %1312 = vmatpush2.bf16.msra.mxu0 0
  %1313 = vmatprep.subr.bf16.mxu0 0
  %1314 = vmatpush2.bf16.msra.mxu0 0
  %1315 = vmatprep.subr.bf16.mxu0 0
  %1316 = vmatpush2.bf16.msra.mxu0 0
  %1317 = vmatprep.subr.bf16.mxu0 0
  %1318 = vmatpush2.bf16.msra.mxu0 0
  %1319 = vmatprep.subr.bf16.mxu0 0
  %1320 = vmatpush2.bf16.msra.mxu0 0
  %1321 = vmatprep.mubr.bf16.mxu0 0
  %1322 = vmatmul.mubr.bf16.gmra.mxu0 %v1128
  %v1323 = vpop.f32.mrf.mxu0
  %v1324 = vadd.f32 0.0, %v1323
  %v1325 = vpop.f32.mrf.mxu0
  %v1326 = vadd.f32 0.0, %v1325
  %v1327 = vpop.f32.mrf.mxu0
  %v1328 = vpop.f32.mrf.mxu0
  %1329 = vdwg.mxu0
  %1330 = vmatprep.subr.bf16.mxu0 0
  %1331 = vmatpush1.bf16.msra.mxu0 %v1264
  %1332 = vmatprep.subr.bf16.mxu0 0
  %1333 = vmatpush1.bf16.msra.mxu0 %v1261
  %1334 = vmatprep.subr.bf16.mxu0 0
  %1335 = vmatpush1.bf16.msra.mxu0 %v1258
  %1336 = vmatprep.subr.bf16.mxu0 0
  %1337 = vmatpush1.bf16.msra.mxu0 %v1255
  %1338 = vmatprep.subr.bf16.mxu0 0
  %1339 = vmatpush1.bf16.msra.mxu0 %v1252
  %1340 = vmatprep.subr.bf16.mxu0 0
  %1341 = vmatpush1.bf16.msra.mxu0 %v1249
  %1342 = vmatprep.subr.bf16.mxu0 0
  %1343 = vmatpush1.bf16.msra.mxu0 %v1246
  %1344 = vmatprep.subr.bf16.mxu0 0
  %1345 = vmatpush1.bf16.msra.mxu0 %v1243
  %1346 = vmatprep.subr.bf16.mxu0 0
  %1347 = vmatpush2.bf16.msra.mxu0 0
  %1348 = vmatprep.subr.bf16.mxu0 0
  %1349 = vmatpush2.bf16.msra.mxu0 0
  %1350 = vmatprep.subr.bf16.mxu0 0
  %1351 = vmatpush2.bf16.msra.mxu0 0
  %1352 = vmatprep.subr.bf16.mxu0 0
  %1353 = vmatpush2.bf16.msra.mxu0 0
  %1354 = vmatprep.subr.bf16.mxu0 0
  %1355 = vmatpush2.bf16.msra.mxu0 0
  %1356 = vmatprep.subr.bf16.mxu0 0
  %1357 = vmatpush2.bf16.msra.mxu0 0
  %1358 = vmatprep.subr.bf16.mxu0 0
  %1359 = vmatpush2.bf16.msra.mxu0 0
  %1360 = vmatprep.subr.bf16.mxu0 0
  %1361 = vmatpush2.bf16.msra.mxu0 0
  %1362 = vmatprep.mubr.bf16.mxu0 0
  %1363 = vmatmul.mubr.bf16.gmra.mxu0 %v1128
  %v1364 = vpop.f32.mrf.mxu0
  %v1365 = vadd.f32 0.0, %v1364
  %v1366 = vpop.f32.mrf.mxu0
  %v1367 = vpop.f32.mrf.mxu0
  %v1368 = vpop.f32.mrf.mxu0
  %1369 = vdwg.mxu0
  %v1370 = vadd.f32 %v1125, %v1324
  %v1371 = vxor.u32 %v1370, 2147483648
  %v1372 = vmul.f32 %v1371, 1.442695
  %v1373 = vpow.pop %v1372
  %v1374 = vadd.f32 %v1373, 1.0
  %v1375 = vrcp.pop %v1374
  %v1376 = vmul.f32 1.0, %v1375
  %v1377 = vadd.f32 %v1126, %v1326
  %v1378 = vxor.u32 %v1377, 2147483648
  %v1379 = vmul.f32 %v1378, 1.442695
  %v1380 = vpow.pop %v1379
  %v1381 = vadd.f32 %v1380, 1.0
  %v1382 = vrcp.pop %v1381
  %v1383 = vmul.f32 1.0, %v1382
  %v1384 = vadd.f32 %v1365, %v843
  %v1385 = vmul.f32 %v1376, %v1384
  %v1386 = vadd.f32 %v1127, %v1385
  %v1387 = vtanh.pop %v1386
  %v1388 = vsub.f32 1.0, %v1383
  %v1389 = vmul.f32 %v1388, %v1387
  %v1390 = vmul.f32 %v1383, %v852
  %v1391 = vadd.f32 %v1389, %v1390
  %s1392 = scalar_lea.vmem [#allocation4], 8
  %1393 = vst [vmem:[%s1392] sm:$0xff] %v1123
  %s1394 = scalar_lea.vmem [#allocation5], 48
  %1395 = vst [vmem:[%s1394] sm:$0xff] %v1391
  %s1396 = scalar_lea.vmem [#allocation2], 48
  %v1397 = vld [vmem:[%s1396] sm:$0xff]
  %v1398 = vld [vmem:[%s1396 + $0x8] sm:$0xff]
  %v1399 = vld [vmem:[%s1396 + $0x10] sm:$0xff]
  %v1400 = vpack.c.bf16 %v1123, %v1123
  %v1401 = vld [vmem:[%s3] sm:$0xff]
  %v1402 = vld [vmem:[%s3 + $0x8] sm:$0xf]
  %v1403 = vld [vmem:[%s3 + $0xc] sm:$0xff]
  %v1404 = vld [vmem:[%s3 + $0x14] sm:$0xf]
  %v1405 = vld [vmem:[%s3 + $0x18] sm:$0xff]
  %v1406 = vld [vmem:[%s3 + $0x20] sm:$0xf]
  %v1407 = vld [vmem:[%s3 + $0x24] sm:$0xff]
  %v1408 = vld [vmem:[%s3 + $0x2c] sm:$0xf]
  %v1409 = vld [vmem:[%s3 + $0x30] sm:$0xff]
  %v1410 = vld [vmem:[%s3 + $0x38] sm:$0xf]
  %v1411 = vld [vmem:[%s3 + $0x3c] sm:$0xff]
  %v1412 = vld [vmem:[%s3 + $0x44] sm:$0xf]
  %v1413 = vld [vmem:[%s3 + $0x48] sm:$0xff]
  %v1414 = vld [vmem:[%s3 + $0x50] sm:$0xf]
  %v1415 = vld [vmem:[%s3 + $0x54] sm:$0xff]
  %v1416 = vld [vmem:[%s3 + $0x5c] sm:$0xf]
  %v1417 = vld [vmem:[%s3 + $0x60] sm:$0xff]
  %v1418 = vld [vmem:[%s3 + $0x68] sm:$0xf]
  %v1419 = vld [vmem:[%s3 + $0x6c] sm:$0xff]
  %v1420 = vld [vmem:[%s3 + $0x74] sm:$0xf]
  %v1421 = vld [vmem:[%s3 + $0x78] sm:$0xff]
  %v1422 = vld [vmem:[%s3 + $0x80] sm:$0xf]
  %v1423 = vld [vmem:[%s3 + $0x84] sm:$0xff]
  %v1424 = vld [vmem:[%s3 + $0x8c] sm:$0xf]
  %v1425 = vld [vmem:[%s3 + $0x90] sm:$0xff]
  %v1426 = vld [vmem:[%s3 + $0x98] sm:$0xf]
  %v1427 = vld [vmem:[%s3 + $0x9c] sm:$0xff]
  %v1428 = vld [vmem:[%s3 + $0xa4] sm:$0xf]
  %v1429 = vld [vmem:[%s3 + $0xa8] sm:$0xff]
  %v1430 = vld [vmem:[%s3 + $0xb0] sm:$0xf]
  %v1431 = vld [vmem:[%s3 + $0xb4] sm:$0xff]
  %v1432 = vld [vmem:[%s3 + $0xbc] sm:$0xf]
  %v1465 = vunpack.c.l.b16 %v1401
  %v1466 = vunpack.c.h.b16 %v1401
  %v1467 = vunpack.c.l.b16 %v1402
  %v1468 = vunpack.c.l.b16 %v1403
  %v1469 = vunpack.c.h.b16 %v1403
  %v1470 = vunpack.c.l.b16 %v1404
  %v1471 = vunpack.c.l.b16 %v1405
  %v1472 = vunpack.c.h.b16 %v1405
  %v1473 = vunpack.c.l.b16 %v1406
  %v1474 = vunpack.c.l.b16 %v1407
  %v1475 = vunpack.c.h.b16 %v1407
  %v1476 = vunpack.c.l.b16 %v1408
  %v1477 = vunpack.c.l.b16 %v1409
  %v1478 = vunpack.c.h.b16 %v1409
  %v1479 = vunpack.c.l.b16 %v1410
  %v1480 = vunpack.c.l.b16 %v1411
  %v1481 = vunpack.c.h.b16 %v1411
  %v1482 = vunpack.c.l.b16 %v1412
  %v1483 = vunpack.c.l.b16 %v1413
  %v1484 = vunpack.c.h.b16 %v1413
  %v1485 = vunpack.c.l.b16 %v1414
  %v1486 = vunpack.c.l.b16 %v1415
  %v1487 = vunpack.c.h.b16 %v1415
  %v1488 = vunpack.c.l.b16 %v1416
  %v1489 = vunpack.c.l.b16 %v1417
  %v1490 = vunpack.c.h.b16 %v1417
  %v1491 = vunpack.c.l.b16 %v1418
  %v1492 = vunpack.c.l.b16 %v1419
  %v1493 = vunpack.c.h.b16 %v1419
  %v1494 = vunpack.c.l.b16 %v1420
  %v1495 = vunpack.c.l.b16 %v1421
  %v1496 = vunpack.c.h.b16 %v1421
  %v1497 = vunpack.c.l.b16 %v1422
  %v1498 = vunpack.c.l.b16 %v1423
  %v1499 = vunpack.c.h.b16 %v1423
  %v1500 = vunpack.c.l.b16 %v1424
  %v1501 = vunpack.c.l.b16 %v1425
  %v1502 = vunpack.c.h.b16 %v1425
  %v1503 = vunpack.c.l.b16 %v1426
  %v1504 = vunpack.c.l.b16 %v1427
  %v1505 = vunpack.c.h.b16 %v1427
  %v1506 = vunpack.c.l.b16 %v1428
  %v1507 = vunpack.c.l.b16 %v1429
  %v1508 = vunpack.c.h.b16 %v1429
  %v1509 = vunpack.c.l.b16 %v1430
  %v1510 = vunpack.c.l.b16 %v1431
  %v1511 = vunpack.c.h.b16 %v1431
  %v1512 = vunpack.c.l.b16 %v1432
  %v1513 = vpack.c.b16 %v1468, %v1465
  %v1514 = vpack.c.b16 %v1469, %v1466
  %v1515 = vpack.c.b16 %v1470, %v1467
  %v1516 = vpack.c.b16 %v1474, %v1471
  %v1517 = vpack.c.b16 %v1475, %v1472
  %v1518 = vpack.c.b16 %v1476, %v1473
  %v1519 = vpack.c.b16 %v1480, %v1477
  %v1520 = vpack.c.b16 %v1481, %v1478
  %v1521 = vpack.c.b16 %v1482, %v1479
  %v1522 = vpack.c.b16 %v1486, %v1483
  %v1523 = vpack.c.b16 %v1487, %v1484
  %v1524 = vpack.c.b16 %v1488, %v1485
  %v1525 = vpack.c.b16 %v1492, %v1489
  %v1526 = vpack.c.b16 %v1493, %v1490
  %v1527 = vpack.c.b16 %v1494, %v1491
  %v1528 = vpack.c.b16 %v1498, %v1495
  %v1529 = vpack.c.b16 %v1499, %v1496
  %v1530 = vpack.c.b16 %v1500, %v1497
  %v1531 = vpack.c.b16 %v1504, %v1501
  %v1532 = vpack.c.b16 %v1505, %v1502
  %v1533 = vpack.c.b16 %v1506, %v1503
  %v1534 = vpack.c.b16 %v1510, %v1507
  %v1535 = vpack.c.b16 %v1511, %v1508
  %v1536 = vpack.c.b16 %v1512, %v1509
  %1561 = vmatprep.subr.bf16.mxu0 %v1535
  %1562 = vmatpush1.bf16.msra.mxu0 %v1534
  %1563 = vmatprep.subr.bf16.mxu0 %v1532
  %1564 = vmatpush1.bf16.msra.mxu0 %v1531
  %1565 = vmatprep.subr.bf16.mxu0 %v1529
  %1566 = vmatpush1.bf16.msra.mxu0 %v1528
  %1567 = vmatprep.subr.bf16.mxu0 %v1526
  %1568 = vmatpush1.bf16.msra.mxu0 %v1525
  %1569 = vmatprep.subr.bf16.mxu0 %v1523
  %1570 = vmatpush1.bf16.msra.mxu0 %v1522
  %1571 = vmatprep.subr.bf16.mxu0 %v1520
  %1572 = vmatpush1.bf16.msra.mxu0 %v1519
  %1573 = vmatprep.subr.bf16.mxu0 %v1517
  %1574 = vmatpush1.bf16.msra.mxu0 %v1516
  %1575 = vmatprep.subr.bf16.mxu0 %v1514
  %1576 = vmatpush1.bf16.msra.mxu0 %v1513
  %1577 = vmatprep.subr.bf16.mxu0 0
  %1578 = vmatpush2.bf16.msra.mxu0 0
  %1579 = vmatprep.subr.bf16.mxu0 0
  %1580 = vmatpush2.bf16.msra.mxu0 0
  %1581 = vmatprep.subr.bf16.mxu0 0
  %1582 = vmatpush2.bf16.msra.mxu0 0
  %1583 = vmatprep.subr.bf16.mxu0 0
  %1584 = vmatpush2.bf16.msra.mxu0 0
  %1585 = vmatprep.subr.bf16.mxu0 0
  %1586 = vmatpush2.bf16.msra.mxu0 0
  %1587 = vmatprep.subr.bf16.mxu0 0
  %1588 = vmatpush2.bf16.msra.mxu0 0
  %1589 = vmatprep.subr.bf16.mxu0 0
  %1590 = vmatpush2.bf16.msra.mxu0 0
  %1591 = vmatprep.subr.bf16.mxu0 0
  %1592 = vmatpush2.bf16.msra.mxu0 0
  %1593 = vmatprep.mubr.bf16.mxu0 0
  %1594 = vmatmul.mubr.bf16.gmra.mxu0 %v1400
  %v1595 = vpop.f32.mrf.mxu0
  %v1596 = vadd.f32 0.0, %v1595
  %v1597 = vpop.f32.mrf.mxu0
  %v1598 = vadd.f32 0.0, %v1597
  %v1599 = vpop.f32.mrf.mxu0
  %v1600 = vpop.f32.mrf.mxu0
  %1601 = vdwg.mxu0
  %1602 = vmatprep.subr.bf16.mxu0 0
  %1603 = vmatpush1.bf16.msra.mxu0 %v1536
  %1604 = vmatprep.subr.bf16.mxu0 0
  %1605 = vmatpush1.bf16.msra.mxu0 %v1533
  %1606 = vmatprep.subr.bf16.mxu0 0
  %1607 = vmatpush1.bf16.msra.mxu0 %v1530
  %1608 = vmatprep.subr.bf16.mxu0 0
  %1609 = vmatpush1.bf16.msra.mxu0 %v1527
  %1610 = vmatprep.subr.bf16.mxu0 0
  %1611 = vmatpush1.bf16.msra.mxu0 %v1524
  %1612 = vmatprep.subr.bf16.mxu0 0
  %1613 = vmatpush1.bf16.msra.mxu0 %v1521
  %1614 = vmatprep.subr.bf16.mxu0 0
  %1615 = vmatpush1.bf16.msra.mxu0 %v1518
  %1616 = vmatprep.subr.bf16.mxu0 0
  %1617 = vmatpush1.bf16.msra.mxu0 %v1515
  %1618 = vmatprep.subr.bf16.mxu0 0
  %1619 = vmatpush2.bf16.msra.mxu0 0
  %1620 = vmatprep.subr.bf16.mxu0 0
  %1621 = vmatpush2.bf16.msra.mxu0 0
  %1622 = vmatprep.subr.bf16.mxu0 0
  %1623 = vmatpush2.bf16.msra.mxu0 0
  %1624 = vmatprep.subr.bf16.mxu0 0
  %1625 = vmatpush2.bf16.msra.mxu0 0
  %1626 = vmatprep.subr.bf16.mxu0 0
  %1627 = vmatpush2.bf16.msra.mxu0 0
  %1628 = vmatprep.subr.bf16.mxu0 0
  %1629 = vmatpush2.bf16.msra.mxu0 0
  %1630 = vmatprep.subr.bf16.mxu0 0
  %1631 = vmatpush2.bf16.msra.mxu0 0
  %1632 = vmatprep.subr.bf16.mxu0 0
  %1633 = vmatpush2.bf16.msra.mxu0 0
  %1634 = vmatprep.mubr.bf16.mxu0 0
  %1635 = vmatmul.mubr.bf16.gmra.mxu0 %v1400
  %v1636 = vpop.f32.mrf.mxu0
  %v1637 = vadd.f32 0.0, %v1636
  %v1638 = vpop.f32.mrf.mxu0
  %v1639 = vpop.f32.mrf.mxu0
  %v1640 = vpop.f32.mrf.mxu0
  %1641 = vdwg.mxu0
  %v1642 = vadd.f32 %v1397, %v1596
  %v1643 = vxor.u32 %v1642, 2147483648
  %v1644 = vmul.f32 %v1643, 1.442695
  %v1645 = vpow.pop %v1644
  %v1646 = vadd.f32 %v1645, 1.0
  %v1647 = vrcp.pop %v1646
  %v1648 = vmul.f32 1.0, %v1647
  %v1649 = vadd.f32 %v1398, %v1598
  %v1650 = vxor.u32 %v1649, 2147483648
  %v1651 = vmul.f32 %v1650, 1.442695
  %v1652 = vpow.pop %v1651
  %v1653 = vadd.f32 %v1652, 1.0
  %v1654 = vrcp.pop %v1653
  %v1655 = vmul.f32 1.0, %v1654
  %v1656 = vadd.f32 %v1637, %v570
  %v1657 = vmul.f32 %v1648, %v1656
  %v1658 = vadd.f32 %v1399, %v1657
  %v1659 = vtanh.pop %v1658
  %v1660 = vsub.f32 1.0, %v1655
  %v1661 = vmul.f32 %v1660, %v1659
  %v1662 = vmul.f32 %v1655, %v1123
  %v1663 = vadd.f32 %v1661, %v1662
  %s1664 = scalar_lea.vmem [#allocation3], 120
  %v1665 = vld [vmem:[%s1664] sm:$0xff]
  %v1666 = vld [vmem:[%s1664 + $0x8] sm:$0xff]
  %v1667 = vld [vmem:[%s1664 + $0x10] sm:$0xff]
  %v1668 = vpack.c.bf16 %v1391, %v1391
  %v1669 = vld [vmem:[%s7] sm:$0xff]
  %v1670 = vld [vmem:[%s7 + $0x8] sm:$0xf]
  %v1671 = vld [vmem:[%s7 + $0xc] sm:$0xff]
  %v1672 = vld [vmem:[%s7 + $0x14] sm:$0xf]
  %v1673 = vld [vmem:[%s7 + $0x18] sm:$0xff]
  %v1674 = vld [vmem:[%s7 + $0x20] sm:$0xf]
  %v1675 = vld [vmem:[%s7 + $0x24] sm:$0xff]
  %v1676 = vld [vmem:[%s7 + $0x2c] sm:$0xf]
  %v1677 = vld [vmem:[%s7 + $0x30] sm:$0xff]
  %v1678 = vld [vmem:[%s7 + $0x38] sm:$0xf]
  %v1679 = vld [vmem:[%s7 + $0x3c] sm:$0xff]
  %v1680 = vld [vmem:[%s7 + $0x44] sm:$0xf]
  %v1681 = vld [vmem:[%s7 + $0x48] sm:$0xff]
  %v1682 = vld [vmem:[%s7 + $0x50] sm:$0xf]
  %v1683 = vld [vmem:[%s7 + $0x54] sm:$0xff]
  %v1684 = vld [vmem:[%s7 + $0x5c] sm:$0xf]
  %v1685 = vld [vmem:[%s7 + $0x60] sm:$0xff]
  %v1686 = vld [vmem:[%s7 + $0x68] sm:$0xf]
  %v1687 = vld [vmem:[%s7 + $0x6c] sm:$0xff]
  %v1688 = vld [vmem:[%s7 + $0x74] sm:$0xf]
  %v1689 = vld [vmem:[%s7 + $0x78] sm:$0xff]
  %v1690 = vld [vmem:[%s7 + $0x80] sm:$0xf]
  %v1691 = vld [vmem:[%s7 + $0x84] sm:$0xff]
  %v1692 = vld [vmem:[%s7 + $0x8c] sm:$0xf]
  %v1693 = vld [vmem:[%s7 + $0x90] sm:$0xff]
  %v1694 = vld [vmem:[%s7 + $0x98] sm:$0xf]
  %v1695 = vld [vmem:[%s7 + $0x9c] sm:$0xff]
  %v1696 = vld [vmem:[%s7 + $0xa4] sm:$0xf]
  %v1697 = vld [vmem:[%s7 + $0xa8] sm:$0xff]
  %v1698 = vld [vmem:[%s7 + $0xb0] sm:$0xf]
  %v1699 = vld [vmem:[%s7 + $0xb4] sm:$0xff]
  %v1700 = vld [vmem:[%s7 + $0xbc] sm:$0xf]
  %v1733 = vunpack.c.l.b16 %v1669
  %v1734 = vunpack.c.h.b16 %v1669
  %v1735 = vunpack.c.l.b16 %v1670
  %v1736 = vunpack.c.l.b16 %v1671
  %v1737 = vunpack.c.h.b16 %v1671
  %v1738 = vunpack.c.l.b16 %v1672
  %v1739 = vunpack.c.l.b16 %v1673
  %v1740 = vunpack.c.h.b16 %v1673
  %v1741 = vunpack.c.l.b16 %v1674
  %v1742 = vunpack.c.l.b16 %v1675
  %v1743 = vunpack.c.h.b16 %v1675
  %v1744 = vunpack.c.l.b16 %v1676
  %v1745 = vunpack.c.l.b16 %v1677
  %v1746 = vunpack.c.h.b16 %v1677
  %v1747 = vunpack.c.l.b16 %v1678
  %v1748 = vunpack.c.l.b16 %v1679
  %v1749 = vunpack.c.h.b16 %v1679
  %v1750 = vunpack.c.l.b16 %v1680
  %v1751 = vunpack.c.l.b16 %v1681
  %v1752 = vunpack.c.h.b16 %v1681
  %v1753 = vunpack.c.l.b16 %v1682
  %v1754 = vunpack.c.l.b16 %v1683
  %v1755 = vunpack.c.h.b16 %v1683
  %v1756 = vunpack.c.l.b16 %v1684
  %v1757 = vunpack.c.l.b16 %v1685
  %v1758 = vunpack.c.h.b16 %v1685
  %v1759 = vunpack.c.l.b16 %v1686
  %v1760 = vunpack.c.l.b16 %v1687
  %v1761 = vunpack.c.h.b16 %v1687
  %v1762 = vunpack.c.l.b16 %v1688
  %v1763 = vunpack.c.l.b16 %v1689
  %v1764 = vunpack.c.h.b16 %v1689
  %v1765 = vunpack.c.l.b16 %v1690
  %v1766 = vunpack.c.l.b16 %v1691
  %v1767 = vunpack.c.h.b16 %v1691
  %v1768 = vunpack.c.l.b16 %v1692
  %v1769 = vunpack.c.l.b16 %v1693
  %v1770 = vunpack.c.h.b16 %v1693
  %v1771 = vunpack.c.l.b16 %v1694
  %v1772 = vunpack.c.l.b16 %v1695
  %v1773 = vunpack.c.h.b16 %v1695
  %v1774 = vunpack.c.l.b16 %v1696
  %v1775 = vunpack.c.l.b16 %v1697
  %v1776 = vunpack.c.h.b16 %v1697
  %v1777 = vunpack.c.l.b16 %v1698
  %v1778 = vunpack.c.l.b16 %v1699
  %v1779 = vunpack.c.h.b16 %v1699
  %v1780 = vunpack.c.l.b16 %v1700
  %v1781 = vpack.c.b16 %v1736, %v1733
  %v1782 = vpack.c.b16 %v1737, %v1734
  %v1783 = vpack.c.b16 %v1738, %v1735
  %v1784 = vpack.c.b16 %v1742, %v1739
  %v1785 = vpack.c.b16 %v1743, %v1740
  %v1786 = vpack.c.b16 %v1744, %v1741
  %v1787 = vpack.c.b16 %v1748, %v1745
  %v1788 = vpack.c.b16 %v1749, %v1746
  %v1789 = vpack.c.b16 %v1750, %v1747
  %v1790 = vpack.c.b16 %v1754, %v1751
  %v1791 = vpack.c.b16 %v1755, %v1752
  %v1792 = vpack.c.b16 %v1756, %v1753
  %v1793 = vpack.c.b16 %v1760, %v1757
  %v1794 = vpack.c.b16 %v1761, %v1758
  %v1795 = vpack.c.b16 %v1762, %v1759
  %v1796 = vpack.c.b16 %v1766, %v1763
  %v1797 = vpack.c.b16 %v1767, %v1764
  %v1798 = vpack.c.b16 %v1768, %v1765
  %v1799 = vpack.c.b16 %v1772, %v1769
  %v1800 = vpack.c.b16 %v1773, %v1770
  %v1801 = vpack.c.b16 %v1774, %v1771
  %v1802 = vpack.c.b16 %v1778, %v1775
  %v1803 = vpack.c.b16 %v1779, %v1776
  %v1804 = vpack.c.b16 %v1780, %v1777
  %1829 = vmatprep.subr.bf16.mxu0 %v1803
  %1830 = vmatpush1.bf16.msra.mxu0 %v1802
  %1831 = vmatprep.subr.bf16.mxu0 %v1800
  %1832 = vmatpush1.bf16.msra.mxu0 %v1799
  %1833 = vmatprep.subr.bf16.mxu0 %v1797
  %1834 = vmatpush1.bf16.msra.mxu0 %v1796
  %1835 = vmatprep.subr.bf16.mxu0 %v1794
  %1836 = vmatpush1.bf16.msra.mxu0 %v1793
  %1837 = vmatprep.subr.bf16.mxu0 %v1791
  %1838 = vmatpush1.bf16.msra.mxu0 %v1790
  %1839 = vmatprep.subr.bf16.mxu0 %v1788
  %1840 = vmatpush1.bf16.msra.mxu0 %v1787
  %1841 = vmatprep.subr.bf16.mxu0 %v1785
  %1842 = vmatpush1.bf16.msra.mxu0 %v1784
  %1843 = vmatprep.subr.bf16.mxu0 %v1782
  %1844 = vmatpush1.bf16.msra.mxu0 %v1781
  %1845 = vmatprep.subr.bf16.mxu0 0
  %1846 = vmatpush2.bf16.msra.mxu0 0
  %1847 = vmatprep.subr.bf16.mxu0 0
  %1848 = vmatpush2.bf16.msra.mxu0 0
  %1849 = vmatprep.subr.bf16.mxu0 0
  %1850 = vmatpush2.bf16.msra.mxu0 0
  %1851 = vmatprep.subr.bf16.mxu0 0
  %1852 = vmatpush2.bf16.msra.mxu0 0
  %1853 = vmatprep.subr.bf16.mxu0 0
  %1854 = vmatpush2.bf16.msra.mxu0 0
  %1855 = vmatprep.subr.bf16.mxu0 0
  %1856 = vmatpush2.bf16.msra.mxu0 0
  %1857 = vmatprep.subr.bf16.mxu0 0
  %1858 = vmatpush2.bf16.msra.mxu0 0
  %1859 = vmatprep.subr.bf16.mxu0 0
  %1860 = vmatpush2.bf16.msra.mxu0 0
  %1861 = vmatprep.mubr.bf16.mxu0 0
  %1862 = vmatmul.mubr.bf16.gmra.mxu0 %v1668
  %v1863 = vpop.f32.mrf.mxu0
  %v1864 = vadd.f32 0.0, %v1863
  %v1865 = vpop.f32.mrf.mxu0
  %v1866 = vadd.f32 0.0, %v1865
  %v1867 = vpop.f32.mrf.mxu0
  %v1868 = vpop.f32.mrf.mxu0
  %1869 = vdwg.mxu0
  %1870 = vmatprep.subr.bf16.mxu0 0
  %1871 = vmatpush1.bf16.msra.mxu0 %v1804
  %1872 = vmatprep.subr.bf16.mxu0 0
  %1873 = vmatpush1.bf16.msra.mxu0 %v1801
  %1874 = vmatprep.subr.bf16.mxu0 0
  %1875 = vmatpush1.bf16.msra.mxu0 %v1798
  %1876 = vmatprep.subr.bf16.mxu0 0
  %1877 = vmatpush1.bf16.msra.mxu0 %v1795
  %1878 = vmatprep.subr.bf16.mxu0 0
  %1879 = vmatpush1.bf16.msra.mxu0 %v1792
  %1880 = vmatprep.subr.bf16.mxu0 0
  %1881 = vmatpush1.bf16.msra.mxu0 %v1789
  %1882 = vmatprep.subr.bf16.mxu0 0
  %1883 = vmatpush1.bf16.msra.mxu0 %v1786
  %1884 = vmatprep.subr.bf16.mxu0 0
  %1885 = vmatpush1.bf16.msra.mxu0 %v1783
  %1886 = vmatprep.subr.bf16.mxu0 0
  %1887 = vmatpush2.bf16.msra.mxu0 0
  %1888 = vmatprep.subr.bf16.mxu0 0
  %1889 = vmatpush2.bf16.msra.mxu0 0
  %1890 = vmatprep.subr.bf16.mxu0 0
  %1891 = vmatpush2.bf16.msra.mxu0 0
  %1892 = vmatprep.subr.bf16.mxu0 0
  %1893 = vmatpush2.bf16.msra.mxu0 0
  %1894 = vmatprep.subr.bf16.mxu0 0
  %1895 = vmatpush2.bf16.msra.mxu0 0
  %1896 = vmatprep.subr.bf16.mxu0 0
  %1897 = vmatpush2.bf16.msra.mxu0 0
  %1898 = vmatprep.subr.bf16.mxu0 0
  %1899 = vmatpush2.bf16.msra.mxu0 0
  %1900 = vmatprep.subr.bf16.mxu0 0
  %1901 = vmatpush2.bf16.msra.mxu0 0
  %1902 = vmatprep.mubr.bf16.mxu0 0
  %1903 = vmatmul.mubr.bf16.gmra.mxu0 %v1668
  %v1904 = vpop.f32.mrf.mxu0
  %v1905 = vadd.f32 0.0, %v1904
  %v1906 = vpop.f32.mrf.mxu0
  %v1907 = vpop.f32.mrf.mxu0
  %v1908 = vpop.f32.mrf.mxu0
  %1909 = vdwg.mxu0
  %v1910 = vadd.f32 %v1665, %v1864
  %v1911 = vxor.u32 %v1910, 2147483648
  %v1912 = vmul.f32 %v1911, 1.442695
  %v1913 = vpow.pop %v1912
  %v1914 = vadd.f32 %v1913, 1.0
  %v1915 = vrcp.pop %v1914
  %v1916 = vmul.f32 1.0, %v1915
  %v1917 = vadd.f32 %v1666, %v1866
  %v1918 = vxor.u32 %v1917, 2147483648
  %v1919 = vmul.f32 %v1918, 1.442695
  %v1920 = vpow.pop %v1919
  %v1921 = vadd.f32 %v1920, 1.0
  %v1922 = vrcp.pop %v1921
  %v1923 = vmul.f32 1.0, %v1922
  %v1924 = vadd.f32 %v1905, %v843
  %v1925 = vmul.f32 %v1916, %v1924
  %v1926 = vadd.f32 %v1667, %v1925
  %v1927 = vtanh.pop %v1926
  %v1928 = vsub.f32 1.0, %v1923
  %v1929 = vmul.f32 %v1928, %v1927
  %v1930 = vmul.f32 %v1923, %v1391
  %v1931 = vadd.f32 %v1929, %v1930
  %s1932 = scalar_lea.vmem [#allocation4], 16
  %1933 = vst [vmem:[%s1932] sm:$0xff] %v1663
  %s1934 = scalar_lea.vmem [#allocation5], 40
  %1935 = vst [vmem:[%s1934] sm:$0xff] %v1931
  %s1936 = scalar_lea.vmem [#allocation2], 72
  %v1937 = vld [vmem:[%s1936] sm:$0xff]
  %v1938 = vld [vmem:[%s1936 + $0x8] sm:$0xff]
  %v1939 = vld [vmem:[%s1936 + $0x10] sm:$0xff]
  %v1940 = vpack.c.bf16 %v1663, %v1663
  %v1941 = vld [vmem:[%s3] sm:$0xff]
  %v1942 = vld [vmem:[%s3 + $0x8] sm:$0xf]
  %v1943 = vld [vmem:[%s3 + $0xc] sm:$0xff]
  %v1944 = vld [vmem:[%s3 + $0x14] sm:$0xf]
  %v1945 = vld [vmem:[%s3 + $0x18] sm:$0xff]
  %v1946 = vld [vmem:[%s3 + $0x20] sm:$0xf]
  %v1947 = vld [vmem:[%s3 + $0x24] sm:$0xff]
  %v1948 = vld [vmem:[%s3 + $0x2c] sm:$0xf]
  %v1949 = vld [vmem:[%s3 + $0x30] sm:$0xff]
  %v1950 = vld [vmem:[%s3 + $0x38] sm:$0xf]
  %v1951 = vld [vmem:[%s3 + $0x3c] sm:$0xff]
  %v1952 = vld [vmem:[%s3 + $0x44] sm:$0xf]
  %v1953 = vld [vmem:[%s3 + $0x48] sm:$0xff]
  %v1954 = vld [vmem:[%s3 + $0x50] sm:$0xf]
  %v1955 = vld [vmem:[%s3 + $0x54] sm:$0xff]
  %v1956 = vld [vmem:[%s3 + $0x5c] sm:$0xf]
  %v1957 = vld [vmem:[%s3 + $0x60] sm:$0xff]
  %v1958 = vld [vmem:[%s3 + $0x68] sm:$0xf]
  %v1959 = vld [vmem:[%s3 + $0x6c] sm:$0xff]
  %v1960 = vld [vmem:[%s3 + $0x74] sm:$0xf]
  %v1961 = vld [vmem:[%s3 + $0x78] sm:$0xff]
  %v1962 = vld [vmem:[%s3 + $0x80] sm:$0xf]
  %v1963 = vld [vmem:[%s3 + $0x84] sm:$0xff]
  %v1964 = vld [vmem:[%s3 + $0x8c] sm:$0xf]
  %v1965 = vld [vmem:[%s3 + $0x90] sm:$0xff]
  %v1966 = vld [vmem:[%s3 + $0x98] sm:$0xf]
  %v1967 = vld [vmem:[%s3 + $0x9c] sm:$0xff]
  %v1968 = vld [vmem:[%s3 + $0xa4] sm:$0xf]
  %v1969 = vld [vmem:[%s3 + $0xa8] sm:$0xff]
  %v1970 = vld [vmem:[%s3 + $0xb0] sm:$0xf]
  %v1971 = vld [vmem:[%s3 + $0xb4] sm:$0xff]
  %v1972 = vld [vmem:[%s3 + $0xbc] sm:$0xf]
  %v2005 = vunpack.c.l.b16 %v1941
  %v2006 = vunpack.c.h.b16 %v1941
  %v2007 = vunpack.c.l.b16 %v1942
  %v2008 = vunpack.c.l.b16 %v1943
  %v2009 = vunpack.c.h.b16 %v1943
  %v2010 = vunpack.c.l.b16 %v1944
  %v2011 = vunpack.c.l.b16 %v1945
  %v2012 = vunpack.c.h.b16 %v1945
  %v2013 = vunpack.c.l.b16 %v1946
  %v2014 = vunpack.c.l.b16 %v1947
  %v2015 = vunpack.c.h.b16 %v1947
  %v2016 = vunpack.c.l.b16 %v1948
  %v2017 = vunpack.c.l.b16 %v1949
  %v2018 = vunpack.c.h.b16 %v1949
  %v2019 = vunpack.c.l.b16 %v1950
  %v2020 = vunpack.c.l.b16 %v1951
  %v2021 = vunpack.c.h.b16 %v1951
  %v2022 = vunpack.c.l.b16 %v1952
  %v2023 = vunpack.c.l.b16 %v1953
  %v2024 = vunpack.c.h.b16 %v1953
  %v2025 = vunpack.c.l.b16 %v1954
  %v2026 = vunpack.c.l.b16 %v1955
  %v2027 = vunpack.c.h.b16 %v1955
  %v2028 = vunpack.c.l.b16 %v1956
  %v2029 = vunpack.c.l.b16 %v1957
  %v2030 = vunpack.c.h.b16 %v1957
  %v2031 = vunpack.c.l.b16 %v1958
  %v2032 = vunpack.c.l.b16 %v1959
  %v2033 = vunpack.c.h.b16 %v1959
  %v2034 = vunpack.c.l.b16 %v1960
  %v2035 = vunpack.c.l.b16 %v1961
  %v2036 = vunpack.c.h.b16 %v1961
  %v2037 = vunpack.c.l.b16 %v1962
  %v2038 = vunpack.c.l.b16 %v1963
  %v2039 = vunpack.c.h.b16 %v1963
  %v2040 = vunpack.c.l.b16 %v1964
  %v2041 = vunpack.c.l.b16 %v1965
  %v2042 = vunpack.c.h.b16 %v1965
  %v2043 = vunpack.c.l.b16 %v1966
  %v2044 = vunpack.c.l.b16 %v1967
  %v2045 = vunpack.c.h.b16 %v1967
  %v2046 = vunpack.c.l.b16 %v1968
  %v2047 = vunpack.c.l.b16 %v1969
  %v2048 = vunpack.c.h.b16 %v1969
  %v2049 = vunpack.c.l.b16 %v1970
  %v2050 = vunpack.c.l.b16 %v1971
  %v2051 = vunpack.c.h.b16 %v1971
  %v2052 = vunpack.c.l.b16 %v1972
  %v2053 = vpack.c.b16 %v2008, %v2005
  %v2054 = vpack.c.b16 %v2009, %v2006
  %v2055 = vpack.c.b16 %v2010, %v2007
  %v2056 = vpack.c.b16 %v2014, %v2011
  %v2057 = vpack.c.b16 %v2015, %v2012
  %v2058 = vpack.c.b16 %v2016, %v2013
  %v2059 = vpack.c.b16 %v2020, %v2017
  %v2060 = vpack.c.b16 %v2021, %v2018
  %v2061 = vpack.c.b16 %v2022, %v2019
  %v2062 = vpack.c.b16 %v2026, %v2023
  %v2063 = vpack.c.b16 %v2027, %v2024
  %v2064 = vpack.c.b16 %v2028, %v2025
  %v2065 = vpack.c.b16 %v2032, %v2029
  %v2066 = vpack.c.b16 %v2033, %v2030
  %v2067 = vpack.c.b16 %v2034, %v2031
  %v2068 = vpack.c.b16 %v2038, %v2035
  %v2069 = vpack.c.b16 %v2039, %v2036
  %v2070 = vpack.c.b16 %v2040, %v2037
  %v2071 = vpack.c.b16 %v2044, %v2041
  %v2072 = vpack.c.b16 %v2045, %v2042
  %v2073 = vpack.c.b16 %v2046, %v2043
  %v2074 = vpack.c.b16 %v2050, %v2047
  %v2075 = vpack.c.b16 %v2051, %v2048
  %v2076 = vpack.c.b16 %v2052, %v2049
  %2101 = vmatprep.subr.bf16.mxu0 %v2075
  %2102 = vmatpush1.bf16.msra.mxu0 %v2074
  %2103 = vmatprep.subr.bf16.mxu0 %v2072
  %2104 = vmatpush1.bf16.msra.mxu0 %v2071
  %2105 = vmatprep.subr.bf16.mxu0 %v2069
  %2106 = vmatpush1.bf16.msra.mxu0 %v2068
  %2107 = vmatprep.subr.bf16.mxu0 %v2066
  %2108 = vmatpush1.bf16.msra.mxu0 %v2065
  %2109 = vmatprep.subr.bf16.mxu0 %v2063
  %2110 = vmatpush1.bf16.msra.mxu0 %v2062
  %2111 = vmatprep.subr.bf16.mxu0 %v2060
  %2112 = vmatpush1.bf16.msra.mxu0 %v2059
  %2113 = vmatprep.subr.bf16.mxu0 %v2057
  %2114 = vmatpush1.bf16.msra.mxu0 %v2056
  %2115 = vmatprep.subr.bf16.mxu0 %v2054
  %2116 = vmatpush1.bf16.msra.mxu0 %v2053
  %2117 = vmatprep.subr.bf16.mxu0 0
  %2118 = vmatpush2.bf16.msra.mxu0 0
  %2119 = vmatprep.subr.bf16.mxu0 0
  %2120 = vmatpush2.bf16.msra.mxu0 0
  %2121 = vmatprep.subr.bf16.mxu0 0
  %2122 = vmatpush2.bf16.msra.mxu0 0
  %2123 = vmatprep.subr.bf16.mxu0 0
  %2124 = vmatpush2.bf16.msra.mxu0 0
  %2125 = vmatprep.subr.bf16.mxu0 0
  %2126 = vmatpush2.bf16.msra.mxu0 0
  %2127 = vmatprep.subr.bf16.mxu0 0
  %2128 = vmatpush2.bf16.msra.mxu0 0
  %2129 = vmatprep.subr.bf16.mxu0 0
  %2130 = vmatpush2.bf16.msra.mxu0 0
  %2131 = vmatprep.subr.bf16.mxu0 0
  %2132 = vmatpush2.bf16.msra.mxu0 0
  %2133 = vmatprep.mubr.bf16.mxu0 0
  %2134 = vmatmul.mubr.bf16.gmra.mxu0 %v1940
  %v2135 = vpop.f32.mrf.mxu0
  %v2136 = vadd.f32 0.0, %v2135
  %v2137 = vpop.f32.mrf.mxu0
  %v2138 = vadd.f32 0.0, %v2137
  %v2139 = vpop.f32.mrf.mxu0
  %v2140 = vpop.f32.mrf.mxu0
  %2141 = vdwg.mxu0
  %2142 = vmatprep.subr.bf16.mxu0 0
  %2143 = vmatpush1.bf16.msra.mxu0 %v2076
  %2144 = vmatprep.subr.bf16.mxu0 0
  %2145 = vmatpush1.bf16.msra.mxu0 %v2073
  %2146 = vmatprep.subr.bf16.mxu0 0
  %2147 = vmatpush1.bf16.msra.mxu0 %v2070
  %2148 = vmatprep.subr.bf16.mxu0 0
  %2149 = vmatpush1.bf16.msra.mxu0 %v2067
  %2150 = vmatprep.subr.bf16.mxu0 0
  %2151 = vmatpush1.bf16.msra.mxu0 %v2064
  %2152 = vmatprep.subr.bf16.mxu0 0
  %2153 = vmatpush1.bf16.msra.mxu0 %v2061
  %2154 = vmatprep.subr.bf16.mxu0 0
  %2155 = vmatpush1.bf16.msra.mxu0 %v2058
  %2156 = vmatprep.subr.bf16.mxu0 0
  %2157 = vmatpush1.bf16.msra.mxu0 %v2055
  %2158 = vmatprep.subr.bf16.mxu0 0
  %2159 = vmatpush2.bf16.msra.mxu0 0
  %2160 = vmatprep.subr.bf16.mxu0 0
  %2161 = vmatpush2.bf16.msra.mxu0 0
  %2162 = vmatprep.subr.bf16.mxu0 0
  %2163 = vmatpush2.bf16.msra.mxu0 0
  %2164 = vmatprep.subr.bf16.mxu0 0
  %2165 = vmatpush2.bf16.msra.mxu0 0
  %2166 = vmatprep.subr.bf16.mxu0 0
  %2167 = vmatpush2.bf16.msra.mxu0 0
  %2168 = vmatprep.subr.bf16.mxu0 0
  %2169 = vmatpush2.bf16.msra.mxu0 0
  %2170 = vmatprep.subr.bf16.mxu0 0
  %2171 = vmatpush2.bf16.msra.mxu0 0
  %2172 = vmatprep.subr.bf16.mxu0 0
  %2173 = vmatpush2.bf16.msra.mxu0 0
  %2174 = vmatprep.mubr.bf16.mxu0 0
  %2175 = vmatmul.mubr.bf16.gmra.mxu0 %v1940
  %v2176 = vpop.f32.mrf.mxu0
  %v2177 = vadd.f32 0.0, %v2176
  %v2178 = vpop.f32.mrf.mxu0
  %v2179 = vpop.f32.mrf.mxu0
  %v2180 = vpop.f32.mrf.mxu0
  %2181 = vdwg.mxu0
  %v2182 = vadd.f32 %v1937, %v2136
  %v2183 = vxor.u32 %v2182, 2147483648
  %v2184 = vmul.f32 %v2183, 1.442695
  %v2185 = vpow.pop %v2184
  %v2186 = vadd.f32 %v2185, 1.0
  %v2187 = vrcp.pop %v2186
  %v2188 = vmul.f32 1.0, %v2187
  %v2189 = vadd.f32 %v1938, %v2138
  %v2190 = vxor.u32 %v2189, 2147483648
  %v2191 = vmul.f32 %v2190, 1.442695
  %v2192 = vpow.pop %v2191
  %v2193 = vadd.f32 %v2192, 1.0
  %v2194 = vrcp.pop %v2193
  %v2195 = vmul.f32 1.0, %v2194
  %v2196 = vadd.f32 %v2177, %v570
  %v2197 = vmul.f32 %v2188, %v2196
  %v2198 = vadd.f32 %v1939, %v2197
  %v2199 = vtanh.pop %v2198
  %v2200 = vsub.f32 1.0, %v2195
  %v2201 = vmul.f32 %v2200, %v2199
  %v2202 = vmul.f32 %v2195, %v1663
  %v2203 = vadd.f32 %v2201, %v2202
  %s2204 = scalar_lea.vmem [#allocation3], 96
  %v2205 = vld [vmem:[%s2204] sm:$0xff]
  %v2206 = vld [vmem:[%s2204 + $0x8] sm:$0xff]
  %v2207 = vld [vmem:[%s2204 + $0x10] sm:$0xff]
  %v2208 = vpack.c.bf16 %v1931, %v1931
  %v2209 = vld [vmem:[%s7] sm:$0xff]
  %v2210 = vld [vmem:[%s7 + $0x8] sm:$0xf]
  %v2211 = vld [vmem:[%s7 + $0xc] sm:$0xff]
  %v2212 = vld [vmem:[%s7 + $0x14] sm:$0xf]
  %v2213 = vld [vmem:[%s7 + $0x18] sm:$0xff]
  %v2214 = vld [vmem:[%s7 + $0x20] sm:$0xf]
  %v2215 = vld [vmem:[%s7 + $0x24] sm:$0xff]
  %v2216 = vld [vmem:[%s7 + $0x2c] sm:$0xf]
  %v2217 = vld [vmem:[%s7 + $0x30] sm:$0xff]
  %v2218 = vld [vmem:[%s7 + $0x38] sm:$0xf]
  %v2219 = vld [vmem:[%s7 + $0x3c] sm:$0xff]
  %v2220 = vld [vmem:[%s7 + $0x44] sm:$0xf]
  %v2221 = vld [vmem:[%s7 + $0x48] sm:$0xff]
  %v2222 = vld [vmem:[%s7 + $0x50] sm:$0xf]
  %v2223 = vld [vmem:[%s7 + $0x54] sm:$0xff]
  %v2224 = vld [vmem:[%s7 + $0x5c] sm:$0xf]
  %v2225 = vld [vmem:[%s7 + $0x60] sm:$0xff]
  %v2226 = vld [vmem:[%s7 + $0x68] sm:$0xf]
  %v2227 = vld [vmem:[%s7 + $0x6c] sm:$0xff]
  %v2228 = vld [vmem:[%s7 + $0x74] sm:$0xf]
  %v2229 = vld [vmem:[%s7 + $0x78] sm:$0xff]
  %v2230 = vld [vmem:[%s7 + $0x80] sm:$0xf]
  %v2231 = vld [vmem:[%s7 + $0x84] sm:$0xff]
  %v2232 = vld [vmem:[%s7 + $0x8c] sm:$0xf]
  %v2233 = vld [vmem:[%s7 + $0x90] sm:$0xff]
  %v2234 = vld [vmem:[%s7 + $0x98] sm:$0xf]
  %v2235 = vld [vmem:[%s7 + $0x9c] sm:$0xff]
  %v2236 = vld [vmem:[%s7 + $0xa4] sm:$0xf]
  %v2237 = vld [vmem:[%s7 + $0xa8] sm:$0xff]
  %v2238 = vld [vmem:[%s7 + $0xb0] sm:$0xf]
  %v2239 = vld [vmem:[%s7 + $0xb4] sm:$0xff]
  %v2240 = vld [vmem:[%s7 + $0xbc] sm:$0xf]
  %v2273 = vunpack.c.l.b16 %v2209
  %v2274 = vunpack.c.h.b16 %v2209
  %v2275 = vunpack.c.l.b16 %v2210
  %v2276 = vunpack.c.l.b16 %v2211
  %v2277 = vunpack.c.h.b16 %v2211
  %v2278 = vunpack.c.l.b16 %v2212
  %v2279 = vunpack.c.l.b16 %v2213
  %v2280 = vunpack.c.h.b16 %v2213
  %v2281 = vunpack.c.l.b16 %v2214
  %v2282 = vunpack.c.l.b16 %v2215
  %v2283 = vunpack.c.h.b16 %v2215
  %v2284 = vunpack.c.l.b16 %v2216
  %v2285 = vunpack.c.l.b16 %v2217
  %v2286 = vunpack.c.h.b16 %v2217
  %v2287 = vunpack.c.l.b16 %v2218
  %v2288 = vunpack.c.l.b16 %v2219
  %v2289 = vunpack.c.h.b16 %v2219
  %v2290 = vunpack.c.l.b16 %v2220
  %v2291 = vunpack.c.l.b16 %v2221
  %v2292 = vunpack.c.h.b16 %v2221
  %v2293 = vunpack.c.l.b16 %v2222
  %v2294 = vunpack.c.l.b16 %v2223
  %v2295 = vunpack.c.h.b16 %v2223
  %v2296 = vunpack.c.l.b16 %v2224
  %v2297 = vunpack.c.l.b16 %v2225
  %v2298 = vunpack.c.h.b16 %v2225
  %v2299 = vunpack.c.l.b16 %v2226
  %v2300 = vunpack.c.l.b16 %v2227
  %v2301 = vunpack.c.h.b16 %v2227
  %v2302 = vunpack.c.l.b16 %v2228
  %v2303 = vunpack.c.l.b16 %v2229
  %v2304 = vunpack.c.h.b16 %v2229
  %v2305 = vunpack.c.l.b16 %v2230
  %v2306 = vunpack.c.l.b16 %v2231
  %v2307 = vunpack.c.h.b16 %v2231
  %v2308 = vunpack.c.l.b16 %v2232
  %v2309 = vunpack.c.l.b16 %v2233
  %v2310 = vunpack.c.h.b16 %v2233
  %v2311 = vunpack.c.l.b16 %v2234
  %v2312 = vunpack.c.l.b16 %v2235
  %v2313 = vunpack.c.h.b16 %v2235
  %v2314 = vunpack.c.l.b16 %v2236
  %v2315 = vunpack.c.l.b16 %v2237
  %v2316 = vunpack.c.h.b16 %v2237
  %v2317 = vunpack.c.l.b16 %v2238
  %v2318 = vunpack.c.l.b16 %v2239
  %v2319 = vunpack.c.h.b16 %v2239
  %v2320 = vunpack.c.l.b16 %v2240
  %v2321 = vpack.c.b16 %v2276, %v2273
  %v2322 = vpack.c.b16 %v2277, %v2274
  %v2323 = vpack.c.b16 %v2278, %v2275
  %v2324 = vpack.c.b16 %v2282, %v2279
  %v2325 = vpack.c.b16 %v2283, %v2280
  %v2326 = vpack.c.b16 %v2284, %v2281
  %v2327 = vpack.c.b16 %v2288, %v2285
  %v2328 = vpack.c.b16 %v2289, %v2286
  %v2329 = vpack.c.b16 %v2290, %v2287
  %v2330 = vpack.c.b16 %v2294, %v2291
  %v2331 = vpack.c.b16 %v2295, %v2292
  %v2332 = vpack.c.b16 %v2296, %v2293
  %v2333 = vpack.c.b16 %v2300, %v2297
  %v2334 = vpack.c.b16 %v2301, %v2298
  %v2335 = vpack.c.b16 %v2302, %v2299
  %v2336 = vpack.c.b16 %v2306, %v2303
  %v2337 = vpack.c.b16 %v2307, %v2304
  %v2338 = vpack.c.b16 %v2308, %v2305
  %v2339 = vpack.c.b16 %v2312, %v2309
  %v2340 = vpack.c.b16 %v2313, %v2310
  %v2341 = vpack.c.b16 %v2314, %v2311
  %v2342 = vpack.c.b16 %v2318, %v2315
  %v2343 = vpack.c.b16 %v2319, %v2316
  %v2344 = vpack.c.b16 %v2320, %v2317
  %2369 = vmatprep.subr.bf16.mxu0 %v2343
  %2370 = vmatpush1.bf16.msra.mxu0 %v2342
  %2371 = vmatprep.subr.bf16.mxu0 %v2340
  %2372 = vmatpush1.bf16.msra.mxu0 %v2339
  %2373 = vmatprep.subr.bf16.mxu0 %v2337
  %2374 = vmatpush1.bf16.msra.mxu0 %v2336
  %2375 = vmatprep.subr.bf16.mxu0 %v2334
  %2376 = vmatpush1.bf16.msra.mxu0 %v2333
  %2377 = vmatprep.subr.bf16.mxu0 %v2331
  %2378 = vmatpush1.bf16.msra.mxu0 %v2330
  %2379 = vmatprep.subr.bf16.mxu0 %v2328
  %2380 = vmatpush1.bf16.msra.mxu0 %v2327
  %2381 = vmatprep.subr.bf16.mxu0 %v2325
  %2382 = vmatpush1.bf16.msra.mxu0 %v2324
  %2383 = vmatprep.subr.bf16.mxu0 %v2322
  %2384 = vmatpush1.bf16.msra.mxu0 %v2321
  %2385 = vmatprep.subr.bf16.mxu0 0
  %2386 = vmatpush2.bf16.msra.mxu0 0
  %2387 = vmatprep.subr.bf16.mxu0 0
  %2388 = vmatpush2.bf16.msra.mxu0 0
  %2389 = vmatprep.subr.bf16.mxu0 0
  %2390 = vmatpush2.bf16.msra.mxu0 0
  %2391 = vmatprep.subr.bf16.mxu0 0
  %2392 = vmatpush2.bf16.msra.mxu0 0
  %2393 = vmatprep.subr.bf16.mxu0 0
  %2394 = vmatpush2.bf16.msra.mxu0 0
  %2395 = vmatprep.subr.bf16.mxu0 0
  %2396 = vmatpush2.bf16.msra.mxu0 0
  %2397 = vmatprep.subr.bf16.mxu0 0
  %2398 = vmatpush2.bf16.msra.mxu0 0
  %2399 = vmatprep.subr.bf16.mxu0 0
  %2400 = vmatpush2.bf16.msra.mxu0 0
  %2401 = vmatprep.mubr.bf16.mxu0 0
  %2402 = vmatmul.mubr.bf16.gmra.mxu0 %v2208
  %v2403 = vpop.f32.mrf.mxu0
  %v2404 = vadd.f32 0.0, %v2403
  %v2405 = vpop.f32.mrf.mxu0
  %v2406 = vadd.f32 0.0, %v2405
  %v2407 = vpop.f32.mrf.mxu0
  %v2408 = vpop.f32.mrf.mxu0
  %2409 = vdwg.mxu0
  %2410 = vmatprep.subr.bf16.mxu0 0
  %2411 = vmatpush1.bf16.msra.mxu0 %v2344
  %2412 = vmatprep.subr.bf16.mxu0 0
  %2413 = vmatpush1.bf16.msra.mxu0 %v2341
  %2414 = vmatprep.subr.bf16.mxu0 0
  %2415 = vmatpush1.bf16.msra.mxu0 %v2338
  %2416 = vmatprep.subr.bf16.mxu0 0
  %2417 = vmatpush1.bf16.msra.mxu0 %v2335
  %2418 = vmatprep.subr.bf16.mxu0 0
  %2419 = vmatpush1.bf16.msra.mxu0 %v2332
  %2420 = vmatprep.subr.bf16.mxu0 0
  %2421 = vmatpush1.bf16.msra.mxu0 %v2329
  %2422 = vmatprep.subr.bf16.mxu0 0
  %2423 = vmatpush1.bf16.msra.mxu0 %v2326
  %2424 = vmatprep.subr.bf16.mxu0 0
  %2425 = vmatpush1.bf16.msra.mxu0 %v2323
  %2426 = vmatprep.subr.bf16.mxu0 0
  %2427 = vmatpush2.bf16.msra.mxu0 0
  %2428 = vmatprep.subr.bf16.mxu0 0
  %2429 = vmatpush2.bf16.msra.mxu0 0
  %2430 = vmatprep.subr.bf16.mxu0 0
  %2431 = vmatpush2.bf16.msra.mxu0 0
  %2432 = vmatprep.subr.bf16.mxu0 0
  %2433 = vmatpush2.bf16.msra.mxu0 0
  %2434 = vmatprep.subr.bf16.mxu0 0
  %2435 = vmatpush2.bf16.msra.mxu0 0
  %2436 = vmatprep.subr.bf16.mxu0 0
  %2437 = vmatpush2.bf16.msra.mxu0 0
  %2438 = vmatprep.subr.bf16.mxu0 0
  %2439 = vmatpush2.bf16.msra.mxu0 0
  %2440 = vmatprep.subr.bf16.mxu0 0
  %2441 = vmatpush2.bf16.msra.mxu0 0
  %2442 = vmatprep.mubr.bf16.mxu0 0
  %2443 = vmatmul.mubr.bf16.gmra.mxu0 %v2208
  %v2444 = vpop.f32.mrf.mxu0
  %v2445 = vadd.f32 0.0, %v2444
  %v2446 = vpop.f32.mrf.mxu0
  %v2447 = vpop.f32.mrf.mxu0
  %v2448 = vpop.f32.mrf.mxu0
  %2449 = vdwg.mxu0
  %v2450 = vadd.f32 %v2205, %v2404
  %v2451 = vxor.u32 %v2450, 2147483648
  %v2452 = vmul.f32 %v2451, 1.442695
  %v2453 = vpow.pop %v2452
  %v2454 = vadd.f32 %v2453, 1.0
  %v2455 = vrcp.pop %v2454
  %v2456 = vmul.f32 1.0, %v2455
  %v2457 = vadd.f32 %v2206, %v2406
  %v2458 = vxor.u32 %v2457, 2147483648
  %v2459 = vmul.f32 %v2458, 1.442695
  %v2460 = vpow.pop %v2459
  %v2461 = vadd.f32 %v2460, 1.0
  %v2462 = vrcp.pop %v2461
  %v2463 = vmul.f32 1.0, %v2462
  %v2464 = vadd.f32 %v2445, %v843
  %v2465 = vmul.f32 %v2456, %v2464
  %v2466 = vadd.f32 %v2207, %v2465
  %v2467 = vtanh.pop %v2466
  %v2468 = vsub.f32 1.0, %v2463
  %v2469 = vmul.f32 %v2468, %v2467
  %v2470 = vmul.f32 %v2463, %v1931
  %v2471 = vadd.f32 %v2469, %v2470
  %s2472 = scalar_lea.vmem [#allocation4], 24
  %2473 = vst [vmem:[%s2472] sm:$0xff] %v2203
  %s2474 = scalar_lea.vmem [#allocation5], 32
  %2475 = vst [vmem:[%s2474] sm:$0xff] %v2471
  %s2476 = scalar_lea.vmem [#allocation2], 96
  %v2477 = vld [vmem:[%s2476] sm:$0xff]
  %v2478 = vld [vmem:[%s2476 + $0x8] sm:$0xff]
  %v2479 = vld [vmem:[%s2476 + $0x10] sm:$0xff]
  %v2480 = vpack.c.bf16 %v2203, %v2203
  %v2481 = vld [vmem:[%s3] sm:$0xff]
  %v2482 = vld [vmem:[%s3 + $0x8] sm:$0xf]
  %v2483 = vld [vmem:[%s3 + $0xc] sm:$0xff]
  %v2484 = vld [vmem:[%s3 + $0x14] sm:$0xf]
  %v2485 = vld [vmem:[%s3 + $0x18] sm:$0xff]
  %v2486 = vld [vmem:[%s3 + $0x20] sm:$0xf]
  %v2487 = vld [vmem:[%s3 + $0x24] sm:$0xff]
  %v2488 = vld [vmem:[%s3 + $0x2c] sm:$0xf]
  %v2489 = vld [vmem:[%s3 + $0x30] sm:$0xff]
  %v2490 = vld [vmem:[%s3 + $0x38] sm:$0xf]
  %v2491 = vld [vmem:[%s3 + $0x3c] sm:$0xff]
  %v2492 = vld [vmem:[%s3 + $0x44] sm:$0xf]
  %v2493 = vld [vmem:[%s3 + $0x48] sm:$0xff]
  %v2494 = vld [vmem:[%s3 + $0x50] sm:$0xf]
  %v2495 = vld [vmem:[%s3 + $0x54] sm:$0xff]
  %v2496 = vld [vmem:[%s3 + $0x5c] sm:$0xf]
  %v2497 = vld [vmem:[%s3 + $0x60] sm:$0xff]
  %v2498 = vld [vmem:[%s3 + $0x68] sm:$0xf]
  %v2499 = vld [vmem:[%s3 + $0x6c] sm:$0xff]
  %v2500 = vld [vmem:[%s3 + $0x74] sm:$0xf]
  %v2501 = vld [vmem:[%s3 + $0x78] sm:$0xff]
  %v2502 = vld [vmem:[%s3 + $0x80] sm:$0xf]
  %v2503 = vld [vmem:[%s3 + $0x84] sm:$0xff]
  %v2504 = vld [vmem:[%s3 + $0x8c] sm:$0xf]
  %v2505 = vld [vmem:[%s3 + $0x90] sm:$0xff]
  %v2506 = vld [vmem:[%s3 + $0x98] sm:$0xf]
  %v2507 = vld [vmem:[%s3 + $0x9c] sm:$0xff]
  %v2508 = vld [vmem:[%s3 + $0xa4] sm:$0xf]
  %v2509 = vld [vmem:[%s3 + $0xa8] sm:$0xff]
  %v2510 = vld [vmem:[%s3 + $0xb0] sm:$0xf]
  %v2511 = vld [vmem:[%s3 + $0xb4] sm:$0xff]
  %v2512 = vld [vmem:[%s3 + $0xbc] sm:$0xf]
  %v2545 = vunpack.c.l.b16 %v2481
  %v2546 = vunpack.c.h.b16 %v2481
  %v2547 = vunpack.c.l.b16 %v2482
  %v2548 = vunpack.c.l.b16 %v2483
  %v2549 = vunpack.c.h.b16 %v2483
  %v2550 = vunpack.c.l.b16 %v2484
  %v2551 = vunpack.c.l.b16 %v2485
  %v2552 = vunpack.c.h.b16 %v2485
  %v2553 = vunpack.c.l.b16 %v2486
  %v2554 = vunpack.c.l.b16 %v2487
  %v2555 = vunpack.c.h.b16 %v2487
  %v2556 = vunpack.c.l.b16 %v2488
  %v2557 = vunpack.c.l.b16 %v2489
  %v2558 = vunpack.c.h.b16 %v2489
  %v2559 = vunpack.c.l.b16 %v2490
  %v2560 = vunpack.c.l.b16 %v2491
  %v2561 = vunpack.c.h.b16 %v2491
  %v2562 = vunpack.c.l.b16 %v2492
  %v2563 = vunpack.c.l.b16 %v2493
  %v2564 = vunpack.c.h.b16 %v2493
  %v2565 = vunpack.c.l.b16 %v2494
  %v2566 = vunpack.c.l.b16 %v2495
  %v2567 = vunpack.c.h.b16 %v2495
  %v2568 = vunpack.c.l.b16 %v2496
  %v2569 = vunpack.c.l.b16 %v2497
  %v2570 = vunpack.c.h.b16 %v2497
  %v2571 = vunpack.c.l.b16 %v2498
  %v2572 = vunpack.c.l.b16 %v2499
  %v2573 = vunpack.c.h.b16 %v2499
  %v2574 = vunpack.c.l.b16 %v2500
  %v2575 = vunpack.c.l.b16 %v2501
  %v2576 = vunpack.c.h.b16 %v2501
  %v2577 = vunpack.c.l.b16 %v2502
  %v2578 = vunpack.c.l.b16 %v2503
  %v2579 = vunpack.c.h.b16 %v2503
  %v2580 = vunpack.c.l.b16 %v2504
  %v2581 = vunpack.c.l.b16 %v2505
  %v2582 = vunpack.c.h.b16 %v2505
  %v2583 = vunpack.c.l.b16 %v2506
  %v2584 = vunpack.c.l.b16 %v2507
  %v2585 = vunpack.c.h.b16 %v2507
  %v2586 = vunpack.c.l.b16 %v2508
  %v2587 = vunpack.c.l.b16 %v2509
  %v2588 = vunpack.c.h.b16 %v2509
  %v2589 = vunpack.c.l.b16 %v2510
  %v2590 = vunpack.c.l.b16 %v2511
  %v2591 = vunpack.c.h.b16 %v2511
  %v2592 = vunpack.c.l.b16 %v2512
  %v2593 = vpack.c.b16 %v2548, %v2545
  %v2594 = vpack.c.b16 %v2549, %v2546
  %v2595 = vpack.c.b16 %v2550, %v2547
  %v2596 = vpack.c.b16 %v2554, %v2551
  %v2597 = vpack.c.b16 %v2555, %v2552
  %v2598 = vpack.c.b16 %v2556, %v2553
  %v2599 = vpack.c.b16 %v2560, %v2557
  %v2600 = vpack.c.b16 %v2561, %v2558
  %v2601 = vpack.c.b16 %v2562, %v2559
  %v2602 = vpack.c.b16 %v2566, %v2563
  %v2603 = vpack.c.b16 %v2567, %v2564
  %v2604 = vpack.c.b16 %v2568, %v2565
  %v2605 = vpack.c.b16 %v2572, %v2569
  %v2606 = vpack.c.b16 %v2573, %v2570
  %v2607 = vpack.c.b16 %v2574, %v2571
  %v2608 = vpack.c.b16 %v2578, %v2575
  %v2609 = vpack.c.b16 %v2579, %v2576
  %v2610 = vpack.c.b16 %v2580, %v2577
  %v2611 = vpack.c.b16 %v2584, %v2581
  %v2612 = vpack.c.b16 %v2585, %v2582
  %v2613 = vpack.c.b16 %v2586, %v2583
  %v2614 = vpack.c.b16 %v2590, %v2587
  %v2615 = vpack.c.b16 %v2591, %v2588
  %v2616 = vpack.c.b16 %v2592, %v2589
  %2641 = vmatprep.subr.bf16.mxu0 %v2615
  %2642 = vmatpush1.bf16.msra.mxu0 %v2614
  %2643 = vmatprep.subr.bf16.mxu0 %v2612
  %2644 = vmatpush1.bf16.msra.mxu0 %v2611
  %2645 = vmatprep.subr.bf16.mxu0 %v2609
  %2646 = vmatpush1.bf16.msra.mxu0 %v2608
  %2647 = vmatprep.subr.bf16.mxu0 %v2606
  %2648 = vmatpush1.bf16.msra.mxu0 %v2605
  %2649 = vmatprep.subr.bf16.mxu0 %v2603
  %2650 = vmatpush1.bf16.msra.mxu0 %v2602
  %2651 = vmatprep.subr.bf16.mxu0 %v2600
  %2652 = vmatpush1.bf16.msra.mxu0 %v2599
  %2653 = vmatprep.subr.bf16.mxu0 %v2597
  %2654 = vmatpush1.bf16.msra.mxu0 %v2596
  %2655 = vmatprep.subr.bf16.mxu0 %v2594
  %2656 = vmatpush1.bf16.msra.mxu0 %v2593
  %2657 = vmatprep.subr.bf16.mxu0 0
  %2658 = vmatpush2.bf16.msra.mxu0 0
  %2659 = vmatprep.subr.bf16.mxu0 0
  %2660 = vmatpush2.bf16.msra.mxu0 0
  %2661 = vmatprep.subr.bf16.mxu0 0
  %2662 = vmatpush2.bf16.msra.mxu0 0
  %2663 = vmatprep.subr.bf16.mxu0 0
  %2664 = vmatpush2.bf16.msra.mxu0 0
  %2665 = vmatprep.subr.bf16.mxu0 0
  %2666 = vmatpush2.bf16.msra.mxu0 0
  %2667 = vmatprep.subr.bf16.mxu0 0
  %2668 = vmatpush2.bf16.msra.mxu0 0
  %2669 = vmatprep.subr.bf16.mxu0 0
  %2670 = vmatpush2.bf16.msra.mxu0 0
  %2671 = vmatprep.subr.bf16.mxu0 0
  %2672 = vmatpush2.bf16.msra.mxu0 0
  %2673 = vmatprep.mubr.bf16.mxu0 0
  %2674 = vmatmul.mubr.bf16.gmra.mxu0 %v2480
  %v2675 = vpop.f32.mrf.mxu0
  %v2676 = vadd.f32 0.0, %v2675
  %v2677 = vpop.f32.mrf.mxu0
  %v2678 = vadd.f32 0.0, %v2677
  %v2679 = vpop.f32.mrf.mxu0
  %v2680 = vpop.f32.mrf.mxu0
  %2681 = vdwg.mxu0
  %2682 = vmatprep.subr.bf16.mxu0 0
  %2683 = vmatpush1.bf16.msra.mxu0 %v2616
  %2684 = vmatprep.subr.bf16.mxu0 0
  %2685 = vmatpush1.bf16.msra.mxu0 %v2613
  %2686 = vmatprep.subr.bf16.mxu0 0
  %2687 = vmatpush1.bf16.msra.mxu0 %v2610
  %2688 = vmatprep.subr.bf16.mxu0 0
  %2689 = vmatpush1.bf16.msra.mxu0 %v2607
  %2690 = vmatprep.subr.bf16.mxu0 0
  %2691 = vmatpush1.bf16.msra.mxu0 %v2604
  %2692 = vmatprep.subr.bf16.mxu0 0
  %2693 = vmatpush1.bf16.msra.mxu0 %v2601
  %2694 = vmatprep.subr.bf16.mxu0 0
  %2695 = vmatpush1.bf16.msra.mxu0 %v2598
  %2696 = vmatprep.subr.bf16.mxu0 0
  %2697 = vmatpush1.bf16.msra.mxu0 %v2595
  %2698 = vmatprep.subr.bf16.mxu0 0
  %2699 = vmatpush2.bf16.msra.mxu0 0
  %2700 = vmatprep.subr.bf16.mxu0 0
  %2701 = vmatpush2.bf16.msra.mxu0 0
  %2702 = vmatprep.subr.bf16.mxu0 0
  %2703 = vmatpush2.bf16.msra.mxu0 0
  %2704 = vmatprep.subr.bf16.mxu0 0
  %2705 = vmatpush2.bf16.msra.mxu0 0
  %2706 = vmatprep.subr.bf16.mxu0 0
  %2707 = vmatpush2.bf16.msra.mxu0 0
  %2708 = vmatprep.subr.bf16.mxu0 0
  %2709 = vmatpush2.bf16.msra.mxu0 0
  %2710 = vmatprep.subr.bf16.mxu0 0
  %2711 = vmatpush2.bf16.msra.mxu0 0
  %2712 = vmatprep.subr.bf16.mxu0 0
  %2713 = vmatpush2.bf16.msra.mxu0 0
  %2714 = vmatprep.mubr.bf16.mxu0 0
  %2715 = vmatmul.mubr.bf16.gmra.mxu0 %v2480
  %v2716 = vpop.f32.mrf.mxu0
  %v2717 = vadd.f32 0.0, %v2716
  %v2718 = vpop.f32.mrf.mxu0
  %v2719 = vpop.f32.mrf.mxu0
  %v2720 = vpop.f32.mrf.mxu0
  %2721 = vdwg.mxu0
  %v2722 = vadd.f32 %v2477, %v2676
  %v2723 = vxor.u32 %v2722, 2147483648
  %v2724 = vmul.f32 %v2723, 1.442695
  %v2725 = vpow.pop %v2724
  %v2726 = vadd.f32 %v2725, 1.0
  %v2727 = vrcp.pop %v2726
  %v2728 = vmul.f32 1.0, %v2727
  %v2729 = vadd.f32 %v2478, %v2678
  %v2730 = vxor.u32 %v2729, 2147483648
  %v2731 = vmul.f32 %v2730, 1.442695
  %v2732 = vpow.pop %v2731
  %v2733 = vadd.f32 %v2732, 1.0
  %v2734 = vrcp.pop %v2733
  %v2735 = vmul.f32 1.0, %v2734
  %v2736 = vadd.f32 %v2717, %v570
  %v2737 = vmul.f32 %v2728, %v2736
  %v2738 = vadd.f32 %v2479, %v2737
  %v2739 = vtanh.pop %v2738
  %v2740 = vsub.f32 1.0, %v2735
  %v2741 = vmul.f32 %v2740, %v2739
  %v2742 = vmul.f32 %v2735, %v2203
  %v2743 = vadd.f32 %v2741, %v2742
  %s2744 = scalar_lea.vmem [#allocation3], 72
  %v2745 = vld [vmem:[%s2744] sm:$0xff]
  %v2746 = vld [vmem:[%s2744 + $0x8] sm:$0xff]
  %v2747 = vld [vmem:[%s2744 + $0x10] sm:$0xff]
  %v2748 = vpack.c.bf16 %v2471, %v2471
  %v2749 = vld [vmem:[%s7] sm:$0xff]
  %v2750 = vld [vmem:[%s7 + $0x8] sm:$0xf]
  %v2751 = vld [vmem:[%s7 + $0xc] sm:$0xff]
  %v2752 = vld [vmem:[%s7 + $0x14] sm:$0xf]
  %v2753 = vld [vmem:[%s7 + $0x18] sm:$0xff]
  %v2754 = vld [vmem:[%s7 + $0x20] sm:$0xf]
  %v2755 = vld [vmem:[%s7 + $0x24] sm:$0xff]
  %v2756 = vld [vmem:[%s7 + $0x2c] sm:$0xf]
  %v2757 = vld [vmem:[%s7 + $0x30] sm:$0xff]
  %v2758 = vld [vmem:[%s7 + $0x38] sm:$0xf]
  %v2759 = vld [vmem:[%s7 + $0x3c] sm:$0xff]
  %v2760 = vld [vmem:[%s7 + $0x44] sm:$0xf]
  %v2761 = vld [vmem:[%s7 + $0x48] sm:$0xff]
  %v2762 = vld [vmem:[%s7 + $0x50] sm:$0xf]
  %v2763 = vld [vmem:[%s7 + $0x54] sm:$0xff]
  %v2764 = vld [vmem:[%s7 + $0x5c] sm:$0xf]
  %v2765 = vld [vmem:[%s7 + $0x60] sm:$0xff]
  %v2766 = vld [vmem:[%s7 + $0x68] sm:$0xf]
  %v2767 = vld [vmem:[%s7 + $0x6c] sm:$0xff]
  %v2768 = vld [vmem:[%s7 + $0x74] sm:$0xf]
  %v2769 = vld [vmem:[%s7 + $0x78] sm:$0xff]
  %v2770 = vld [vmem:[%s7 + $0x80] sm:$0xf]
  %v2771 = vld [vmem:[%s7 + $0x84] sm:$0xff]
  %v2772 = vld [vmem:[%s7 + $0x8c] sm:$0xf]
  %v2773 = vld [vmem:[%s7 + $0x90] sm:$0xff]
  %v2774 = vld [vmem:[%s7 + $0x98] sm:$0xf]
  %v2775 = vld [vmem:[%s7 + $0x9c] sm:$0xff]
  %v2776 = vld [vmem:[%s7 + $0xa4] sm:$0xf]
  %v2777 = vld [vmem:[%s7 + $0xa8] sm:$0xff]
  %v2778 = vld [vmem:[%s7 + $0xb0] sm:$0xf]
  %v2779 = vld [vmem:[%s7 + $0xb4] sm:$0xff]
  %v2780 = vld [vmem:[%s7 + $0xbc] sm:$0xf]
  %v2813 = vunpack.c.l.b16 %v2749
  %v2814 = vunpack.c.h.b16 %v2749
  %v2815 = vunpack.c.l.b16 %v2750
  %v2816 = vunpack.c.l.b16 %v2751
  %v2817 = vunpack.c.h.b16 %v2751
  %v2818 = vunpack.c.l.b16 %v2752
  %v2819 = vunpack.c.l.b16 %v2753
  %v2820 = vunpack.c.h.b16 %v2753
  %v2821 = vunpack.c.l.b16 %v2754
  %v2822 = vunpack.c.l.b16 %v2755
  %v2823 = vunpack.c.h.b16 %v2755
  %v2824 = vunpack.c.l.b16 %v2756
  %v2825 = vunpack.c.l.b16 %v2757
  %v2826 = vunpack.c.h.b16 %v2757
  %v2827 = vunpack.c.l.b16 %v2758
  %v2828 = vunpack.c.l.b16 %v2759
  %v2829 = vunpack.c.h.b16 %v2759
  %v2830 = vunpack.c.l.b16 %v2760
  %v2831 = vunpack.c.l.b16 %v2761
  %v2832 = vunpack.c.h.b16 %v2761
  %v2833 = vunpack.c.l.b16 %v2762
  %v2834 = vunpack.c.l.b16 %v2763
  %v2835 = vunpack.c.h.b16 %v2763
  %v2836 = vunpack.c.l.b16 %v2764
  %v2837 = vunpack.c.l.b16 %v2765
  %v2838 = vunpack.c.h.b16 %v2765
  %v2839 = vunpack.c.l.b16 %v2766
  %v2840 = vunpack.c.l.b16 %v2767
  %v2841 = vunpack.c.h.b16 %v2767
  %v2842 = vunpack.c.l.b16 %v2768
  %v2843 = vunpack.c.l.b16 %v2769
  %v2844 = vunpack.c.h.b16 %v2769
  %v2845 = vunpack.c.l.b16 %v2770
  %v2846 = vunpack.c.l.b16 %v2771
  %v2847 = vunpack.c.h.b16 %v2771
  %v2848 = vunpack.c.l.b16 %v2772
  %v2849 = vunpack.c.l.b16 %v2773
  %v2850 = vunpack.c.h.b16 %v2773
  %v2851 = vunpack.c.l.b16 %v2774
  %v2852 = vunpack.c.l.b16 %v2775
  %v2853 = vunpack.c.h.b16 %v2775
  %v2854 = vunpack.c.l.b16 %v2776
  %v2855 = vunpack.c.l.b16 %v2777
  %v2856 = vunpack.c.h.b16 %v2777
  %v2857 = vunpack.c.l.b16 %v2778
  %v2858 = vunpack.c.l.b16 %v2779
  %v2859 = vunpack.c.h.b16 %v2779
  %v2860 = vunpack.c.l.b16 %v2780
  %v2861 = vpack.c.b16 %v2816, %v2813
  %v2862 = vpack.c.b16 %v2817, %v2814
  %v2863 = vpack.c.b16 %v2818, %v2815
  %v2864 = vpack.c.b16 %v2822, %v2819
  %v2865 = vpack.c.b16 %v2823, %v2820
  %v2866 = vpack.c.b16 %v2824, %v2821
  %v2867 = vpack.c.b16 %v2828, %v2825
  %v2868 = vpack.c.b16 %v2829, %v2826
  %v2869 = vpack.c.b16 %v2830, %v2827
  %v2870 = vpack.c.b16 %v2834, %v2831
  %v2871 = vpack.c.b16 %v2835, %v2832
  %v2872 = vpack.c.b16 %v2836, %v2833
  %v2873 = vpack.c.b16 %v2840, %v2837
  %v2874 = vpack.c.b16 %v2841, %v2838
  %v2875 = vpack.c.b16 %v2842, %v2839
  %v2876 = vpack.c.b16 %v2846, %v2843
  %v2877 = vpack.c.b16 %v2847, %v2844
  %v2878 = vpack.c.b16 %v2848, %v2845
  %v2879 = vpack.c.b16 %v2852, %v2849
  %v2880 = vpack.c.b16 %v2853, %v2850
  %v2881 = vpack.c.b16 %v2854, %v2851
  %v2882 = vpack.c.b16 %v2858, %v2855
  %v2883 = vpack.c.b16 %v2859, %v2856
  %v2884 = vpack.c.b16 %v2860, %v2857
  %2909 = vmatprep.subr.bf16.mxu0 %v2883
  %2910 = vmatpush1.bf16.msra.mxu0 %v2882
  %2911 = vmatprep.subr.bf16.mxu0 %v2880
  %2912 = vmatpush1.bf16.msra.mxu0 %v2879
  %2913 = vmatprep.subr.bf16.mxu0 %v2877
  %2914 = vmatpush1.bf16.msra.mxu0 %v2876
  %2915 = vmatprep.subr.bf16.mxu0 %v2874
  %2916 = vmatpush1.bf16.msra.mxu0 %v2873
  %2917 = vmatprep.subr.bf16.mxu0 %v2871
  %2918 = vmatpush1.bf16.msra.mxu0 %v2870
  %2919 = vmatprep.subr.bf16.mxu0 %v2868
  %2920 = vmatpush1.bf16.msra.mxu0 %v2867
  %2921 = vmatprep.subr.bf16.mxu0 %v2865
  %2922 = vmatpush1.bf16.msra.mxu0 %v2864
  %2923 = vmatprep.subr.bf16.mxu0 %v2862
  %2924 = vmatpush1.bf16.msra.mxu0 %v2861
  %2925 = vmatprep.subr.bf16.mxu0 0
  %2926 = vmatpush2.bf16.msra.mxu0 0
  %2927 = vmatprep.subr.bf16.mxu0 0
  %2928 = vmatpush2.bf16.msra.mxu0 0
  %2929 = vmatprep.subr.bf16.mxu0 0
  %2930 = vmatpush2.bf16.msra.mxu0 0
  %2931 = vmatprep.subr.bf16.mxu0 0
  %2932 = vmatpush2.bf16.msra.mxu0 0
  %2933 = vmatprep.subr.bf16.mxu0 0
  %2934 = vmatpush2.bf16.msra.mxu0 0
  %2935 = vmatprep.subr.bf16.mxu0 0
  %2936 = vmatpush2.bf16.msra.mxu0 0
  %2937 = vmatprep.subr.bf16.mxu0 0
  %2938 = vmatpush2.bf16.msra.mxu0 0
  %2939 = vmatprep.subr.bf16.mxu0 0
  %2940 = vmatpush2.bf16.msra.mxu0 0
  %2941 = vmatprep.mubr.bf16.mxu0 0
  %2942 = vmatmul.mubr.bf16.gmra.mxu0 %v2748
  %v2943 = vpop.f32.mrf.mxu0
  %v2944 = vadd.f32 0.0, %v2943
  %v2945 = vpop.f32.mrf.mxu0
  %v2946 = vadd.f32 0.0, %v2945
  %v2947 = vpop.f32.mrf.mxu0
  %v2948 = vpop.f32.mrf.mxu0
  %2949 = vdwg.mxu0
  %2950 = vmatprep.subr.bf16.mxu0 0
  %2951 = vmatpush1.bf16.msra.mxu0 %v2884
  %2952 = vmatprep.subr.bf16.mxu0 0
  %2953 = vmatpush1.bf16.msra.mxu0 %v2881
  %2954 = vmatprep.subr.bf16.mxu0 0
  %2955 = vmatpush1.bf16.msra.mxu0 %v2878
  %2956 = vmatprep.subr.bf16.mxu0 0
  %2957 = vmatpush1.bf16.msra.mxu0 %v2875
  %2958 = vmatprep.subr.bf16.mxu0 0
  %2959 = vmatpush1.bf16.msra.mxu0 %v2872
  %2960 = vmatprep.subr.bf16.mxu0 0
  %2961 = vmatpush1.bf16.msra.mxu0 %v2869
  %2962 = vmatprep.subr.bf16.mxu0 0
  %2963 = vmatpush1.bf16.msra.mxu0 %v2866
  %2964 = vmatprep.subr.bf16.mxu0 0
  %2965 = vmatpush1.bf16.msra.mxu0 %v2863
  %2966 = vmatprep.subr.bf16.mxu0 0
  %2967 = vmatpush2.bf16.msra.mxu0 0
  %2968 = vmatprep.subr.bf16.mxu0 0
  %2969 = vmatpush2.bf16.msra.mxu0 0
  %2970 = vmatprep.subr.bf16.mxu0 0
  %2971 = vmatpush2.bf16.msra.mxu0 0
  %2972 = vmatprep.subr.bf16.mxu0 0
  %2973 = vmatpush2.bf16.msra.mxu0 0
  %2974 = vmatprep.subr.bf16.mxu0 0
  %2975 = vmatpush2.bf16.msra.mxu0 0
  %2976 = vmatprep.subr.bf16.mxu0 0
  %2977 = vmatpush2.bf16.msra.mxu0 0
  %2978 = vmatprep.subr.bf16.mxu0 0
  %2979 = vmatpush2.bf16.msra.mxu0 0
  %2980 = vmatprep.subr.bf16.mxu0 0
  %2981 = vmatpush2.bf16.msra.mxu0 0
  %2982 = vmatprep.mubr.bf16.mxu0 0
  %2983 = vmatmul.mubr.bf16.gmra.mxu0 %v2748
  %v2984 = vpop.f32.mrf.mxu0
  %v2985 = vadd.f32 0.0, %v2984
  %v2986 = vpop.f32.mrf.mxu0
  %v2987 = vpop.f32.mrf.mxu0
  %v2988 = vpop.f32.mrf.mxu0
  %2989 = vdwg.mxu0
  %v2990 = vadd.f32 %v2745, %v2944
  %v2991 = vxor.u32 %v2990, 2147483648
  %v2992 = vmul.f32 %v2991, 1.442695
  %v2993 = vpow.pop %v2992
  %v2994 = vadd.f32 %v2993, 1.0
  %v2995 = vrcp.pop %v2994
  %v2996 = vmul.f32 1.0, %v2995
  %v2997 = vadd.f32 %v2746, %v2946
  %v2998 = vxor.u32 %v2997, 2147483648
  %v2999 = vmul.f32 %v2998, 1.442695
  %v3000 = vpow.pop %v2999
  %v3001 = vadd.f32 %v3000, 1.0
  %v3002 = vrcp.pop %v3001
  %v3003 = vmul.f32 1.0, %v3002
  %v3004 = vadd.f32 %v2985, %v843
  %v3005 = vmul.f32 %v2996, %v3004
  %v3006 = vadd.f32 %v2747, %v3005
  %v3007 = vtanh.pop %v3006
  %v3008 = vsub.f32 1.0, %v3003
  %v3009 = vmul.f32 %v3008, %v3007
  %v3010 = vmul.f32 %v3003, %v2471
  %v3011 = vadd.f32 %v3009, %v3010
  %s3012 = scalar_lea.vmem [#allocation4], 32
  %3013 = vst [vmem:[%s3012] sm:$0xff] %v2743
  %s3014 = scalar_lea.vmem [#allocation5], 24
  %3015 = vst [vmem:[%s3014] sm:$0xff] %v3011
  %s3016 = scalar_lea.vmem [#allocation2], 120
  %v3017 = vld [vmem:[%s3016] sm:$0xff]
  %v3018 = vld [vmem:[%s3016 + $0x8] sm:$0xff]
  %v3019 = vld [vmem:[%s3016 + $0x10] sm:$0xff]
  %v3020 = vpack.c.bf16 %v2743, %v2743
  %v3021 = vld [vmem:[%s3] sm:$0xff]
  %v3022 = vld [vmem:[%s3 + $0x8] sm:$0xf]
  %v3023 = vld [vmem:[%s3 + $0xc] sm:$0xff]
  %v3024 = vld [vmem:[%s3 + $0x14] sm:$0xf]
  %v3025 = vld [vmem:[%s3 + $0x18] sm:$0xff]
  %v3026 = vld [vmem:[%s3 + $0x20] sm:$0xf]
  %v3027 = vld [vmem:[%s3 + $0x24] sm:$0xff]
  %v3028 = vld [vmem:[%s3 + $0x2c] sm:$0xf]
  %v3029 = vld [vmem:[%s3 + $0x30] sm:$0xff]
  %v3030 = vld [vmem:[%s3 + $0x38] sm:$0xf]
  %v3031 = vld [vmem:[%s3 + $0x3c] sm:$0xff]
  %v3032 = vld [vmem:[%s3 + $0x44] sm:$0xf]
  %v3033 = vld [vmem:[%s3 + $0x48] sm:$0xff]
  %v3034 = vld [vmem:[%s3 + $0x50] sm:$0xf]
  %v3035 = vld [vmem:[%s3 + $0x54] sm:$0xff]
  %v3036 = vld [vmem:[%s3 + $0x5c] sm:$0xf]
  %v3037 = vld [vmem:[%s3 + $0x60] sm:$0xff]
  %v3038 = vld [vmem:[%s3 + $0x68] sm:$0xf]
  %v3039 = vld [vmem:[%s3 + $0x6c] sm:$0xff]
  %v3040 = vld [vmem:[%s3 + $0x74] sm:$0xf]
  %v3041 = vld [vmem:[%s3 + $0x78] sm:$0xff]
  %v3042 = vld [vmem:[%s3 + $0x80] sm:$0xf]
  %v3043 = vld [vmem:[%s3 + $0x84] sm:$0xff]
  %v3044 = vld [vmem:[%s3 + $0x8c] sm:$0xf]
  %v3045 = vld [vmem:[%s3 + $0x90] sm:$0xff]
  %v3046 = vld [vmem:[%s3 + $0x98] sm:$0xf]
  %v3047 = vld [vmem:[%s3 + $0x9c] sm:$0xff]
  %v3048 = vld [vmem:[%s3 + $0xa4] sm:$0xf]
  %v3049 = vld [vmem:[%s3 + $0xa8] sm:$0xff]
  %v3050 = vld [vmem:[%s3 + $0xb0] sm:$0xf]
  %v3051 = vld [vmem:[%s3 + $0xb4] sm:$0xff]
  %v3052 = vld [vmem:[%s3 + $0xbc] sm:$0xf]
  %v3085 = vunpack.c.l.b16 %v3021
  %v3086 = vunpack.c.h.b16 %v3021
  %v3087 = vunpack.c.l.b16 %v3022
  %v3088 = vunpack.c.l.b16 %v3023
  %v3089 = vunpack.c.h.b16 %v3023
  %v3090 = vunpack.c.l.b16 %v3024
  %v3091 = vunpack.c.l.b16 %v3025
  %v3092 = vunpack.c.h.b16 %v3025
  %v3093 = vunpack.c.l.b16 %v3026
  %v3094 = vunpack.c.l.b16 %v3027
  %v3095 = vunpack.c.h.b16 %v3027
  %v3096 = vunpack.c.l.b16 %v3028
  %v3097 = vunpack.c.l.b16 %v3029
  %v3098 = vunpack.c.h.b16 %v3029
  %v3099 = vunpack.c.l.b16 %v3030
  %v3100 = vunpack.c.l.b16 %v3031
  %v3101 = vunpack.c.h.b16 %v3031
  %v3102 = vunpack.c.l.b16 %v3032
  %v3103 = vunpack.c.l.b16 %v3033
  %v3104 = vunpack.c.h.b16 %v3033
  %v3105 = vunpack.c.l.b16 %v3034
  %v3106 = vunpack.c.l.b16 %v3035
  %v3107 = vunpack.c.h.b16 %v3035
  %v3108 = vunpack.c.l.b16 %v3036
  %v3109 = vunpack.c.l.b16 %v3037
  %v3110 = vunpack.c.h.b16 %v3037
  %v3111 = vunpack.c.l.b16 %v3038
  %v3112 = vunpack.c.l.b16 %v3039
  %v3113 = vunpack.c.h.b16 %v3039
  %v3114 = vunpack.c.l.b16 %v3040
  %v3115 = vunpack.c.l.b16 %v3041
  %v3116 = vunpack.c.h.b16 %v3041
  %v3117 = vunpack.c.l.b16 %v3042
  %v3118 = vunpack.c.l.b16 %v3043
  %v3119 = vunpack.c.h.b16 %v3043
  %v3120 = vunpack.c.l.b16 %v3044
  %v3121 = vunpack.c.l.b16 %v3045
  %v3122 = vunpack.c.h.b16 %v3045
  %v3123 = vunpack.c.l.b16 %v3046
  %v3124 = vunpack.c.l.b16 %v3047
  %v3125 = vunpack.c.h.b16 %v3047
  %v3126 = vunpack.c.l.b16 %v3048
  %v3127 = vunpack.c.l.b16 %v3049
  %v3128 = vunpack.c.h.b16 %v3049
  %v3129 = vunpack.c.l.b16 %v3050
  %v3130 = vunpack.c.l.b16 %v3051
  %v3131 = vunpack.c.h.b16 %v3051
  %v3132 = vunpack.c.l.b16 %v3052
  %v3133 = vpack.c.b16 %v3088, %v3085
  %v3134 = vpack.c.b16 %v3089, %v3086
  %v3135 = vpack.c.b16 %v3090, %v3087
  %v3136 = vpack.c.b16 %v3094, %v3091
  %v3137 = vpack.c.b16 %v3095, %v3092
  %v3138 = vpack.c.b16 %v3096, %v3093
  %v3139 = vpack.c.b16 %v3100, %v3097
  %v3140 = vpack.c.b16 %v3101, %v3098
  %v3141 = vpack.c.b16 %v3102, %v3099
  %v3142 = vpack.c.b16 %v3106, %v3103
  %v3143 = vpack.c.b16 %v3107, %v3104
  %v3144 = vpack.c.b16 %v3108, %v3105
  %v3145 = vpack.c.b16 %v3112, %v3109
  %v3146 = vpack.c.b16 %v3113, %v3110
  %v3147 = vpack.c.b16 %v3114, %v3111
  %v3148 = vpack.c.b16 %v3118, %v3115
  %v3149 = vpack.c.b16 %v3119, %v3116
  %v3150 = vpack.c.b16 %v3120, %v3117
  %v3151 = vpack.c.b16 %v3124, %v3121
  %v3152 = vpack.c.b16 %v3125, %v3122
  %v3153 = vpack.c.b16 %v3126, %v3123
  %v3154 = vpack.c.b16 %v3130, %v3127
  %v3155 = vpack.c.b16 %v3131, %v3128
  %v3156 = vpack.c.b16 %v3132, %v3129
  %3181 = vmatprep.subr.bf16.mxu0 %v3155
  %3182 = vmatpush1.bf16.msra.mxu0 %v3154
  %3183 = vmatprep.subr.bf16.mxu0 %v3152
  %3184 = vmatpush1.bf16.msra.mxu0 %v3151
  %3185 = vmatprep.subr.bf16.mxu0 %v3149
  %3186 = vmatpush1.bf16.msra.mxu0 %v3148
  %3187 = vmatprep.subr.bf16.mxu0 %v3146
  %3188 = vmatpush1.bf16.msra.mxu0 %v3145
  %3189 = vmatprep.subr.bf16.mxu0 %v3143
  %3190 = vmatpush1.bf16.msra.mxu0 %v3142
  %3191 = vmatprep.subr.bf16.mxu0 %v3140
  %3192 = vmatpush1.bf16.msra.mxu0 %v3139
  %3193 = vmatprep.subr.bf16.mxu0 %v3137
  %3194 = vmatpush1.bf16.msra.mxu0 %v3136
  %3195 = vmatprep.subr.bf16.mxu0 %v3134
  %3196 = vmatpush1.bf16.msra.mxu0 %v3133
  %3197 = vmatprep.subr.bf16.mxu0 0
  %3198 = vmatpush2.bf16.msra.mxu0 0
  %3199 = vmatprep.subr.bf16.mxu0 0
  %3200 = vmatpush2.bf16.msra.mxu0 0
  %3201 = vmatprep.subr.bf16.mxu0 0
  %3202 = vmatpush2.bf16.msra.mxu0 0
  %3203 = vmatprep.subr.bf16.mxu0 0
  %3204 = vmatpush2.bf16.msra.mxu0 0
  %3205 = vmatprep.subr.bf16.mxu0 0
  %3206 = vmatpush2.bf16.msra.mxu0 0
  %3207 = vmatprep.subr.bf16.mxu0 0
  %3208 = vmatpush2.bf16.msra.mxu0 0
  %3209 = vmatprep.subr.bf16.mxu0 0
  %3210 = vmatpush2.bf16.msra.mxu0 0
  %3211 = vmatprep.subr.bf16.mxu0 0
  %3212 = vmatpush2.bf16.msra.mxu0 0
  %3213 = vmatprep.mubr.bf16.mxu0 0
  %3214 = vmatmul.mubr.bf16.gmra.mxu0 %v3020
  %v3215 = vpop.f32.mrf.mxu0
  %v3216 = vadd.f32 0.0, %v3215
  %v3217 = vpop.f32.mrf.mxu0
  %v3218 = vadd.f32 0.0, %v3217
  %v3219 = vpop.f32.mrf.mxu0
  %v3220 = vpop.f32.mrf.mxu0
  %3221 = vdwg.mxu0
  %3222 = vmatprep.subr.bf16.mxu0 0
  %3223 = vmatpush1.bf16.msra.mxu0 %v3156
  %3224 = vmatprep.subr.bf16.mxu0 0
  %3225 = vmatpush1.bf16.msra.mxu0 %v3153
  %3226 = vmatprep.subr.bf16.mxu0 0
  %3227 = vmatpush1.bf16.msra.mxu0 %v3150
  %3228 = vmatprep.subr.bf16.mxu0 0
  %3229 = vmatpush1.bf16.msra.mxu0 %v3147
  %3230 = vmatprep.subr.bf16.mxu0 0
  %3231 = vmatpush1.bf16.msra.mxu0 %v3144
  %3232 = vmatprep.subr.bf16.mxu0 0
  %3233 = vmatpush1.bf16.msra.mxu0 %v3141
  %3234 = vmatprep.subr.bf16.mxu0 0
  %3235 = vmatpush1.bf16.msra.mxu0 %v3138
  %3236 = vmatprep.subr.bf16.mxu0 0
  %3237 = vmatpush1.bf16.msra.mxu0 %v3135
  %3238 = vmatprep.subr.bf16.mxu0 0
  %3239 = vmatpush2.bf16.msra.mxu0 0
  %3240 = vmatprep.subr.bf16.mxu0 0
  %3241 = vmatpush2.bf16.msra.mxu0 0
  %3242 = vmatprep.subr.bf16.mxu0 0
  %3243 = vmatpush2.bf16.msra.mxu0 0
  %3244 = vmatprep.subr.bf16.mxu0 0
  %3245 = vmatpush2.bf16.msra.mxu0 0
  %3246 = vmatprep.subr.bf16.mxu0 0
  %3247 = vmatpush2.bf16.msra.mxu0 0
  %3248 = vmatprep.subr.bf16.mxu0 0
  %3249 = vmatpush2.bf16.msra.mxu0 0
  %3250 = vmatprep.subr.bf16.mxu0 0
  %3251 = vmatpush2.bf16.msra.mxu0 0
  %3252 = vmatprep.subr.bf16.mxu0 0
  %3253 = vmatpush2.bf16.msra.mxu0 0
  %3254 = vmatprep.mubr.bf16.mxu0 0
  %3255 = vmatmul.mubr.bf16.gmra.mxu0 %v3020
  %v3256 = vpop.f32.mrf.mxu0
  %v3257 = vadd.f32 0.0, %v3256
  %v3258 = vpop.f32.mrf.mxu0
  %v3259 = vpop.f32.mrf.mxu0
  %v3260 = vpop.f32.mrf.mxu0
  %3261 = vdwg.mxu0
  %v3262 = vadd.f32 %v3017, %v3216
  %v3263 = vxor.u32 %v3262, 2147483648
  %v3264 = vmul.f32 %v3263, 1.442695
  %v3265 = vpow.pop %v3264
  %v3266 = vadd.f32 %v3265, 1.0
  %v3267 = vrcp.pop %v3266
  %v3268 = vmul.f32 1.0, %v3267
  %v3269 = vadd.f32 %v3018, %v3218
  %v3270 = vxor.u32 %v3269, 2147483648
  %v3271 = vmul.f32 %v3270, 1.442695
  %v3272 = vpow.pop %v3271
  %v3273 = vadd.f32 %v3272, 1.0
  %v3274 = vrcp.pop %v3273
  %v3275 = vmul.f32 1.0, %v3274
  %v3276 = vadd.f32 %v3257, %v570
  %v3277 = vmul.f32 %v3268, %v3276
  %v3278 = vadd.f32 %v3019, %v3277
  %v3279 = vtanh.pop %v3278
  %v3280 = vsub.f32 1.0, %v3275
  %v3281 = vmul.f32 %v3280, %v3279
  %v3282 = vmul.f32 %v3275, %v2743
  %v3283 = vadd.f32 %v3281, %v3282
  %s3284 = scalar_lea.vmem [#allocation3], 48
  %v3285 = vld [vmem:[%s3284] sm:$0xff]
  %v3286 = vld [vmem:[%s3284 + $0x8] sm:$0xff]
  %v3287 = vld [vmem:[%s3284 + $0x10] sm:$0xff]
  %v3288 = vpack.c.bf16 %v3011, %v3011
  %v3289 = vld [vmem:[%s7] sm:$0xff]
  %v3290 = vld [vmem:[%s7 + $0x8] sm:$0xf]
  %v3291 = vld [vmem:[%s7 + $0xc] sm:$0xff]
  %v3292 = vld [vmem:[%s7 + $0x14] sm:$0xf]
  %v3293 = vld [vmem:[%s7 + $0x18] sm:$0xff]
  %v3294 = vld [vmem:[%s7 + $0x20] sm:$0xf]
  %v3295 = vld [vmem:[%s7 + $0x24] sm:$0xff]
  %v3296 = vld [vmem:[%s7 + $0x2c] sm:$0xf]
  %v3297 = vld [vmem:[%s7 + $0x30] sm:$0xff]
  %v3298 = vld [vmem:[%s7 + $0x38] sm:$0xf]
  %v3299 = vld [vmem:[%s7 + $0x3c] sm:$0xff]
  %v3300 = vld [vmem:[%s7 + $0x44] sm:$0xf]
  %v3301 = vld [vmem:[%s7 + $0x48] sm:$0xff]
  %v3302 = vld [vmem:[%s7 + $0x50] sm:$0xf]
  %v3303 = vld [vmem:[%s7 + $0x54] sm:$0xff]
  %v3304 = vld [vmem:[%s7 + $0x5c] sm:$0xf]
  %v3305 = vld [vmem:[%s7 + $0x60] sm:$0xff]
  %v3306 = vld [vmem:[%s7 + $0x68] sm:$0xf]
  %v3307 = vld [vmem:[%s7 + $0x6c] sm:$0xff]
  %v3308 = vld [vmem:[%s7 + $0x74] sm:$0xf]
  %v3309 = vld [vmem:[%s7 + $0x78] sm:$0xff]
  %v3310 = vld [vmem:[%s7 + $0x80] sm:$0xf]
  %v3311 = vld [vmem:[%s7 + $0x84] sm:$0xff]
  %v3312 = vld [vmem:[%s7 + $0x8c] sm:$0xf]
  %v3313 = vld [vmem:[%s7 + $0x90] sm:$0xff]
  %v3314 = vld [vmem:[%s7 + $0x98] sm:$0xf]
  %v3315 = vld [vmem:[%s7 + $0x9c] sm:$0xff]
  %v3316 = vld [vmem:[%s7 + $0xa4] sm:$0xf]
  %v3317 = vld [vmem:[%s7 + $0xa8] sm:$0xff]
  %v3318 = vld [vmem:[%s7 + $0xb0] sm:$0xf]
  %v3319 = vld [vmem:[%s7 + $0xb4] sm:$0xff]
  %v3320 = vld [vmem:[%s7 + $0xbc] sm:$0xf]
  %v3353 = vunpack.c.l.b16 %v3289
  %v3354 = vunpack.c.h.b16 %v3289
  %v3355 = vunpack.c.l.b16 %v3290
  %v3356 = vunpack.c.l.b16 %v3291
  %v3357 = vunpack.c.h.b16 %v3291
  %v3358 = vunpack.c.l.b16 %v3292
  %v3359 = vunpack.c.l.b16 %v3293
  %v3360 = vunpack.c.h.b16 %v3293
  %v3361 = vunpack.c.l.b16 %v3294
  %v3362 = vunpack.c.l.b16 %v3295
  %v3363 = vunpack.c.h.b16 %v3295
  %v3364 = vunpack.c.l.b16 %v3296
  %v3365 = vunpack.c.l.b16 %v3297
  %v3366 = vunpack.c.h.b16 %v3297
  %v3367 = vunpack.c.l.b16 %v3298
  %v3368 = vunpack.c.l.b16 %v3299
  %v3369 = vunpack.c.h.b16 %v3299
  %v3370 = vunpack.c.l.b16 %v3300
  %v3371 = vunpack.c.l.b16 %v3301
  %v3372 = vunpack.c.h.b16 %v3301
  %v3373 = vunpack.c.l.b16 %v3302
  %v3374 = vunpack.c.l.b16 %v3303
  %v3375 = vunpack.c.h.b16 %v3303
  %v3376 = vunpack.c.l.b16 %v3304
  %v3377 = vunpack.c.l.b16 %v3305
  %v3378 = vunpack.c.h.b16 %v3305
  %v3379 = vunpack.c.l.b16 %v3306
  %v3380 = vunpack.c.l.b16 %v3307
  %v3381 = vunpack.c.h.b16 %v3307
  %v3382 = vunpack.c.l.b16 %v3308
  %v3383 = vunpack.c.l.b16 %v3309
  %v3384 = vunpack.c.h.b16 %v3309
  %v3385 = vunpack.c.l.b16 %v3310
  %v3386 = vunpack.c.l.b16 %v3311
  %v3387 = vunpack.c.h.b16 %v3311
  %v3388 = vunpack.c.l.b16 %v3312
  %v3389 = vunpack.c.l.b16 %v3313
  %v3390 = vunpack.c.h.b16 %v3313
  %v3391 = vunpack.c.l.b16 %v3314
  %v3392 = vunpack.c.l.b16 %v3315
  %v3393 = vunpack.c.h.b16 %v3315
  %v3394 = vunpack.c.l.b16 %v3316
  %v3395 = vunpack.c.l.b16 %v3317
  %v3396 = vunpack.c.h.b16 %v3317
  %v3397 = vunpack.c.l.b16 %v3318
  %v3398 = vunpack.c.l.b16 %v3319
  %v3399 = vunpack.c.h.b16 %v3319
  %v3400 = vunpack.c.l.b16 %v3320
  %v3401 = vpack.c.b16 %v3356, %v3353
  %v3402 = vpack.c.b16 %v3357, %v3354
  %v3403 = vpack.c.b16 %v3358, %v3355
  %v3404 = vpack.c.b16 %v3362, %v3359
  %v3405 = vpack.c.b16 %v3363, %v3360
  %v3406 = vpack.c.b16 %v3364, %v3361
  %v3407 = vpack.c.b16 %v3368, %v3365
  %v3408 = vpack.c.b16 %v3369, %v3366
  %v3409 = vpack.c.b16 %v3370, %v3367
  %v3410 = vpack.c.b16 %v3374, %v3371
  %v3411 = vpack.c.b16 %v3375, %v3372
  %v3412 = vpack.c.b16 %v3376, %v3373
  %v3413 = vpack.c.b16 %v3380, %v3377
  %v3414 = vpack.c.b16 %v3381, %v3378
  %v3415 = vpack.c.b16 %v3382, %v3379
  %v3416 = vpack.c.b16 %v3386, %v3383
  %v3417 = vpack.c.b16 %v3387, %v3384
  %v3418 = vpack.c.b16 %v3388, %v3385
  %v3419 = vpack.c.b16 %v3392, %v3389
  %v3420 = vpack.c.b16 %v3393, %v3390
  %v3421 = vpack.c.b16 %v3394, %v3391
  %v3422 = vpack.c.b16 %v3398, %v3395
  %v3423 = vpack.c.b16 %v3399, %v3396
  %v3424 = vpack.c.b16 %v3400, %v3397
  %3449 = vmatprep.subr.bf16.mxu0 %v3423
  %3450 = vmatpush1.bf16.msra.mxu0 %v3422
  %3451 = vmatprep.subr.bf16.mxu0 %v3420
  %3452 = vmatpush1.bf16.msra.mxu0 %v3419
  %3453 = vmatprep.subr.bf16.mxu0 %v3417
  %3454 = vmatpush1.bf16.msra.mxu0 %v3416
  %3455 = vmatprep.subr.bf16.mxu0 %v3414
  %3456 = vmatpush1.bf16.msra.mxu0 %v3413
  %3457 = vmatprep.subr.bf16.mxu0 %v3411
  %3458 = vmatpush1.bf16.msra.mxu0 %v3410
  %3459 = vmatprep.subr.bf16.mxu0 %v3408
  %3460 = vmatpush1.bf16.msra.mxu0 %v3407
  %3461 = vmatprep.subr.bf16.mxu0 %v3405
  %3462 = vmatpush1.bf16.msra.mxu0 %v3404
  %3463 = vmatprep.subr.bf16.mxu0 %v3402
  %3464 = vmatpush1.bf16.msra.mxu0 %v3401
  %3465 = vmatprep.subr.bf16.mxu0 0
  %3466 = vmatpush2.bf16.msra.mxu0 0
  %3467 = vmatprep.subr.bf16.mxu0 0
  %3468 = vmatpush2.bf16.msra.mxu0 0
  %3469 = vmatprep.subr.bf16.mxu0 0
  %3470 = vmatpush2.bf16.msra.mxu0 0
  %3471 = vmatprep.subr.bf16.mxu0 0
  %3472 = vmatpush2.bf16.msra.mxu0 0
  %3473 = vmatprep.subr.bf16.mxu0 0
  %3474 = vmatpush2.bf16.msra.mxu0 0
  %3475 = vmatprep.subr.bf16.mxu0 0
  %3476 = vmatpush2.bf16.msra.mxu0 0
  %3477 = vmatprep.subr.bf16.mxu0 0
  %3478 = vmatpush2.bf16.msra.mxu0 0
  %3479 = vmatprep.subr.bf16.mxu0 0
  %3480 = vmatpush2.bf16.msra.mxu0 0
  %3481 = vmatprep.mubr.bf16.mxu0 0
  %3482 = vmatmul.mubr.bf16.gmra.mxu0 %v3288
  %v3483 = vpop.f32.mrf.mxu0
  %v3484 = vadd.f32 0.0, %v3483
  %v3485 = vpop.f32.mrf.mxu0
  %v3486 = vadd.f32 0.0, %v3485
  %v3487 = vpop.f32.mrf.mxu0
  %v3488 = vpop.f32.mrf.mxu0
  %3489 = vdwg.mxu0
  %3490 = vmatprep.subr.bf16.mxu0 0
  %3491 = vmatpush1.bf16.msra.mxu0 %v3424
  %3492 = vmatprep.subr.bf16.mxu0 0
  %3493 = vmatpush1.bf16.msra.mxu0 %v3421
  %3494 = vmatprep.subr.bf16.mxu0 0
  %3495 = vmatpush1.bf16.msra.mxu0 %v3418
  %3496 = vmatprep.subr.bf16.mxu0 0
  %3497 = vmatpush1.bf16.msra.mxu0 %v3415
  %3498 = vmatprep.subr.bf16.mxu0 0
  %3499 = vmatpush1.bf16.msra.mxu0 %v3412
  %3500 = vmatprep.subr.bf16.mxu0 0
  %3501 = vmatpush1.bf16.msra.mxu0 %v3409
  %3502 = vmatprep.subr.bf16.mxu0 0
  %3503 = vmatpush1.bf16.msra.mxu0 %v3406
  %3504 = vmatprep.subr.bf16.mxu0 0
  %3505 = vmatpush1.bf16.msra.mxu0 %v3403
  %3506 = vmatprep.subr.bf16.mxu0 0
  %3507 = vmatpush2.bf16.msra.mxu0 0
  %3508 = vmatprep.subr.bf16.mxu0 0
  %3509 = vmatpush2.bf16.msra.mxu0 0
  %3510 = vmatprep.subr.bf16.mxu0 0
  %3511 = vmatpush2.bf16.msra.mxu0 0
  %3512 = vmatprep.subr.bf16.mxu0 0
  %3513 = vmatpush2.bf16.msra.mxu0 0
  %3514 = vmatprep.subr.bf16.mxu0 0
  %3515 = vmatpush2.bf16.msra.mxu0 0
  %3516 = vmatprep.subr.bf16.mxu0 0
  %3517 = vmatpush2.bf16.msra.mxu0 0
  %3518 = vmatprep.subr.bf16.mxu0 0
  %3519 = vmatpush2.bf16.msra.mxu0 0
  %3520 = vmatprep.subr.bf16.mxu0 0
  %3521 = vmatpush2.bf16.msra.mxu0 0
  %3522 = vmatprep.mubr.bf16.mxu0 0
  %3523 = vmatmul.mubr.bf16.gmra.mxu0 %v3288
  %v3524 = vpop.f32.mrf.mxu0
  %v3525 = vadd.f32 0.0, %v3524
  %v3526 = vpop.f32.mrf.mxu0
  %v3527 = vpop.f32.mrf.mxu0
  %v3528 = vpop.f32.mrf.mxu0
  %3529 = vdwg.mxu0
  %v3530 = vadd.f32 %v3285, %v3484
  %v3531 = vxor.u32 %v3530, 2147483648
  %v3532 = vmul.f32 %v3531, 1.442695
  %v3533 = vpow.pop %v3532
  %v3534 = vadd.f32 %v3533, 1.0
  %v3535 = vrcp.pop %v3534
  %v3536 = vmul.f32 1.0, %v3535
  %v3537 = vadd.f32 %v3286, %v3486
  %v3538 = vxor.u32 %v3537, 2147483648
  %v3539 = vmul.f32 %v3538, 1.442695
  %v3540 = vpow.pop %v3539
  %v3541 = vadd.f32 %v3540, 1.0
  %v3542 = vrcp.pop %v3541
  %v3543 = vmul.f32 1.0, %v3542
  %v3544 = vadd.f32 %v3525, %v843
  %v3545 = vmul.f32 %v3536, %v3544
  %v3546 = vadd.f32 %v3287, %v3545
  %v3547 = vtanh.pop %v3546
  %v3548 = vsub.f32 1.0, %v3543
  %v3549 = vmul.f32 %v3548, %v3547
  %v3550 = vmul.f32 %v3543, %v3011
  %v3551 = vadd.f32 %v3549, %v3550
  %s3552 = scalar_lea.vmem [#allocation4], 40
  %3553 = vst [vmem:[%s3552] sm:$0xff] %v3283
  %s3554 = scalar_lea.vmem [#allocation5], 16
  %3555 = vst [vmem:[%s3554] sm:$0xff] %v3551
  %s3556 = scalar_lea.vmem [#allocation2], 144
  %v3557 = vld [vmem:[%s3556] sm:$0xff]
  %v3558 = vld [vmem:[%s3556 + $0x8] sm:$0xff]
  %v3559 = vld [vmem:[%s3556 + $0x10] sm:$0xff]
  %v3560 = vpack.c.bf16 %v3283, %v3283
  %v3561 = vld [vmem:[%s3] sm:$0xff]
  %v3562 = vld [vmem:[%s3 + $0x8] sm:$0xf]
  %v3563 = vld [vmem:[%s3 + $0xc] sm:$0xff]
  %v3564 = vld [vmem:[%s3 + $0x14] sm:$0xf]
  %v3565 = vld [vmem:[%s3 + $0x18] sm:$0xff]
  %v3566 = vld [vmem:[%s3 + $0x20] sm:$0xf]
  %v3567 = vld [vmem:[%s3 + $0x24] sm:$0xff]
  %v3568 = vld [vmem:[%s3 + $0x2c] sm:$0xf]
  %v3569 = vld [vmem:[%s3 + $0x30] sm:$0xff]
  %v3570 = vld [vmem:[%s3 + $0x38] sm:$0xf]
  %v3571 = vld [vmem:[%s3 + $0x3c] sm:$0xff]
  %v3572 = vld [vmem:[%s3 + $0x44] sm:$0xf]
  %v3573 = vld [vmem:[%s3 + $0x48] sm:$0xff]
  %v3574 = vld [vmem:[%s3 + $0x50] sm:$0xf]
  %v3575 = vld [vmem:[%s3 + $0x54] sm:$0xff]
  %v3576 = vld [vmem:[%s3 + $0x5c] sm:$0xf]
  %v3577 = vld [vmem:[%s3 + $0x60] sm:$0xff]
  %v3578 = vld [vmem:[%s3 + $0x68] sm:$0xf]
  %v3579 = vld [vmem:[%s3 + $0x6c] sm:$0xff]
  %v3580 = vld [vmem:[%s3 + $0x74] sm:$0xf]
  %v3581 = vld [vmem:[%s3 + $0x78] sm:$0xff]
  %v3582 = vld [vmem:[%s3 + $0x80] sm:$0xf]
  %v3583 = vld [vmem:[%s3 + $0x84] sm:$0xff]
  %v3584 = vld [vmem:[%s3 + $0x8c] sm:$0xf]
  %v3585 = vld [vmem:[%s3 + $0x90] sm:$0xff]
  %v3586 = vld [vmem:[%s3 + $0x98] sm:$0xf]
  %v3587 = vld [vmem:[%s3 + $0x9c] sm:$0xff]
  %v3588 = vld [vmem:[%s3 + $0xa4] sm:$0xf]
  %v3589 = vld [vmem:[%s3 + $0xa8] sm:$0xff]
  %v3590 = vld [vmem:[%s3 + $0xb0] sm:$0xf]
  %v3591 = vld [vmem:[%s3 + $0xb4] sm:$0xff]
  %v3592 = vld [vmem:[%s3 + $0xbc] sm:$0xf]
  %v3625 = vunpack.c.l.b16 %v3561
  %v3626 = vunpack.c.h.b16 %v3561
  %v3627 = vunpack.c.l.b16 %v3562
  %v3628 = vunpack.c.l.b16 %v3563
  %v3629 = vunpack.c.h.b16 %v3563
  %v3630 = vunpack.c.l.b16 %v3564
  %v3631 = vunpack.c.l.b16 %v3565
  %v3632 = vunpack.c.h.b16 %v3565
  %v3633 = vunpack.c.l.b16 %v3566
  %v3634 = vunpack.c.l.b16 %v3567
  %v3635 = vunpack.c.h.b16 %v3567
  %v3636 = vunpack.c.l.b16 %v3568
  %v3637 = vunpack.c.l.b16 %v3569
  %v3638 = vunpack.c.h.b16 %v3569
  %v3639 = vunpack.c.l.b16 %v3570
  %v3640 = vunpack.c.l.b16 %v3571
  %v3641 = vunpack.c.h.b16 %v3571
  %v3642 = vunpack.c.l.b16 %v3572
  %v3643 = vunpack.c.l.b16 %v3573
  %v3644 = vunpack.c.h.b16 %v3573
  %v3645 = vunpack.c.l.b16 %v3574
  %v3646 = vunpack.c.l.b16 %v3575
  %v3647 = vunpack.c.h.b16 %v3575
  %v3648 = vunpack.c.l.b16 %v3576
  %v3649 = vunpack.c.l.b16 %v3577
  %v3650 = vunpack.c.h.b16 %v3577
  %v3651 = vunpack.c.l.b16 %v3578
  %v3652 = vunpack.c.l.b16 %v3579
  %v3653 = vunpack.c.h.b16 %v3579
  %v3654 = vunpack.c.l.b16 %v3580
  %v3655 = vunpack.c.l.b16 %v3581
  %v3656 = vunpack.c.h.b16 %v3581
  %v3657 = vunpack.c.l.b16 %v3582
  %v3658 = vunpack.c.l.b16 %v3583
  %v3659 = vunpack.c.h.b16 %v3583
  %v3660 = vunpack.c.l.b16 %v3584
  %v3661 = vunpack.c.l.b16 %v3585
  %v3662 = vunpack.c.h.b16 %v3585
  %v3663 = vunpack.c.l.b16 %v3586
  %v3664 = vunpack.c.l.b16 %v3587
  %v3665 = vunpack.c.h.b16 %v3587
  %v3666 = vunpack.c.l.b16 %v3588
  %v3667 = vunpack.c.l.b16 %v3589
  %v3668 = vunpack.c.h.b16 %v3589
  %v3669 = vunpack.c.l.b16 %v3590
  %v3670 = vunpack.c.l.b16 %v3591
  %v3671 = vunpack.c.h.b16 %v3591
  %v3672 = vunpack.c.l.b16 %v3592
  %v3673 = vpack.c.b16 %v3628, %v3625
  %v3674 = vpack.c.b16 %v3629, %v3626
  %v3675 = vpack.c.b16 %v3630, %v3627
  %v3676 = vpack.c.b16 %v3634, %v3631
  %v3677 = vpack.c.b16 %v3635, %v3632
  %v3678 = vpack.c.b16 %v3636, %v3633
  %v3679 = vpack.c.b16 %v3640, %v3637
  %v3680 = vpack.c.b16 %v3641, %v3638
  %v3681 = vpack.c.b16 %v3642, %v3639
  %v3682 = vpack.c.b16 %v3646, %v3643
  %v3683 = vpack.c.b16 %v3647, %v3644
  %v3684 = vpack.c.b16 %v3648, %v3645
  %v3685 = vpack.c.b16 %v3652, %v3649
  %v3686 = vpack.c.b16 %v3653, %v3650
  %v3687 = vpack.c.b16 %v3654, %v3651
  %v3688 = vpack.c.b16 %v3658, %v3655
  %v3689 = vpack.c.b16 %v3659, %v3656
  %v3690 = vpack.c.b16 %v3660, %v3657
  %v3691 = vpack.c.b16 %v3664, %v3661
  %v3692 = vpack.c.b16 %v3665, %v3662
  %v3693 = vpack.c.b16 %v3666, %v3663
  %v3694 = vpack.c.b16 %v3670, %v3667
  %v3695 = vpack.c.b16 %v3671, %v3668
  %v3696 = vpack.c.b16 %v3672, %v3669
  %3721 = vmatprep.subr.bf16.mxu0 %v3695
  %3722 = vmatpush1.bf16.msra.mxu0 %v3694
  %3723 = vmatprep.subr.bf16.mxu0 %v3692
  %3724 = vmatpush1.bf16.msra.mxu0 %v3691
  %3725 = vmatprep.subr.bf16.mxu0 %v3689
  %3726 = vmatpush1.bf16.msra.mxu0 %v3688
  %3727 = vmatprep.subr.bf16.mxu0 %v3686
  %3728 = vmatpush1.bf16.msra.mxu0 %v3685
  %3729 = vmatprep.subr.bf16.mxu0 %v3683
  %3730 = vmatpush1.bf16.msra.mxu0 %v3682
  %3731 = vmatprep.subr.bf16.mxu0 %v3680
  %3732 = vmatpush1.bf16.msra.mxu0 %v3679
  %3733 = vmatprep.subr.bf16.mxu0 %v3677
  %3734 = vmatpush1.bf16.msra.mxu0 %v3676
  %3735 = vmatprep.subr.bf16.mxu0 %v3674
  %3736 = vmatpush1.bf16.msra.mxu0 %v3673
  %3737 = vmatprep.subr.bf16.mxu0 0
  %3738 = vmatpush2.bf16.msra.mxu0 0
  %3739 = vmatprep.subr.bf16.mxu0 0
  %3740 = vmatpush2.bf16.msra.mxu0 0
  %3741 = vmatprep.subr.bf16.mxu0 0
  %3742 = vmatpush2.bf16.msra.mxu0 0
  %3743 = vmatprep.subr.bf16.mxu0 0
  %3744 = vmatpush2.bf16.msra.mxu0 0
  %3745 = vmatprep.subr.bf16.mxu0 0
  %3746 = vmatpush2.bf16.msra.mxu0 0
  %3747 = vmatprep.subr.bf16.mxu0 0
  %3748 = vmatpush2.bf16.msra.mxu0 0
  %3749 = vmatprep.subr.bf16.mxu0 0
  %3750 = vmatpush2.bf16.msra.mxu0 0
  %3751 = vmatprep.subr.bf16.mxu0 0
  %3752 = vmatpush2.bf16.msra.mxu0 0
  %3753 = vmatprep.mubr.bf16.mxu0 0
  %3754 = vmatmul.mubr.bf16.gmra.mxu0 %v3560
  %v3755 = vpop.f32.mrf.mxu0
  %v3756 = vadd.f32 0.0, %v3755
  %v3757 = vpop.f32.mrf.mxu0
  %v3758 = vadd.f32 0.0, %v3757
  %v3759 = vpop.f32.mrf.mxu0
  %v3760 = vpop.f32.mrf.mxu0
  %3761 = vdwg.mxu0
  %3762 = vmatprep.subr.bf16.mxu0 0
  %3763 = vmatpush1.bf16.msra.mxu0 %v3696
  %3764 = vmatprep.subr.bf16.mxu0 0
  %3765 = vmatpush1.bf16.msra.mxu0 %v3693
  %3766 = vmatprep.subr.bf16.mxu0 0
  %3767 = vmatpush1.bf16.msra.mxu0 %v3690
  %3768 = vmatprep.subr.bf16.mxu0 0
  %3769 = vmatpush1.bf16.msra.mxu0 %v3687
  %3770 = vmatprep.subr.bf16.mxu0 0
  %3771 = vmatpush1.bf16.msra.mxu0 %v3684
  %3772 = vmatprep.subr.bf16.mxu0 0
  %3773 = vmatpush1.bf16.msra.mxu0 %v3681
  %3774 = vmatprep.subr.bf16.mxu0 0
  %3775 = vmatpush1.bf16.msra.mxu0 %v3678
  %3776 = vmatprep.subr.bf16.mxu0 0
  %3777 = vmatpush1.bf16.msra.mxu0 %v3675
  %3778 = vmatprep.subr.bf16.mxu0 0
  %3779 = vmatpush2.bf16.msra.mxu0 0
  %3780 = vmatprep.subr.bf16.mxu0 0
  %3781 = vmatpush2.bf16.msra.mxu0 0
  %3782 = vmatprep.subr.bf16.mxu0 0
  %3783 = vmatpush2.bf16.msra.mxu0 0
  %3784 = vmatprep.subr.bf16.mxu0 0
  %3785 = vmatpush2.bf16.msra.mxu0 0
  %3786 = vmatprep.subr.bf16.mxu0 0
  %3787 = vmatpush2.bf16.msra.mxu0 0
  %3788 = vmatprep.subr.bf16.mxu0 0
  %3789 = vmatpush2.bf16.msra.mxu0 0
  %3790 = vmatprep.subr.bf16.mxu0 0
  %3791 = vmatpush2.bf16.msra.mxu0 0
  %3792 = vmatprep.subr.bf16.mxu0 0
  %3793 = vmatpush2.bf16.msra.mxu0 0
  %3794 = vmatprep.mubr.bf16.mxu0 0
  %3795 = vmatmul.mubr.bf16.gmra.mxu0 %v3560
  %v3796 = vpop.f32.mrf.mxu0
  %v3797 = vadd.f32 0.0, %v3796
  %v3798 = vpop.f32.mrf.mxu0
  %v3799 = vpop.f32.mrf.mxu0
  %v3800 = vpop.f32.mrf.mxu0
  %3801 = vdwg.mxu0
  %v3802 = vadd.f32 %v3557, %v3756
  %v3803 = vxor.u32 %v3802, 2147483648
  %v3804 = vmul.f32 %v3803, 1.442695
  %v3805 = vpow.pop %v3804
  %v3806 = vadd.f32 %v3805, 1.0
  %v3807 = vrcp.pop %v3806
  %v3808 = vmul.f32 1.0, %v3807
  %v3809 = vadd.f32 %v3558, %v3758
  %v3810 = vxor.u32 %v3809, 2147483648
  %v3811 = vmul.f32 %v3810, 1.442695
  %v3812 = vpow.pop %v3811
  %v3813 = vadd.f32 %v3812, 1.0
  %v3814 = vrcp.pop %v3813
  %v3815 = vmul.f32 1.0, %v3814
  %v3816 = vadd.f32 %v3797, %v570
  %v3817 = vmul.f32 %v3808, %v3816
  %v3818 = vadd.f32 %v3559, %v3817
  %v3819 = vtanh.pop %v3818
  %v3820 = vsub.f32 1.0, %v3815
  %v3821 = vmul.f32 %v3820, %v3819
  %v3822 = vmul.f32 %v3815, %v3283
  %v3823 = vadd.f32 %v3821, %v3822
  %s3824 = scalar_lea.vmem [#allocation3], 24
  %v3825 = vld [vmem:[%s3824] sm:$0xff]
  %v3826 = vld [vmem:[%s3824 + $0x8] sm:$0xff]
  %v3827 = vld [vmem:[%s3824 + $0x10] sm:$0xff]
  %v3828 = vpack.c.bf16 %v3551, %v3551
  %v3829 = vld [vmem:[%s7] sm:$0xff]
  %v3830 = vld [vmem:[%s7 + $0x8] sm:$0xf]
  %v3831 = vld [vmem:[%s7 + $0xc] sm:$0xff]
  %v3832 = vld [vmem:[%s7 + $0x14] sm:$0xf]
  %v3833 = vld [vmem:[%s7 + $0x18] sm:$0xff]
  %v3834 = vld [vmem:[%s7 + $0x20] sm:$0xf]
  %v3835 = vld [vmem:[%s7 + $0x24] sm:$0xff]
  %v3836 = vld [vmem:[%s7 + $0x2c] sm:$0xf]
  %v3837 = vld [vmem:[%s7 + $0x30] sm:$0xff]
  %v3838 = vld [vmem:[%s7 + $0x38] sm:$0xf]
  %v3839 = vld [vmem:[%s7 + $0x3c] sm:$0xff]
  %v3840 = vld [vmem:[%s7 + $0x44] sm:$0xf]
  %v3841 = vld [vmem:[%s7 + $0x48] sm:$0xff]
  %v3842 = vld [vmem:[%s7 + $0x50] sm:$0xf]
  %v3843 = vld [vmem:[%s7 + $0x54] sm:$0xff]
  %v3844 = vld [vmem:[%s7 + $0x5c] sm:$0xf]
  %v3845 = vld [vmem:[%s7 + $0x60] sm:$0xff]
  %v3846 = vld [vmem:[%s7 + $0x68] sm:$0xf]
  %v3847 = vld [vmem:[%s7 + $0x6c] sm:$0xff]
  %v3848 = vld [vmem:[%s7 + $0x74] sm:$0xf]
  %v3849 = vld [vmem:[%s7 + $0x78] sm:$0xff]
  %v3850 = vld [vmem:[%s7 + $0x80] sm:$0xf]
  %v3851 = vld [vmem:[%s7 + $0x84] sm:$0xff]
  %v3852 = vld [vmem:[%s7 + $0x8c] sm:$0xf]
  %v3853 = vld [vmem:[%s7 + $0x90] sm:$0xff]
  %v3854 = vld [vmem:[%s7 + $0x98] sm:$0xf]
  %v3855 = vld [vmem:[%s7 + $0x9c] sm:$0xff]
  %v3856 = vld [vmem:[%s7 + $0xa4] sm:$0xf]
  %v3857 = vld [vmem:[%s7 + $0xa8] sm:$0xff]
  %v3858 = vld [vmem:[%s7 + $0xb0] sm:$0xf]
  %v3859 = vld [vmem:[%s7 + $0xb4] sm:$0xff]
  %v3860 = vld [vmem:[%s7 + $0xbc] sm:$0xf]
  %v3893 = vunpack.c.l.b16 %v3829
  %v3894 = vunpack.c.h.b16 %v3829
  %v3895 = vunpack.c.l.b16 %v3830
  %v3896 = vunpack.c.l.b16 %v3831
  %v3897 = vunpack.c.h.b16 %v3831
  %v3898 = vunpack.c.l.b16 %v3832
  %v3899 = vunpack.c.l.b16 %v3833
  %v3900 = vunpack.c.h.b16 %v3833
  %v3901 = vunpack.c.l.b16 %v3834
  %v3902 = vunpack.c.l.b16 %v3835
  %v3903 = vunpack.c.h.b16 %v3835
  %v3904 = vunpack.c.l.b16 %v3836
  %v3905 = vunpack.c.l.b16 %v3837
  %v3906 = vunpack.c.h.b16 %v3837
  %v3907 = vunpack.c.l.b16 %v3838
  %v3908 = vunpack.c.l.b16 %v3839
  %v3909 = vunpack.c.h.b16 %v3839
  %v3910 = vunpack.c.l.b16 %v3840
  %v3911 = vunpack.c.l.b16 %v3841
  %v3912 = vunpack.c.h.b16 %v3841
  %v3913 = vunpack.c.l.b16 %v3842
  %v3914 = vunpack.c.l.b16 %v3843
  %v3915 = vunpack.c.h.b16 %v3843
  %v3916 = vunpack.c.l.b16 %v3844
  %v3917 = vunpack.c.l.b16 %v3845
  %v3918 = vunpack.c.h.b16 %v3845
  %v3919 = vunpack.c.l.b16 %v3846
  %v3920 = vunpack.c.l.b16 %v3847
  %v3921 = vunpack.c.h.b16 %v3847
  %v3922 = vunpack.c.l.b16 %v3848
  %v3923 = vunpack.c.l.b16 %v3849
  %v3924 = vunpack.c.h.b16 %v3849
  %v3925 = vunpack.c.l.b16 %v3850
  %v3926 = vunpack.c.l.b16 %v3851
  %v3927 = vunpack.c.h.b16 %v3851
  %v3928 = vunpack.c.l.b16 %v3852
  %v3929 = vunpack.c.l.b16 %v3853
  %v3930 = vunpack.c.h.b16 %v3853
  %v3931 = vunpack.c.l.b16 %v3854
  %v3932 = vunpack.c.l.b16 %v3855
  %v3933 = vunpack.c.h.b16 %v3855
  %v3934 = vunpack.c.l.b16 %v3856
  %v3935 = vunpack.c.l.b16 %v3857
  %v3936 = vunpack.c.h.b16 %v3857
  %v3937 = vunpack.c.l.b16 %v3858
  %v3938 = vunpack.c.l.b16 %v3859
  %v3939 = vunpack.c.h.b16 %v3859
  %v3940 = vunpack.c.l.b16 %v3860
  %v3941 = vpack.c.b16 %v3896, %v3893
  %v3942 = vpack.c.b16 %v3897, %v3894
  %v3943 = vpack.c.b16 %v3898, %v3895
  %v3944 = vpack.c.b16 %v3902, %v3899
  %v3945 = vpack.c.b16 %v3903, %v3900
  %v3946 = vpack.c.b16 %v3904, %v3901
  %v3947 = vpack.c.b16 %v3908, %v3905
  %v3948 = vpack.c.b16 %v3909, %v3906
  %v3949 = vpack.c.b16 %v3910, %v3907
  %v3950 = vpack.c.b16 %v3914, %v3911
  %v3951 = vpack.c.b16 %v3915, %v3912
  %v3952 = vpack.c.b16 %v3916, %v3913
  %v3953 = vpack.c.b16 %v3920, %v3917
  %v3954 = vpack.c.b16 %v3921, %v3918
  %v3955 = vpack.c.b16 %v3922, %v3919
  %v3956 = vpack.c.b16 %v3926, %v3923
  %v3957 = vpack.c.b16 %v3927, %v3924
  %v3958 = vpack.c.b16 %v3928, %v3925
  %v3959 = vpack.c.b16 %v3932, %v3929
  %v3960 = vpack.c.b16 %v3933, %v3930
  %v3961 = vpack.c.b16 %v3934, %v3931
  %v3962 = vpack.c.b16 %v3938, %v3935
  %v3963 = vpack.c.b16 %v3939, %v3936
  %v3964 = vpack.c.b16 %v3940, %v3937
  %3989 = vmatprep.subr.bf16.mxu0 %v3963
  %3990 = vmatpush1.bf16.msra.mxu0 %v3962
  %3991 = vmatprep.subr.bf16.mxu0 %v3960
  %3992 = vmatpush1.bf16.msra.mxu0 %v3959
  %3993 = vmatprep.subr.bf16.mxu0 %v3957
  %3994 = vmatpush1.bf16.msra.mxu0 %v3956
  %3995 = vmatprep.subr.bf16.mxu0 %v3954
  %3996 = vmatpush1.bf16.msra.mxu0 %v3953
  %3997 = vmatprep.subr.bf16.mxu0 %v3951
  %3998 = vmatpush1.bf16.msra.mxu0 %v3950
  %3999 = vmatprep.subr.bf16.mxu0 %v3948
  %4000 = vmatpush1.bf16.msra.mxu0 %v3947
  %4001 = vmatprep.subr.bf16.mxu0 %v3945
  %4002 = vmatpush1.bf16.msra.mxu0 %v3944
  %4003 = vmatprep.subr.bf16.mxu0 %v3942
  %4004 = vmatpush1.bf16.msra.mxu0 %v3941
  %4005 = vmatprep.subr.bf16.mxu0 0
  %4006 = vmatpush2.bf16.msra.mxu0 0
  %4007 = vmatprep.subr.bf16.mxu0 0
  %4008 = vmatpush2.bf16.msra.mxu0 0
  %4009 = vmatprep.subr.bf16.mxu0 0
  %4010 = vmatpush2.bf16.msra.mxu0 0
  %4011 = vmatprep.subr.bf16.mxu0 0
  %4012 = vmatpush2.bf16.msra.mxu0 0
  %4013 = vmatprep.subr.bf16.mxu0 0
  %4014 = vmatpush2.bf16.msra.mxu0 0
  %4015 = vmatprep.subr.bf16.mxu0 0
  %4016 = vmatpush2.bf16.msra.mxu0 0
  %4017 = vmatprep.subr.bf16.mxu0 0
  %4018 = vmatpush2.bf16.msra.mxu0 0
  %4019 = vmatprep.subr.bf16.mxu0 0
  %4020 = vmatpush2.bf16.msra.mxu0 0
  %4021 = vmatprep.mubr.bf16.mxu0 0
  %4022 = vmatmul.mubr.bf16.gmra.mxu0 %v3828
  %v4023 = vpop.f32.mrf.mxu0
  %v4024 = vadd.f32 0.0, %v4023
  %v4025 = vpop.f32.mrf.mxu0
  %v4026 = vadd.f32 0.0, %v4025
  %v4027 = vpop.f32.mrf.mxu0
  %v4028 = vpop.f32.mrf.mxu0
  %4029 = vdwg.mxu0
  %4030 = vmatprep.subr.bf16.mxu0 0
  %4031 = vmatpush1.bf16.msra.mxu0 %v3964
  %4032 = vmatprep.subr.bf16.mxu0 0
  %4033 = vmatpush1.bf16.msra.mxu0 %v3961
  %4034 = vmatprep.subr.bf16.mxu0 0
  %4035 = vmatpush1.bf16.msra.mxu0 %v3958
  %4036 = vmatprep.subr.bf16.mxu0 0
  %4037 = vmatpush1.bf16.msra.mxu0 %v3955
  %4038 = vmatprep.subr.bf16.mxu0 0
  %4039 = vmatpush1.bf16.msra.mxu0 %v3952
  %4040 = vmatprep.subr.bf16.mxu0 0
  %4041 = vmatpush1.bf16.msra.mxu0 %v3949
  %4042 = vmatprep.subr.bf16.mxu0 0
  %4043 = vmatpush1.bf16.msra.mxu0 %v3946
  %4044 = vmatprep.subr.bf16.mxu0 0
  %4045 = vmatpush1.bf16.msra.mxu0 %v3943
  %4046 = vmatprep.subr.bf16.mxu0 0
  %4047 = vmatpush2.bf16.msra.mxu0 0
  %4048 = vmatprep.subr.bf16.mxu0 0
  %4049 = vmatpush2.bf16.msra.mxu0 0
  %4050 = vmatprep.subr.bf16.mxu0 0
  %4051 = vmatpush2.bf16.msra.mxu0 0
  %4052 = vmatprep.subr.bf16.mxu0 0
  %4053 = vmatpush2.bf16.msra.mxu0 0
  %4054 = vmatprep.subr.bf16.mxu0 0
  %4055 = vmatpush2.bf16.msra.mxu0 0
  %4056 = vmatprep.subr.bf16.mxu0 0
  %4057 = vmatpush2.bf16.msra.mxu0 0
  %4058 = vmatprep.subr.bf16.mxu0 0
  %4059 = vmatpush2.bf16.msra.mxu0 0
  %4060 = vmatprep.subr.bf16.mxu0 0
  %4061 = vmatpush2.bf16.msra.mxu0 0
  %4062 = vmatprep.mubr.bf16.mxu0 0
  %4063 = vmatmul.mubr.bf16.gmra.mxu0 %v3828
  %v4064 = vpop.f32.mrf.mxu0
  %v4065 = vadd.f32 0.0, %v4064
  %v4066 = vpop.f32.mrf.mxu0
  %v4067 = vpop.f32.mrf.mxu0
  %v4068 = vpop.f32.mrf.mxu0
  %4069 = vdwg.mxu0
  %v4070 = vadd.f32 %v3825, %v4024
  %v4071 = vxor.u32 %v4070, 2147483648
  %v4072 = vmul.f32 %v4071, 1.442695
  %v4073 = vpow.pop %v4072
  %v4074 = vadd.f32 %v4073, 1.0
  %v4075 = vrcp.pop %v4074
  %v4076 = vmul.f32 1.0, %v4075
  %v4077 = vadd.f32 %v3826, %v4026
  %v4078 = vxor.u32 %v4077, 2147483648
  %v4079 = vmul.f32 %v4078, 1.442695
  %v4080 = vpow.pop %v4079
  %v4081 = vadd.f32 %v4080, 1.0
  %v4082 = vrcp.pop %v4081
  %v4083 = vmul.f32 1.0, %v4082
  %v4084 = vadd.f32 %v4065, %v843
  %v4085 = vmul.f32 %v4076, %v4084
  %v4086 = vadd.f32 %v3827, %v4085
  %v4087 = vtanh.pop %v4086
  %v4088 = vsub.f32 1.0, %v4083
  %v4089 = vmul.f32 %v4088, %v4087
  %v4090 = vmul.f32 %v4083, %v3551
  %v4091 = vadd.f32 %v4089, %v4090
  %s4092 = scalar_lea.vmem [#allocation4], 48
  %4093 = vst [vmem:[%s4092] sm:$0xff] %v3823
  %s4094 = scalar_lea.vmem [#allocation5], 8
  %4095 = vst [vmem:[%s4094] sm:$0xff] %v4091
  %s4096 = scalar_lea.vmem [#allocation2], 168
  %v4097 = vld [vmem:[%s4096] sm:$0xff]
  %v4098 = vld [vmem:[%s4096 + $0x8] sm:$0xff]
  %v4099 = vld [vmem:[%s4096 + $0x10] sm:$0xff]
  %v4100 = vpack.c.bf16 %v3823, %v3823
  %v4101 = vld [vmem:[%s3] sm:$0xff]
  %v4102 = vld [vmem:[%s3 + $0x8] sm:$0xf]
  %v4103 = vld [vmem:[%s3 + $0xc] sm:$0xff]
  %v4104 = vld [vmem:[%s3 + $0x14] sm:$0xf]
  %v4105 = vld [vmem:[%s3 + $0x18] sm:$0xff]
  %v4106 = vld [vmem:[%s3 + $0x20] sm:$0xf]
  %v4107 = vld [vmem:[%s3 + $0x24] sm:$0xff]
  %v4108 = vld [vmem:[%s3 + $0x2c] sm:$0xf]
  %v4109 = vld [vmem:[%s3 + $0x30] sm:$0xff]
  %v4110 = vld [vmem:[%s3 + $0x38] sm:$0xf]
  %v4111 = vld [vmem:[%s3 + $0x3c] sm:$0xff]
  %v4112 = vld [vmem:[%s3 + $0x44] sm:$0xf]
  %v4113 = vld [vmem:[%s3 + $0x48] sm:$0xff]
  %v4114 = vld [vmem:[%s3 + $0x50] sm:$0xf]
  %v4115 = vld [vmem:[%s3 + $0x54] sm:$0xff]
  %v4116 = vld [vmem:[%s3 + $0x5c] sm:$0xf]
  %v4117 = vld [vmem:[%s3 + $0x60] sm:$0xff]
  %v4118 = vld [vmem:[%s3 + $0x68] sm:$0xf]
  %v4119 = vld [vmem:[%s3 + $0x6c] sm:$0xff]
  %v4120 = vld [vmem:[%s3 + $0x74] sm:$0xf]
  %v4121 = vld [vmem:[%s3 + $0x78] sm:$0xff]
  %v4122 = vld [vmem:[%s3 + $0x80] sm:$0xf]
  %v4123 = vld [vmem:[%s3 + $0x84] sm:$0xff]
  %v4124 = vld [vmem:[%s3 + $0x8c] sm:$0xf]
  %v4125 = vld [vmem:[%s3 + $0x90] sm:$0xff]
  %v4126 = vld [vmem:[%s3 + $0x98] sm:$0xf]
  %v4127 = vld [vmem:[%s3 + $0x9c] sm:$0xff]
  %v4128 = vld [vmem:[%s3 + $0xa4] sm:$0xf]
  %v4129 = vld [vmem:[%s3 + $0xa8] sm:$0xff]
  %v4130 = vld [vmem:[%s3 + $0xb0] sm:$0xf]
  %v4131 = vld [vmem:[%s3 + $0xb4] sm:$0xff]
  %v4132 = vld [vmem:[%s3 + $0xbc] sm:$0xf]
  %v4165 = vunpack.c.l.b16 %v4101
  %v4166 = vunpack.c.h.b16 %v4101
  %v4167 = vunpack.c.l.b16 %v4102
  %v4168 = vunpack.c.l.b16 %v4103
  %v4169 = vunpack.c.h.b16 %v4103
  %v4170 = vunpack.c.l.b16 %v4104
  %v4171 = vunpack.c.l.b16 %v4105
  %v4172 = vunpack.c.h.b16 %v4105
  %v4173 = vunpack.c.l.b16 %v4106
  %v4174 = vunpack.c.l.b16 %v4107
  %v4175 = vunpack.c.h.b16 %v4107
  %v4176 = vunpack.c.l.b16 %v4108
  %v4177 = vunpack.c.l.b16 %v4109
  %v4178 = vunpack.c.h.b16 %v4109
  %v4179 = vunpack.c.l.b16 %v4110
  %v4180 = vunpack.c.l.b16 %v4111
  %v4181 = vunpack.c.h.b16 %v4111
  %v4182 = vunpack.c.l.b16 %v4112
  %v4183 = vunpack.c.l.b16 %v4113
  %v4184 = vunpack.c.h.b16 %v4113
  %v4185 = vunpack.c.l.b16 %v4114
  %v4186 = vunpack.c.l.b16 %v4115
  %v4187 = vunpack.c.h.b16 %v4115
  %v4188 = vunpack.c.l.b16 %v4116
  %v4189 = vunpack.c.l.b16 %v4117
  %v4190 = vunpack.c.h.b16 %v4117
  %v4191 = vunpack.c.l.b16 %v4118
  %v4192 = vunpack.c.l.b16 %v4119
  %v4193 = vunpack.c.h.b16 %v4119
  %v4194 = vunpack.c.l.b16 %v4120
  %v4195 = vunpack.c.l.b16 %v4121
  %v4196 = vunpack.c.h.b16 %v4121
  %v4197 = vunpack.c.l.b16 %v4122
  %v4198 = vunpack.c.l.b16 %v4123
  %v4199 = vunpack.c.h.b16 %v4123
  %v4200 = vunpack.c.l.b16 %v4124
  %v4201 = vunpack.c.l.b16 %v4125
  %v4202 = vunpack.c.h.b16 %v4125
  %v4203 = vunpack.c.l.b16 %v4126
  %v4204 = vunpack.c.l.b16 %v4127
  %v4205 = vunpack.c.h.b16 %v4127
  %v4206 = vunpack.c.l.b16 %v4128
  %v4207 = vunpack.c.l.b16 %v4129
  %v4208 = vunpack.c.h.b16 %v4129
  %v4209 = vunpack.c.l.b16 %v4130
  %v4210 = vunpack.c.l.b16 %v4131
  %v4211 = vunpack.c.h.b16 %v4131
  %v4212 = vunpack.c.l.b16 %v4132
  %v4213 = vpack.c.b16 %v4168, %v4165
  %v4214 = vpack.c.b16 %v4169, %v4166
  %v4215 = vpack.c.b16 %v4170, %v4167
  %v4216 = vpack.c.b16 %v4174, %v4171
  %v4217 = vpack.c.b16 %v4175, %v4172
  %v4218 = vpack.c.b16 %v4176, %v4173
  %v4219 = vpack.c.b16 %v4180, %v4177
  %v4220 = vpack.c.b16 %v4181, %v4178
  %v4221 = vpack.c.b16 %v4182, %v4179
  %v4222 = vpack.c.b16 %v4186, %v4183
  %v4223 = vpack.c.b16 %v4187, %v4184
  %v4224 = vpack.c.b16 %v4188, %v4185
  %v4225 = vpack.c.b16 %v4192, %v4189
  %v4226 = vpack.c.b16 %v4193, %v4190
  %v4227 = vpack.c.b16 %v4194, %v4191
  %v4228 = vpack.c.b16 %v4198, %v4195
  %v4229 = vpack.c.b16 %v4199, %v4196
  %v4230 = vpack.c.b16 %v4200, %v4197
  %v4231 = vpack.c.b16 %v4204, %v4201
  %v4232 = vpack.c.b16 %v4205, %v4202
  %v4233 = vpack.c.b16 %v4206, %v4203
  %v4234 = vpack.c.b16 %v4210, %v4207
  %v4235 = vpack.c.b16 %v4211, %v4208
  %v4236 = vpack.c.b16 %v4212, %v4209
  %4261 = vmatprep.subr.bf16.mxu0 %v4235
  %4262 = vmatpush1.bf16.msra.mxu0 %v4234
  %4263 = vmatprep.subr.bf16.mxu0 %v4232
  %4264 = vmatpush1.bf16.msra.mxu0 %v4231
  %4265 = vmatprep.subr.bf16.mxu0 %v4229
  %4266 = vmatpush1.bf16.msra.mxu0 %v4228
  %4267 = vmatprep.subr.bf16.mxu0 %v4226
  %4268 = vmatpush1.bf16.msra.mxu0 %v4225
  %4269 = vmatprep.subr.bf16.mxu0 %v4223
  %4270 = vmatpush1.bf16.msra.mxu0 %v4222
  %4271 = vmatprep.subr.bf16.mxu0 %v4220
  %4272 = vmatpush1.bf16.msra.mxu0 %v4219
  %4273 = vmatprep.subr.bf16.mxu0 %v4217
  %4274 = vmatpush1.bf16.msra.mxu0 %v4216
  %4275 = vmatprep.subr.bf16.mxu0 %v4214
  %4276 = vmatpush1.bf16.msra.mxu0 %v4213
  %4277 = vmatprep.subr.bf16.mxu0 0
  %4278 = vmatpush2.bf16.msra.mxu0 0
  %4279 = vmatprep.subr.bf16.mxu0 0
  %4280 = vmatpush2.bf16.msra.mxu0 0
  %4281 = vmatprep.subr.bf16.mxu0 0
  %4282 = vmatpush2.bf16.msra.mxu0 0
  %4283 = vmatprep.subr.bf16.mxu0 0
  %4284 = vmatpush2.bf16.msra.mxu0 0
  %4285 = vmatprep.subr.bf16.mxu0 0
  %4286 = vmatpush2.bf16.msra.mxu0 0
  %4287 = vmatprep.subr.bf16.mxu0 0
  %4288 = vmatpush2.bf16.msra.mxu0 0
  %4289 = vmatprep.subr.bf16.mxu0 0
  %4290 = vmatpush2.bf16.msra.mxu0 0
  %4291 = vmatprep.subr.bf16.mxu0 0
  %4292 = vmatpush2.bf16.msra.mxu0 0
  %4293 = vmatprep.mubr.bf16.mxu0 0
  %4294 = vmatmul.mubr.bf16.gmra.mxu0 %v4100
  %v4295 = vpop.f32.mrf.mxu0
  %v4296 = vadd.f32 0.0, %v4295
  %v4297 = vpop.f32.mrf.mxu0
  %v4298 = vadd.f32 0.0, %v4297
  %v4299 = vpop.f32.mrf.mxu0
  %v4300 = vpop.f32.mrf.mxu0
  %4301 = vdwg.mxu0
  %4302 = vmatprep.subr.bf16.mxu0 0
  %4303 = vmatpush1.bf16.msra.mxu0 %v4236
  %4304 = vmatprep.subr.bf16.mxu0 0
  %4305 = vmatpush1.bf16.msra.mxu0 %v4233
  %4306 = vmatprep.subr.bf16.mxu0 0
  %4307 = vmatpush1.bf16.msra.mxu0 %v4230
  %4308 = vmatprep.subr.bf16.mxu0 0
  %4309 = vmatpush1.bf16.msra.mxu0 %v4227
  %4310 = vmatprep.subr.bf16.mxu0 0
  %4311 = vmatpush1.bf16.msra.mxu0 %v4224
  %4312 = vmatprep.subr.bf16.mxu0 0
  %4313 = vmatpush1.bf16.msra.mxu0 %v4221
  %4314 = vmatprep.subr.bf16.mxu0 0
  %4315 = vmatpush1.bf16.msra.mxu0 %v4218
  %4316 = vmatprep.subr.bf16.mxu0 0
  %4317 = vmatpush1.bf16.msra.mxu0 %v4215
  %4318 = vmatprep.subr.bf16.mxu0 0
  %4319 = vmatpush2.bf16.msra.mxu0 0
  %4320 = vmatprep.subr.bf16.mxu0 0
  %4321 = vmatpush2.bf16.msra.mxu0 0
  %4322 = vmatprep.subr.bf16.mxu0 0
  %4323 = vmatpush2.bf16.msra.mxu0 0
  %4324 = vmatprep.subr.bf16.mxu0 0
  %4325 = vmatpush2.bf16.msra.mxu0 0
  %4326 = vmatprep.subr.bf16.mxu0 0
  %4327 = vmatpush2.bf16.msra.mxu0 0
  %4328 = vmatprep.subr.bf16.mxu0 0
  %4329 = vmatpush2.bf16.msra.mxu0 0
  %4330 = vmatprep.subr.bf16.mxu0 0
  %4331 = vmatpush2.bf16.msra.mxu0 0
  %4332 = vmatprep.subr.bf16.mxu0 0
  %4333 = vmatpush2.bf16.msra.mxu0 0
  %4334 = vmatprep.mubr.bf16.mxu0 0
  %4335 = vmatmul.mubr.bf16.gmra.mxu0 %v4100
  %v4336 = vpop.f32.mrf.mxu0
  %v4337 = vadd.f32 0.0, %v4336
  %v4338 = vpop.f32.mrf.mxu0
  %v4339 = vpop.f32.mrf.mxu0
  %v4340 = vpop.f32.mrf.mxu0
  %4341 = vdwg.mxu0
  %v4342 = vadd.f32 %v4097, %v4296
  %v4343 = vxor.u32 %v4342, 2147483648
  %v4344 = vmul.f32 %v4343, 1.442695
  %v4345 = vpow.pop %v4344
  %v4346 = vadd.f32 %v4345, 1.0
  %v4347 = vrcp.pop %v4346
  %v4348 = vmul.f32 1.0, %v4347
  %v4349 = vadd.f32 %v4098, %v4298
  %v4350 = vxor.u32 %v4349, 2147483648
  %v4351 = vmul.f32 %v4350, 1.442695
  %v4352 = vpow.pop %v4351
  %v4353 = vadd.f32 %v4352, 1.0
  %v4354 = vrcp.pop %v4353
  %v4355 = vmul.f32 1.0, %v4354
  %v4356 = vadd.f32 %v4337, %v570
  %v4357 = vmul.f32 %v4348, %v4356
  %v4358 = vadd.f32 %v4099, %v4357
  %v4359 = vtanh.pop %v4358
  %v4360 = vsub.f32 1.0, %v4355
  %v4361 = vmul.f32 %v4360, %v4359
  %v4362 = vmul.f32 %v4355, %v3823
  %v4363 = vadd.f32 %v4361, %v4362
  %v4364 = vld [vmem:[#allocation3] sm:$0xff]
  %v4365 = vld [vmem:[#allocation3 + $0x8] sm:$0xff]
  %v4366 = vld [vmem:[#allocation3 + $0x10] sm:$0xff]
  %v4367 = vpack.c.bf16 %v4091, %v4091
  %v4368 = vld [vmem:[%s7] sm:$0xff]
  %v4369 = vld [vmem:[%s7 + $0x8] sm:$0xf]
  %v4370 = vld [vmem:[%s7 + $0xc] sm:$0xff]
  %v4371 = vld [vmem:[%s7 + $0x14] sm:$0xf]
  %v4372 = vld [vmem:[%s7 + $0x18] sm:$0xff]
  %v4373 = vld [vmem:[%s7 + $0x20] sm:$0xf]
  %v4374 = vld [vmem:[%s7 + $0x24] sm:$0xff]
  %v4375 = vld [vmem:[%s7 + $0x2c] sm:$0xf]
  %v4376 = vld [vmem:[%s7 + $0x30] sm:$0xff]
  %v4377 = vld [vmem:[%s7 + $0x38] sm:$0xf]
  %v4378 = vld [vmem:[%s7 + $0x3c] sm:$0xff]
  %v4379 = vld [vmem:[%s7 + $0x44] sm:$0xf]
  %v4380 = vld [vmem:[%s7 + $0x48] sm:$0xff]
  %v4381 = vld [vmem:[%s7 + $0x50] sm:$0xf]
  %v4382 = vld [vmem:[%s7 + $0x54] sm:$0xff]
  %v4383 = vld [vmem:[%s7 + $0x5c] sm:$0xf]
  %v4384 = vld [vmem:[%s7 + $0x60] sm:$0xff]
  %v4385 = vld [vmem:[%s7 + $0x68] sm:$0xf]
  %v4386 = vld [vmem:[%s7 + $0x6c] sm:$0xff]
  %v4387 = vld [vmem:[%s7 + $0x74] sm:$0xf]
  %v4388 = vld [vmem:[%s7 + $0x78] sm:$0xff]
  %v4389 = vld [vmem:[%s7 + $0x80] sm:$0xf]
  %v4390 = vld [vmem:[%s7 + $0x84] sm:$0xff]
  %v4391 = vld [vmem:[%s7 + $0x8c] sm:$0xf]
  %v4392 = vld [vmem:[%s7 + $0x90] sm:$0xff]
  %v4393 = vld [vmem:[%s7 + $0x98] sm:$0xf]
  %v4394 = vld [vmem:[%s7 + $0x9c] sm:$0xff]
  %v4395 = vld [vmem:[%s7 + $0xa4] sm:$0xf]
  %v4396 = vld [vmem:[%s7 + $0xa8] sm:$0xff]
  %v4397 = vld [vmem:[%s7 + $0xb0] sm:$0xf]
  %v4398 = vld [vmem:[%s7 + $0xb4] sm:$0xff]
  %v4399 = vld [vmem:[%s7 + $0xbc] sm:$0xf]
  %v4432 = vunpack.c.l.b16 %v4368
  %v4433 = vunpack.c.h.b16 %v4368
  %v4434 = vunpack.c.l.b16 %v4369
  %v4435 = vunpack.c.l.b16 %v4370
  %v4436 = vunpack.c.h.b16 %v4370
  %v4437 = vunpack.c.l.b16 %v4371
  %v4438 = vunpack.c.l.b16 %v4372
  %v4439 = vunpack.c.h.b16 %v4372
  %v4440 = vunpack.c.l.b16 %v4373
  %v4441 = vunpack.c.l.b16 %v4374
  %v4442 = vunpack.c.h.b16 %v4374
  %v4443 = vunpack.c.l.b16 %v4375
  %v4444 = vunpack.c.l.b16 %v4376
  %v4445 = vunpack.c.h.b16 %v4376
  %v4446 = vunpack.c.l.b16 %v4377
  %v4447 = vunpack.c.l.b16 %v4378
  %v4448 = vunpack.c.h.b16 %v4378
  %v4449 = vunpack.c.l.b16 %v4379
  %v4450 = vunpack.c.l.b16 %v4380
  %v4451 = vunpack.c.h.b16 %v4380
  %v4452 = vunpack.c.l.b16 %v4381
  %v4453 = vunpack.c.l.b16 %v4382
  %v4454 = vunpack.c.h.b16 %v4382
  %v4455 = vunpack.c.l.b16 %v4383
  %v4456 = vunpack.c.l.b16 %v4384
  %v4457 = vunpack.c.h.b16 %v4384
  %v4458 = vunpack.c.l.b16 %v4385
  %v4459 = vunpack.c.l.b16 %v4386
  %v4460 = vunpack.c.h.b16 %v4386
  %v4461 = vunpack.c.l.b16 %v4387
  %v4462 = vunpack.c.l.b16 %v4388
  %v4463 = vunpack.c.h.b16 %v4388
  %v4464 = vunpack.c.l.b16 %v4389
  %v4465 = vunpack.c.l.b16 %v4390
  %v4466 = vunpack.c.h.b16 %v4390
  %v4467 = vunpack.c.l.b16 %v4391
  %v4468 = vunpack.c.l.b16 %v4392
  %v4469 = vunpack.c.h.b16 %v4392
  %v4470 = vunpack.c.l.b16 %v4393
  %v4471 = vunpack.c.l.b16 %v4394
  %v4472 = vunpack.c.h.b16 %v4394
  %v4473 = vunpack.c.l.b16 %v4395
  %v4474 = vunpack.c.l.b16 %v4396
  %v4475 = vunpack.c.h.b16 %v4396
  %v4476 = vunpack.c.l.b16 %v4397
  %v4477 = vunpack.c.l.b16 %v4398
  %v4478 = vunpack.c.h.b16 %v4398
  %v4479 = vunpack.c.l.b16 %v4399
  %v4480 = vpack.c.b16 %v4435, %v4432
  %v4481 = vpack.c.b16 %v4436, %v4433
  %v4482 = vpack.c.b16 %v4437, %v4434
  %v4483 = vpack.c.b16 %v4441, %v4438
  %v4484 = vpack.c.b16 %v4442, %v4439
  %v4485 = vpack.c.b16 %v4443, %v4440
  %v4486 = vpack.c.b16 %v4447, %v4444
  %v4487 = vpack.c.b16 %v4448, %v4445
  %v4488 = vpack.c.b16 %v4449, %v4446
  %v4489 = vpack.c.b16 %v4453, %v4450
  %v4490 = vpack.c.b16 %v4454, %v4451
  %v4491 = vpack.c.b16 %v4455, %v4452
  %v4492 = vpack.c.b16 %v4459, %v4456
  %v4493 = vpack.c.b16 %v4460, %v4457
  %v4494 = vpack.c.b16 %v4461, %v4458
  %v4495 = vpack.c.b16 %v4465, %v4462
  %v4496 = vpack.c.b16 %v4466, %v4463
  %v4497 = vpack.c.b16 %v4467, %v4464
  %v4498 = vpack.c.b16 %v4471, %v4468
  %v4499 = vpack.c.b16 %v4472, %v4469
  %v4500 = vpack.c.b16 %v4473, %v4470
  %v4501 = vpack.c.b16 %v4477, %v4474
  %v4502 = vpack.c.b16 %v4478, %v4475
  %v4503 = vpack.c.b16 %v4479, %v4476
  %4528 = vmatprep.subr.bf16.mxu0 %v4502
  %4529 = vmatpush1.bf16.msra.mxu0 %v4501
  %4530 = vmatprep.subr.bf16.mxu0 %v4499
  %4531 = vmatpush1.bf16.msra.mxu0 %v4498
  %4532 = vmatprep.subr.bf16.mxu0 %v4496
  %4533 = vmatpush1.bf16.msra.mxu0 %v4495
  %4534 = vmatprep.subr.bf16.mxu0 %v4493
  %4535 = vmatpush1.bf16.msra.mxu0 %v4492
  %4536 = vmatprep.subr.bf16.mxu0 %v4490
  %4537 = vmatpush1.bf16.msra.mxu0 %v4489
  %4538 = vmatprep.subr.bf16.mxu0 %v4487
  %4539 = vmatpush1.bf16.msra.mxu0 %v4486
  %4540 = vmatprep.subr.bf16.mxu0 %v4484
  %4541 = vmatpush1.bf16.msra.mxu0 %v4483
  %4542 = vmatprep.subr.bf16.mxu0 %v4481
  %4543 = vmatpush1.bf16.msra.mxu0 %v4480
  %4544 = vmatprep.subr.bf16.mxu0 0
  %4545 = vmatpush2.bf16.msra.mxu0 0
  %4546 = vmatprep.subr.bf16.mxu0 0
  %4547 = vmatpush2.bf16.msra.mxu0 0
  %4548 = vmatprep.subr.bf16.mxu0 0
  %4549 = vmatpush2.bf16.msra.mxu0 0
  %4550 = vmatprep.subr.bf16.mxu0 0
  %4551 = vmatpush2.bf16.msra.mxu0 0
  %4552 = vmatprep.subr.bf16.mxu0 0
  %4553 = vmatpush2.bf16.msra.mxu0 0
  %4554 = vmatprep.subr.bf16.mxu0 0
  %4555 = vmatpush2.bf16.msra.mxu0 0
  %4556 = vmatprep.subr.bf16.mxu0 0
  %4557 = vmatpush2.bf16.msra.mxu0 0
  %4558 = vmatprep.subr.bf16.mxu0 0
  %4559 = vmatpush2.bf16.msra.mxu0 0
  %4560 = vmatprep.mubr.bf16.mxu0 0
  %4561 = vmatmul.mubr.bf16.gmra.mxu0 %v4367
  %v4562 = vpop.f32.mrf.mxu0
  %v4563 = vadd.f32 0.0, %v4562
  %v4564 = vpop.f32.mrf.mxu0
  %v4565 = vadd.f32 0.0, %v4564
  %v4566 = vpop.f32.mrf.mxu0
  %v4567 = vpop.f32.mrf.mxu0
  %4568 = vdwg.mxu0
  %4569 = vmatprep.subr.bf16.mxu0 0
  %4570 = vmatpush1.bf16.msra.mxu0 %v4503
  %4571 = vmatprep.subr.bf16.mxu0 0
  %4572 = vmatpush1.bf16.msra.mxu0 %v4500
  %4573 = vmatprep.subr.bf16.mxu0 0
  %4574 = vmatpush1.bf16.msra.mxu0 %v4497
  %4575 = vmatprep.subr.bf16.mxu0 0
  %4576 = vmatpush1.bf16.msra.mxu0 %v4494
  %4577 = vmatprep.subr.bf16.mxu0 0
  %4578 = vmatpush1.bf16.msra.mxu0 %v4491
  %4579 = vmatprep.subr.bf16.mxu0 0
  %4580 = vmatpush1.bf16.msra.mxu0 %v4488
  %4581 = vmatprep.subr.bf16.mxu0 0
  %4582 = vmatpush1.bf16.msra.mxu0 %v4485
  %4583 = vmatprep.subr.bf16.mxu0 0
  %4584 = vmatpush1.bf16.msra.mxu0 %v4482
  %4585 = vmatprep.subr.bf16.mxu0 0
  %4586 = vmatpush2.bf16.msra.mxu0 0
  %4587 = vmatprep.subr.bf16.mxu0 0
  %4588 = vmatpush2.bf16.msra.mxu0 0
  %4589 = vmatprep.subr.bf16.mxu0 0
  %4590 = vmatpush2.bf16.msra.mxu0 0
  %4591 = vmatprep.subr.bf16.mxu0 0
  %4592 = vmatpush2.bf16.msra.mxu0 0
  %4593 = vmatprep.subr.bf16.mxu0 0
  %4594 = vmatpush2.bf16.msra.mxu0 0
  %4595 = vmatprep.subr.bf16.mxu0 0
  %4596 = vmatpush2.bf16.msra.mxu0 0
  %4597 = vmatprep.subr.bf16.mxu0 0
  %4598 = vmatpush2.bf16.msra.mxu0 0
  %4599 = vmatprep.subr.bf16.mxu0 0
  %4600 = vmatpush2.bf16.msra.mxu0 0
  %4601 = vmatprep.mubr.bf16.mxu0 0
  %4602 = vmatmul.mubr.bf16.gmra.mxu0 %v4367
  %v4603 = vpop.f32.mrf.mxu0
  %v4604 = vadd.f32 0.0, %v4603
  %v4605 = vpop.f32.mrf.mxu0
  %v4606 = vpop.f32.mrf.mxu0
  %v4607 = vpop.f32.mrf.mxu0
  %4608 = vdwg.mxu0
  %v4609 = vadd.f32 %v4364, %v4563
  %v4610 = vxor.u32 %v4609, 2147483648
  %v4611 = vmul.f32 %v4610, 1.442695
  %v4612 = vpow.pop %v4611
  %v4613 = vadd.f32 %v4612, 1.0
  %v4614 = vrcp.pop %v4613
  %v4615 = vmul.f32 1.0, %v4614
  %v4616 = vadd.f32 %v4365, %v4565
  %v4617 = vxor.u32 %v4616, 2147483648
  %v4618 = vmul.f32 %v4617, 1.442695
  %v4619 = vpow.pop %v4618
  %v4620 = vadd.f32 %v4619, 1.0
  %v4621 = vrcp.pop %v4620
  %v4622 = vmul.f32 1.0, %v4621
  %v4623 = vadd.f32 %v4604, %v843
  %v4624 = vmul.f32 %v4615, %v4623
  %v4625 = vadd.f32 %v4366, %v4624
  %v4626 = vtanh.pop %v4625
  %v4627 = vsub.f32 1.0, %v4622
  %v4628 = vmul.f32 %v4627, %v4626
  %v4629 = vmul.f32 %v4622, %v4091
  %v4630 = vadd.f32 %v4628, %v4629
  %s4631 = scalar_lea.vmem [#allocation4], 56
  %4632 = vst [vmem:[%s4631] sm:$0xff] %v4363
  %4633 = vst [vmem:[#allocation5] sm:$0xff] %v4630
  %v4634 = vld [vmem:[#allocation4] sm:$0xff]
  %v4635 = vld [vmem:[#allocation4 + $0x8] sm:$0xff]
  %v4636 = vld [vmem:[#allocation4 + $0x10] sm:$0xff]
  %v4637 = vld [vmem:[#allocation4 + $0x18] sm:$0xff]
  %v4638 = vld [vmem:[#allocation4 + $0x20] sm:$0xff]
  %v4639 = vld [vmem:[#allocation4 + $0x28] sm:$0xff]
  %v4640 = vld [vmem:[#allocation4 + $0x30] sm:$0xff]
  %v4641 = vld [vmem:[#allocation4 + $0x38] sm:$0xff]
  %v4642 = vld [vmem:[%s10] sm:$0x1]
  %v4644 = vlaneseq
  %v4645 = vshrl.u32 %v4644, 7
  %v4646 = vsub.s32 0, %v4645
  %v4647 = vrot.slane %v4642, %v4646
  %v4649 = vmul.f32 %v4634, %v4647
  %v4650 = vmul.f32 %v4635, %v4647
  %v4651 = vmul.f32 %v4636, %v4647
  %v4652 = vmul.f32 %v4637, %v4647
  %v4653 = vmul.f32 %v4638, %v4647
  %v4654 = vmul.f32 %v4639, %v4647
  %v4655 = vmul.f32 %v4640, %v4647
  %v4656 = vmul.f32 %v4641, %v4647
  %4657 = vadd.xlane.f32.xlu0 %v4649
  %v4658 = vpop.xlane.xlu0 %4657
  %4659 = vadd.xlane.f32.xlu0 %v4650
  %v4660 = vpop.xlane.xlu0 %4659
  %4661 = vadd.xlane.f32.xlu0 %v4651
  %v4662 = vpop.xlane.xlu0 %4661
  %4663 = vadd.xlane.f32.xlu0 %v4652
  %v4664 = vpop.xlane.xlu0 %4663
  %4665 = vadd.xlane.f32.xlu0 %v4653
  %v4666 = vpop.xlane.xlu0 %4665
  %4667 = vadd.xlane.f32.xlu0 %v4654
  %v4668 = vpop.xlane.xlu0 %4667
  %4669 = vadd.xlane.f32.xlu0 %v4655
  %v4670 = vpop.xlane.xlu0 %4669
  %4671 = vadd.xlane.f32.xlu0 %v4656
  %v4672 = vpop.xlane.xlu0 %4671
  %v4673 = vld [vmem:[#allocation5] sm:$0xff]
  %v4674 = vld [vmem:[#allocation5 + $0x8] sm:$0xff]
  %v4675 = vld [vmem:[#allocation5 + $0x10] sm:$0xff]
  %v4676 = vld [vmem:[#allocation5 + $0x18] sm:$0xff]
  %v4677 = vld [vmem:[#allocation5 + $0x20] sm:$0xff]
  %v4678 = vld [vmem:[#allocation5 + $0x28] sm:$0xff]
  %v4679 = vld [vmem:[#allocation5 + $0x30] sm:$0xff]
  %v4680 = vld [vmem:[#allocation5 + $0x38] sm:$0xff]
  %v4681 = vld [vmem:[%s11] sm:$0x1]
  %v4683 = vlaneseq
  %v4684 = vshrl.u32 %v4683, 7
  %v4685 = vsub.s32 0, %v4684
  %v4686 = vrot.slane %v4681, %v4685
  %v4688 = vmul.f32 %v4673, %v4686
  %v4689 = vmul.f32 %v4674, %v4686
  %v4690 = vmul.f32 %v4675, %v4686
  %v4691 = vmul.f32 %v4676, %v4686
  %v4692 = vmul.f32 %v4677, %v4686
  %v4693 = vmul.f32 %v4678, %v4686
  %v4694 = vmul.f32 %v4679, %v4686
  %v4695 = vmul.f32 %v4680, %v4686
  %4696 = vadd.xlane.f32.xlu0 %v4688
  %v4697 = vpop.xlane.xlu0 %4696
  %4698 = vadd.xlane.f32.xlu0 %v4689
  %v4699 = vpop.xlane.xlu0 %4698
  %4700 = vadd.xlane.f32.xlu0 %v4690
  %v4701 = vpop.xlane.xlu0 %4700
  %4702 = vadd.xlane.f32.xlu0 %v4691
  %v4703 = vpop.xlane.xlu0 %4702
  %4704 = vadd.xlane.f32.xlu0 %v4692
  %v4705 = vpop.xlane.xlu0 %4704
  %4706 = vadd.xlane.f32.xlu0 %v4693
  %v4707 = vpop.xlane.xlu0 %4706
  %4708 = vadd.xlane.f32.xlu0 %v4694
  %v4709 = vpop.xlane.xlu0 %4708
  %4710 = vadd.xlane.f32.xlu0 %v4695
  %v4711 = vpop.xlane.xlu0 %4710
  %v4712 = vadd.f32 %v4658, %v4697
  %v4713 = vadd.f32 %v4660, %v4699
  %v4714 = vadd.f32 %v4662, %v4701
  %v4715 = vadd.f32 %v4664, %v4703
  %v4716 = vadd.f32 %v4666, %v4705
  %v4717 = vadd.f32 %v4668, %v4707
  %v4718 = vadd.f32 %v4670, %v4709
  %v4719 = vadd.f32 %v4672, %v4711
  %s4720 = sld [smem:[#allocation6]]
  %v4721 = vstv %s4720
  %v4722 = vadd.f32 %v4712, %v4721
  %v4723 = vadd.f32 %v4713, %v4721
  %v4724 = vadd.f32 %v4714, %v4721
  %v4725 = vadd.f32 %v4715, %v4721
  %v4726 = vadd.f32 %v4716, %v4721
  %v4727 = vadd.f32 %v4717, %v4721
  %v4728 = vadd.f32 %v4718, %v4721
  %v4729 = vadd.f32 %v4719, %v4721
  %v4730 = vld [vmem:[%s0] sm:$0xff]
  %v4732 = vlaneseq
  %v4733 = vshrl.u32 %v4732, 7
  %v4734 = vsub.s32 0, %v4733
  %v4735 = vrot.slane %v4730, %v4734
  %4737 = vbcast.lane.b32.xlu0 %v4735, 256
  %v4738 = vpop.permute.xlu0 %4737
  %v4739 = vlaneseq
  %v4740 = vshrl.u32 %v4739, 7
  %v4741 = vsub.s32 1, %v4740
  %v4742 = vrot.slane %v4730, %v4741
  %4744 = vbcast.lane.b32.xlu0 %v4742, 256
  %v4745 = vpop.permute.xlu0 %4744
  %v4746 = vlaneseq
  %v4747 = vshrl.u32 %v4746, 7
  %v4748 = vsub.s32 2, %v4747
  %v4749 = vrot.slane %v4730, %v4748
  %4751 = vbcast.lane.b32.xlu0 %v4749, 256
  %v4752 = vpop.permute.xlu0 %4751
  %v4753 = vlaneseq
  %v4754 = vshrl.u32 %v4753, 7
  %v4755 = vsub.s32 3, %v4754
  %v4756 = vrot.slane %v4730, %v4755
  %4758 = vbcast.lane.b32.xlu0 %v4756, 256
  %v4759 = vpop.permute.xlu0 %4758
  %v4760 = vlaneseq
  %v4761 = vshrl.u32 %v4760, 7
  %v4762 = vsub.s32 4, %v4761
  %v4763 = vrot.slane %v4730, %v4762
  %4765 = vbcast.lane.b32.xlu0 %v4763, 256
  %v4766 = vpop.permute.xlu0 %4765
  %v4767 = vlaneseq
  %v4768 = vshrl.u32 %v4767, 7
  %v4769 = vsub.s32 5, %v4768
  %v4770 = vrot.slane %v4730, %v4769
  %4772 = vbcast.lane.b32.xlu0 %v4770, 256
  %v4773 = vpop.permute.xlu0 %4772
  %v4774 = vlaneseq
  %v4775 = vshrl.u32 %v4774, 7
  %v4776 = vsub.s32 6, %v4775
  %v4777 = vrot.slane %v4730, %v4776
  %4779 = vbcast.lane.b32.xlu0 %v4777, 256
  %v4780 = vpop.permute.xlu0 %4779
  %v4781 = vlaneseq
  %v4782 = vshrl.u32 %v4781, 7
  %v4783 = vsub.s32 7, %v4782
  %v4784 = vrot.slane %v4730, %v4783
  %4786 = vbcast.lane.b32.xlu0 %v4784, 256
  %v4787 = vpop.permute.xlu0 %4786
  %v4796 = vmin.f32 %v4722, %v4738
  %v4797 = vmin.f32 %v4723, %v4745
  %v4798 = vmin.f32 %v4724, %v4752
  %v4799 = vmin.f32 %v4725, %v4759
  %v4800 = vmin.f32 %v4726, %v4766
  %v4801 = vmin.f32 %v4727, %v4773
  %v4802 = vmin.f32 %v4728, %v4780
  %v4803 = vmin.f32 %v4729, %v4787
  %4812 = vset.pattern.permute.xlu0 0
  %4813 = vperm.xlu0 %4812, %v4796
  %v4814 = vpop.permute.xlu0 %4813
  %4815 = vset.pattern.permute.xlu0 0
  %4816 = vperm.xlu0 %4815, %v4797
  %v4817 = vpop.permute.xlu0 %4816
  %4818 = vset.pattern.permute.xlu0 0
  %4819 = vperm.xlu0 %4818, %v4798
  %v4820 = vpop.permute.xlu0 %4819
  %4821 = vset.pattern.permute.xlu0 0
  %4822 = vperm.xlu0 %4821, %v4799
  %v4823 = vpop.permute.xlu0 %4822
  %4824 = vset.pattern.permute.xlu0 0
  %4825 = vperm.xlu0 %4824, %v4800
  %v4826 = vpop.permute.xlu0 %4825
  %4827 = vset.pattern.permute.xlu0 0
  %4828 = vperm.xlu0 %4827, %v4801
  %v4829 = vpop.permute.xlu0 %4828
  %4830 = vset.pattern.permute.xlu0 0
  %4831 = vperm.xlu0 %4830, %v4802
  %v4832 = vpop.permute.xlu0 %4831
  %4833 = vset.pattern.permute.xlu0 0
  %4834 = vperm.xlu0 %4833, %v4803
  %v4835 = vpop.permute.xlu0 %4834
  %v4836 = vlaneseq
  %v4837 = vand.u32 %v4836, 127
  %v4838 = vlaneseq
  %v4839 = vshrl.u32 %v4838, 7
  %v4840 = vsub.s32 %v4837, %v4839
  %v4841 = vrot.slane %v4814, %v4840
  %v4842 = vlaneseq
  %v4843 = vshrl.u32 %v4842, 7
  %v4844 = vsub.s32 %v4837, %v4843
  %v4845 = vrot.slane %v4817, %v4844
  %v4846 = vlaneseq
  %v4847 = vshrl.u32 %v4846, 7
  %v4848 = vsub.s32 %v4837, %v4847
  %v4849 = vrot.slane %v4820, %v4848
  %v4850 = vlaneseq
  %v4851 = vshrl.u32 %v4850, 7
  %v4852 = vsub.s32 %v4837, %v4851
  %v4853 = vrot.slane %v4823, %v4852
  %v4854 = vlaneseq
  %v4855 = vshrl.u32 %v4854, 7
  %v4856 = vsub.s32 %v4837, %v4855
  %v4857 = vrot.slane %v4826, %v4856
  %v4858 = vlaneseq
  %v4859 = vshrl.u32 %v4858, 7
  %v4860 = vsub.s32 %v4837, %v4859
  %v4861 = vrot.slane %v4829, %v4860
  %v4862 = vlaneseq
  %v4863 = vshrl.u32 %v4862, 7
  %v4864 = vsub.s32 %v4837, %v4863
  %v4865 = vrot.slane %v4832, %v4864
  %v4866 = vlaneseq
  %v4867 = vshrl.u32 %v4866, 7
  %v4868 = vsub.s32 %v4837, %v4867
  %v4869 = vrot.slane %v4835, %v4868
  %vm4870 = vcmask 1041409
  %v4871 = vsel %vm4870, %v4845, %v4841
  %vm4872 = vcmask 1042434
  %v4873 = vsel %vm4872, %v4849, %v4871
  %vm4874 = vcmask 1043459
  %v4875 = vsel %vm4874, %v4853, %v4873
  %vm4876 = vcmask 1044484
  %v4877 = vsel %vm4876, %v4857, %v4875
  %vm4878 = vcmask 1045509
  %v4879 = vsel %vm4878, %v4861, %v4877
  %vm4880 = vcmask 1046534
  %v4881 = vsel %vm4880, %v4865, %v4879
  %vm4882 = vcmask 1047559
  %v4883 = vsel %vm4882, %v4869, %v4881
  %vm4885 = vcmask 64512
  %4886 = vst.msk [vmem:[%s13] sm:$0xff] %vm4885, %v4883
  // Predicated region
  $region54: #{custom_rnn_forward.1} parent=0 // pred_check
    _
  $region55: #{custom_rnn_forward.1} parent=0 // pred_check_branch
    %4888 = sbr.rel (0) target = $region57
  $region56: #{custom_rnn_forward.1} parent=0 // pred_region
    _
  $region57: #{custom_rnn_forward.1} parent=0 // pred_fallthru
    _
  // Predicated region
  $region58: #{custom_rnn_forward.1} parent=0 // pred_check
    _
  $region59: #{custom_rnn_forward.1} parent=0 // pred_check_branch
    %4890 = sbr.rel (0) target = $region61
  $region60: #{custom_rnn_forward.1} parent=0 // pred_region
    _
  $region61: #{custom_rnn_forward.1} parent=0 // pred_fallthru
    _

</llo_original>
